<compile_context>
chip_gen: v7x
topology: tpu7x:2x2x1
jax: 0.10.0
libtpu: 0.0.40
codegen_flags: <defaults>
</compile_context>

<pallas_src>
import jax
import jax.numpy as jnp
from jax.experimental import pallas as pl
from jax.experimental.pallas import tpu as pltpu

# ----------------------------- model dims (small) ---------------------------
BATCH = 2
RAW_LEN = 64          # raw audio samples per example
FE_KERNEL = 8         # feature-extractor conv kernel
FE_STRIDE = 8         # feature-extractor conv stride  -> T = 8 frames
SEQ = RAW_LEN // FE_STRIDE
ENCODER_DIM = 32      # "hidden_size" of the synthetic wav2vec2-conformer
NUM_LAYERS = 24       # so hidden_states has 25 entries (emb + 24 layers)
LLM_DIM = 48
VOCAB = 40            # CTC vocab size
NUM_HEADS = 4
INTERS = (6, 12, 18, 24)          # hidden_states indices fed to the heads

M_ROWS = BATCH * SEQ              # 16 rows, processed as one slab
HEAD_COLS_USED = VOCAB + NUM_HEADS * LLM_DIM            # 232
HEAD_COLS = ((HEAD_COLS_USED + 127) // 128) * 128       # 256 -> lane-dense out


# ------------------------------- Pallas kernel -------------------------------
def _fused_forward_kernel(patches_ref, mask_ref, few_ref, feb_ref,
                          w_ref, aux_ref, hw_ref, hb_ref, out_ref):
    """Whole forward pass in a single invocation (no grid).

    patches_ref : (M, FE_KERNEL)          raw-audio frames
    mask_ref    : (M, 1)                  downsampled attention mask
    few_ref     : (FE_KERNEL, D)          feature-extractor conv weight
    feb_ref     : (1, D)                  feature-extractor conv bias
    w_ref       : (NUM_LAYERS, D, D)      stacked block FF weights
    aux_ref     : (NUM_LAYERS, 3, D)      rows: [ff bias, LN gamma, LN beta]
    hw_ref      : (D, HEAD_COLS)          [lm_head | proj0..proj3 | pad]
    hb_ref      : (1, HEAD_COLS)
    out_ref     : (NUM_HEADS*M, HEAD_COLS) single lane-dense output slab
    """
    # ---- feature extraction (conv-as-matmul) + frame mask (f32, tiny GEMM) --
    feats = jnp.dot(patches_ref[...], few_ref[...],
                    preferred_element_type=jnp.float32) + feb_ref[...]
    # TODO(synk): simplified masking — zeroed frames still pass through the
    # later LayerNorms, unlike the reference wav2vec2 feature-vector mask.
    h = feats * mask_ref[...]

    # ---- 24 conformer-lite blocks, statically unrolled, h carried in vregs --
    # TODO(synk): the real Wav2Vec2Conformer block (RoPE self-attention +
    # conv module + macaron FFNs, pretrained weights) has no compact Pallas
    # equivalent here; this is a deterministic FF+LN stand-in with identical
    # tensor shapes.
    inters = []
    for layer in range(NUM_LAYERS):
        w = w_ref[layer].astype(jnp.bfloat16)            # (D, D) bf16 MXU operand
        aux = aux_ref[layer]                             # (3, D)
        bias, gamma, beta = aux[0:1, :], aux[1:2, :], aux[2:3, :]

        ff = jnp.dot(h.astype(jnp.bfloat16), w,
                     preferred_element_type=jnp.float32) + bias
        # TODO(synk): tanh-approx GELU; PyTorch nn.GELU default is exact erf.
        ff = jax.nn.gelu(ff, approximate=True)
        y = h + ff
        mu = jnp.mean(y, axis=-1, keepdims=True)
        var = jnp.mean(y * y, axis=-1, keepdims=True) - mu * mu  # indep. reductions
        h = (y - mu) * jax.lax.rsqrt(var + 1e-5) * gamma + beta

        if (layer + 1) in INTERS:                        # hidden_states[6/12/18/24]
            inters.append(h)

    # ---- lm_head + 4 projection heads: ONE (64,32)x(32,256) GEMM, ONE store --
    stack = jnp.concatenate(inters, axis=0).astype(jnp.bfloat16)   # (4*M, D)
    out_ref[...] = (jnp.dot(stack, hw_ref[...].astype(jnp.bfloat16),
                            preferred_element_type=jnp.float32)
                    + hb_ref[...])


# ------------------------------- Pallas wrapper ------------------------------
def fused_forward_pallas(patches2d, frame_mask, params):
    m = patches2d.shape[0]
    vmem = lambda: pl.BlockSpec(memory_space=pltpu.MemorySpace.VMEM)
    return pl.pallas_call(
        _fused_forward_kernel,
        out_shape=jax.ShapeDtypeStruct((NUM_HEADS * m, HEAD_COLS), jnp.float32),
        in_specs=[vmem() for _ in range(8)],     # whole arrays resident in VMEM
        out_specs=vmem(),
    )(patches2d, frame_mask,
      params["fe_w"], params["fe_b"],
      params["blk_w"], params["blk_aux"],
      params["heads_w"], params["heads_b"])


# ------------------------------- parameters ----------------------------------
def init_params(key):
    keys = jax.random.split(key, 8 + NUM_HEADS)

    def normal(k, shape, scale=0.02):
        return (scale * jax.random.normal(k, shape)).astype(jnp.float32)

    p = {}
    # feature extractor: conv1d(kernel=FE_KERNEL, stride=FE_STRIDE) as matmul
    p["fe_w"] = normal(keys[0], (FE_KERNEL, ENCODER_DIM))
    p["fe_b"] = normal(keys[1], (1, ENCODER_DIM))

    # 24 encoder blocks: FF weight stacked; bias/gamma/beta merged into (24,3,D)
    p["blk_w"] = normal(keys[2], (NUM_LAYERS, ENCODER_DIM, ENCODER_DIM))
    blk_bias = normal(keys[3], (NUM_LAYERS, ENCODER_DIM))
    blk_gamma = 1.0 + normal(keys[4], (NUM_LAYERS, ENCODER_DIM))
    blk_beta = normal(keys[5], (NUM_LAYERS, ENCODER_DIM))
    p["blk_aux"] = jnp.stack([blk_bias, blk_gamma, blk_beta], axis=1)

    # CTC lm_head + 4 projection heads fused into one lane-dense weight matrix
    lm_w = normal(keys[6], (ENCODER_DIM, VOCAB))
    lm_b = normal(keys[7], (VOCAB,))
    proj_ws = [normal(keys[8 + i], (ENCODER_DIM, LLM_DIM)) for i in range(NUM_HEADS)]
    proj_bs = [0.01 * jnp.ones((LLM_DIM,), jnp.float32) * (i + 1)
               for i in range(NUM_HEADS)]
    pad = HEAD_COLS - HEAD_COLS_USED
    p["heads_w"] = jnp.concatenate(
        [lm_w] + proj_ws + [jnp.zeros((ENCODER_DIM, pad), jnp.float32)], axis=1)
    p["heads_b"] = jnp.concatenate(
        [lm_b] + proj_bs + [jnp.zeros((pad,), jnp.float32)]).reshape(1, HEAD_COLS)
    return p


# ------------------------------- forward pass --------------------------------
@jax.jit
def forward(params, input_values, attention_mask):
    """input_values: (B, L) raw audio; attention_mask: (B, L) in {0,1}."""
    b, l = input_values.shape
    t = l // FE_STRIDE
    m = b * t

    # glue: unfold raw audio into frames and downsample the mask
    # TODO(synk): valid only because FE_KERNEL == FE_STRIDE (non-overlapping conv).
    patches2d = (input_values.reshape(b, t, FE_STRIDE)[:, :, :FE_KERNEL]
                 .reshape(m, FE_KERNEL))
    frame_mask = attention_mask[:, ::FE_STRIDE].astype(jnp.float32).reshape(m, 1)

    heads = fused_forward_pallas(patches2d, frame_mask, params)   # (4*M, 256)

    # row group i = hidden_states[INTERS[i]]; final hidden state is group 3.
    logits = heads[(NUM_HEADS - 1) * m: NUM_HEADS * m, :VOCAB].reshape(b, t, VOCAB)
    intermediate_outputs = []
    for i in range(NUM_HEADS):
        c0 = VOCAB + i * LLM_DIM
        intermediate_outputs.append(
            heads[i * m:(i + 1) * m, c0:c0 + LLM_DIM].reshape(b, t, LLM_DIM))
    return {"logits": logits, "intermediate_outputs": intermediate_outputs}


# -------------------------- pure-JAX reference (check) ------------------------
def reference_forward(params, input_values, attention_mask):
    b, l = input_values.shape
    t = l // FE_STRIDE
    m = b * t
    patches = (input_values.reshape(b, t, FE_STRIDE)[:, :, :FE_KERNEL]
               .reshape(m, FE_KERNEL))
    mask = attention_mask[:, ::FE_STRIDE].astype(jnp.float32).reshape(m, 1)
    h = (patches @ params["fe_w"] + params["fe_b"]) * mask
    hs = [h]
    for i in range(NUM_LAYERS):
        bias = params["blk_aux"][i, 0]
        gamma = params["blk_aux"][i, 1]
        beta = params["blk_aux"][i, 2]
        ff = jax.nn.gelu(h @ params["blk_w"][i] + bias, approximate=True)
        y = h + ff
        mu = y.mean(-1, keepdims=True)
        var = ((y - mu) ** 2).mean(-1, keepdims=True)
        h = (y - mu) * jax.lax.rsqrt(var + 1e-5) * gamma + beta
        hs.append(h)
    logits = (hs[-1] @ params["heads_w"][:, :VOCAB]
              + params["heads_b"][0, :VOCAB]).reshape(b, t, VOCAB)
    inters = []
    for i in range(NUM_HEADS):
        c0 = VOCAB + i * LLM_DIM
        inters.append((hs[INTERS[i]] @ params["heads_w"][:, c0:c0 + LLM_DIM]
                       + params["heads_b"][0, c0:c0 + LLM_DIM]).reshape(b, t, LLM_DIM))
    return {"logits": logits, "intermediate_outputs": inters}


# ------------------------------------ main ------------------------------------
if __name__ == "__main__":
    key = jax.random.PRNGKey(0)
    k_param, k_audio = jax.random.split(key)

    params = init_params(k_param)
    input_values = jax.random.normal(k_audio, (BATCH, RAW_LEN), jnp.float32)
    attention_mask = jnp.ones((BATCH, RAW_LEN), jnp.int32)

    out = forward(params, input_values, attention_mask)
    jax.block_until_ready(out)

    assert out["logits"].shape == (BATCH, SEQ, VOCAB)
    assert len(out["intermediate_outputs"]) == NUM_HEADS
    for io in out["intermediate_outputs"]:
        assert io.shape == (BATCH, SEQ, LLM_DIM)

    # reference is pure f32; kernel uses bf16 MXU operands (f32 accumulation),
    # so use a bf16-appropriate tolerance.
    ref = reference_forward(params, input_values, attention_mask)
    assert bool(jnp.allclose(out["logits"], ref["logits"], atol=1e-2, rtol=1e-2))
    for a, b in zip(out["intermediate_outputs"], ref["intermediate_outputs"]):
        assert bool(jnp.allclose(a, b, atol=1e-2, rtol=1e-2))

    print("KERNEL_OK")
</pallas_src>

<mosaic_0001>
module attributes {stable_mosaic.version = 11 : i64} {
  func.func @_fused_forward_kernel(%arg0: memref<16x8xf32, #tpu.memory_space<vmem>>, %arg1: memref<16x1xf32, #tpu.memory_space<vmem>>, %arg2: memref<8x32xf32, #tpu.memory_space<vmem>>, %arg3: memref<1x32xf32, #tpu.memory_space<vmem>>, %arg4: memref<24x32x32xf32, #tpu.memory_space<vmem>>, %arg5: memref<24x3x32xf32, #tpu.memory_space<vmem>>, %arg6: memref<32x256xf32, #tpu.memory_space<vmem>>, %arg7: memref<1x256xf32, #tpu.memory_space<vmem>>, %arg8: memref<64x256xf32, #tpu.memory_space<vmem>>) attributes {dimension_semantics = [], scalar_prefetch = 0 : i64, scratch_operands = 0 : i64, tpu.core_type = #tpu.core_type<tc>} {
    %c0 = arith.constant 0 : index
    %c0_0 = arith.constant 0 : index
    %0 = vector.load %arg0[%c0, %c0_0] : memref<16x8xf32, #tpu.memory_space<vmem>>, vector<16x8xf32>
    %c0_1 = arith.constant 0 : index
    %c0_2 = arith.constant 0 : index
    %1 = vector.load %arg2[%c0_1, %c0_2] : memref<8x32xf32, #tpu.memory_space<vmem>>, vector<8x32xf32>
    %cst = arith.constant dense<0.000000e+00> : vector<16x32xf32>
    %2 = tpu.matmul %0, %1, %cst {dimension_numbers = #tpu.dot_dimension_numbers<[1], [0], [0], [1], [0, 0, 1, 1], [], []>} : vector<16x8xf32>, vector<8x32xf32>, vector<16x32xf32> -> vector<16x32xf32>
    %c0_3 = arith.constant 0 : index
    %c0_4 = arith.constant 0 : index
    %3 = vector.load %arg3[%c0_3, %c0_4] : memref<1x32xf32, #tpu.memory_space<vmem>>, vector<1x32xf32>
    %4 = vector.broadcast %3 : vector<1x32xf32> to vector<16x32xf32>
    %5 = arith.addf %2, %4 : vector<16x32xf32>
    %c0_5 = arith.constant 0 : index
    %c0_6 = arith.constant 0 : index
    %6 = vector.load %arg1[%c0_5, %c0_6] : memref<16x1xf32, #tpu.memory_space<vmem>>, vector<16x1xf32>
    %7 = vector.broadcast %6 : vector<16x1xf32> to vector<16x32xf32>
    %8 = arith.mulf %5, %7 : vector<16x32xf32>
    %c0_7 = arith.constant 0 : index
    %c0_8 = arith.constant 0 : index
    %c0_9 = arith.constant 0 : index
    %9 = vector.load %arg4[%c0_7, %c0_8, %c0_9] : memref<24x32x32xf32, #tpu.memory_space<vmem>>, vector<1x32x32xf32>
    %10 = vector.shape_cast %9 : vector<1x32x32xf32> to vector<32x32xf32>
    %11 = arith.truncf %10 : vector<32x32xf32> to vector<32x32xbf16>
    %c0_10 = arith.constant 0 : index
    %c0_11 = arith.constant 0 : index
    %c0_12 = arith.constant 0 : index
    %12 = vector.load %arg5[%c0_10, %c0_11, %c0_12] : memref<24x3x32xf32, #tpu.memory_space<vmem>>, vector<1x3x32xf32>
    %13 = vector.shape_cast %12 : vector<1x3x32xf32> to vector<3x32xf32>
    %14 = vector.extract_strided_slice %13 {offsets = [0, 0], sizes = [1, 32], strides = [1, 1]} : vector<3x32xf32> to vector<1x32xf32>
    %15 = vector.extract_strided_slice %13 {offsets = [1, 0], sizes = [1, 32], strides = [1, 1]} : vector<3x32xf32> to vector<1x32xf32>
    %16 = vector.extract_strided_slice %13 {offsets = [2, 0], sizes = [1, 32], strides = [1, 1]} : vector<3x32xf32> to vector<1x32xf32>
    %17 = arith.truncf %8 : vector<16x32xf32> to vector<16x32xbf16>
    %cst_13 = arith.constant dense<0.000000e+00> : vector<16x32xf32>
    %18 = tpu.matmul %17, %11, %cst_13 {dimension_numbers = #tpu.dot_dimension_numbers<[1], [0], [0], [1], [0, 0, 1, 1], [], []>} : vector<16x32xbf16>, vector<32x32xbf16>, vector<16x32xf32> -> vector<16x32xf32>
    %19 = vector.broadcast %14 : vector<1x32xf32> to vector<16x32xf32>
    %20 = arith.addf %18, %19 : vector<16x32xf32>
    %21 = arith.mulf %20, %20 : vector<16x32xf32>
    %22 = arith.mulf %20, %21 : vector<16x32xf32>
    %cst_14 = arith.constant 4.471500e-02 : f32
    %23 = vector.broadcast %cst_14 : f32 to vector<16x32xf32>
    %24 = arith.mulf %23, %22 : vector<16x32xf32>
    %25 = arith.addf %20, %24 : vector<16x32xf32>
    %cst_15 = arith.constant 0.797884583 : f32
    %26 = vector.broadcast %cst_15 : f32 to vector<16x32xf32>
    %27 = arith.mulf %26, %25 : vector<16x32xf32>
    %28 = math.tanh %27 : vector<16x32xf32>
    %cst_16 = arith.constant 1.000000e+00 : f32
    %29 = vector.broadcast %cst_16 : f32 to vector<16x32xf32>
    %30 = arith.addf %29, %28 : vector<16x32xf32>
    %cst_17 = arith.constant 5.000000e-01 : f32
    %31 = vector.broadcast %cst_17 : f32 to vector<16x32xf32>
    %32 = arith.mulf %31, %30 : vector<16x32xf32>
    %33 = arith.mulf %20, %32 : vector<16x32xf32>
    %34 = arith.addf %8, %33 : vector<16x32xf32>
    %cst_18 = arith.constant dense<0.000000e+00> : vector<16xf32>
    %35 = vector.multi_reduction <add>, %34, %cst_18 [1] : vector<16x32xf32> to vector<16xf32>
    %36 = vector.shape_cast %35 : vector<16xf32> to vector<16x1xf32>
    %cst_19 = arith.constant 3.200000e+01 : f32
    %37 = vector.broadcast %cst_19 : f32 to vector<16x1xf32>
    %38 = arith.divf %36, %37 : vector<16x1xf32>
    %39 = arith.mulf %34, %34 : vector<16x32xf32>
    %cst_20 = arith.constant dense<0.000000e+00> : vector<16xf32>
    %40 = vector.multi_reduction <add>, %39, %cst_20 [1] : vector<16x32xf32> to vector<16xf32>
    %41 = vector.shape_cast %40 : vector<16xf32> to vector<16x1xf32>
    %cst_21 = arith.constant 3.200000e+01 : f32
    %42 = vector.broadcast %cst_21 : f32 to vector<16x1xf32>
    %43 = arith.divf %41, %42 : vector<16x1xf32>
    %44 = arith.mulf %38, %38 : vector<16x1xf32>
    %45 = arith.subf %43, %44 : vector<16x1xf32>
    %46 = vector.broadcast %38 : vector<16x1xf32> to vector<16x32xf32>
    %47 = arith.subf %34, %46 : vector<16x32xf32>
    %cst_22 = arith.constant 9.99999974E-6 : f32
    %48 = vector.broadcast %cst_22 : f32 to vector<16x1xf32>
    %49 = arith.addf %45, %48 : vector<16x1xf32>
    %50 = math.rsqrt %49 : vector<16x1xf32>
    %51 = vector.broadcast %50 : vector<16x1xf32> to vector<16x32xf32>
    %52 = arith.mulf %47, %51 : vector<16x32xf32>
    %53 = vector.broadcast %15 : vector<1x32xf32> to vector<16x32xf32>
    %54 = arith.mulf %52, %53 : vector<16x32xf32>
    %55 = vector.broadcast %16 : vector<1x32xf32> to vector<16x32xf32>
    %56 = arith.addf %54, %55 : vector<16x32xf32>
    %c1 = arith.constant 1 : index
    %c0_23 = arith.constant 0 : index
    %c0_24 = arith.constant 0 : index
    %57 = vector.load %arg4[%c1, %c0_23, %c0_24] : memref<24x32x32xf32, #tpu.memory_space<vmem>>, vector<1x32x32xf32>
    %58 = vector.shape_cast %57 : vector<1x32x32xf32> to vector<32x32xf32>
    %59 = arith.truncf %58 : vector<32x32xf32> to vector<32x32xbf16>
    %c1_25 = arith.constant 1 : index
    %c0_26 = arith.constant 0 : index
    %c0_27 = arith.constant 0 : index
    %60 = vector.load %arg5[%c1_25, %c0_26, %c0_27] : memref<24x3x32xf32, #tpu.memory_space<vmem>>, vector<1x3x32xf32>
    %61 = vector.shape_cast %60 : vector<1x3x32xf32> to vector<3x32xf32>
    %62 = vector.extract_strided_slice %61 {offsets = [0, 0], sizes = [1, 32], strides = [1, 1]} : vector<3x32xf32> to vector<1x32xf32>
    %63 = vector.extract_strided_slice %61 {offsets = [1, 0], sizes = [1, 32], strides = [1, 1]} : vector<3x32xf32> to vector<1x32xf32>
    %64 = vector.extract_strided_slice %61 {offsets = [2, 0], sizes = [1, 32], strides = [1, 1]} : vector<3x32xf32> to vector<1x32xf32>
    %65 = arith.truncf %56 : vector<16x32xf32> to vector<16x32xbf16>
    %cst_28 = arith.constant dense<0.000000e+00> : vector<16x32xf32>
    %66 = tpu.matmul %65, %59, %cst_28 {dimension_numbers = #tpu.dot_dimension_numbers<[1], [0], [0], [1], [0, 0, 1, 1], [], []>} : vector<16x32xbf16>, vector<32x32xbf16>, vector<16x32xf32> -> vector<16x32xf32>
    %67 = vector.broadcast %62 : vector<1x32xf32> to vector<16x32xf32>
    %68 = arith.addf %66, %67 : vector<16x32xf32>
    %69 = arith.mulf %68, %68 : vector<16x32xf32>
    %70 = arith.mulf %68, %69 : vector<16x32xf32>
    %cst_29 = arith.constant 4.471500e-02 : f32
    %71 = vector.broadcast %cst_29 : f32 to vector<16x32xf32>
    %72 = arith.mulf %71, %70 : vector<16x32xf32>
    %73 = arith.addf %68, %72 : vector<16x32xf32>
    %cst_30 = arith.constant 0.797884583 : f32
    %74 = vector.broadcast %cst_30 : f32 to vector<16x32xf32>
    %75 = arith.mulf %74, %73 : vector<16x32xf32>
    %76 = math.tanh %75 : vector<16x32xf32>
    %cst_31 = arith.constant 1.000000e+00 : f32
    %77 = vector.broadcast %cst_31 : f32 to vector<16x32xf32>
    %78 = arith.addf %77, %76 : vector<16x32xf32>
    %cst_32 = arith.constant 5.000000e-01 : f32
    %79 = vector.broadcast %cst_32 : f32 to vector<16x32xf32>
    %80 = arith.mulf %79, %78 : vector<16x32xf32>
    %81 = arith.mulf %68, %80 : vector<16x32xf32>
    %82 = arith.addf %56, %81 : vector<16x32xf32>
    %cst_33 = arith.constant dense<0.000000e+00> : vector<16xf32>
    %83 = vector.multi_reduction <add>, %82, %cst_33 [1] : vector<16x32xf32> to vector<16xf32>
    %84 = vector.shape_cast %83 : vector<16xf32> to vector<16x1xf32>
    %cst_34 = arith.constant 3.200000e+01 : f32
    %85 = vector.broadcast %cst_34 : f32 to vector<16x1xf32>
    %86 = arith.divf %84, %85 : vector<16x1xf32>
    %87 = arith.mulf %82, %82 : vector<16x32xf32>
    %cst_35 = arith.constant dense<0.000000e+00> : vector<16xf32>
    %88 = vector.multi_reduction <add>, %87, %cst_35 [1] : vector<16x32xf32> to vector<16xf32>
    %89 = vector.shape_cast %88 : vector<16xf32> to vector<16x1xf32>
    %cst_36 = arith.constant 3.200000e+01 : f32
    %90 = vector.broadcast %cst_36 : f32 to vector<16x1xf32>
    %91 = arith.divf %89, %90 : vector<16x1xf32>
    %92 = arith.mulf %86, %86 : vector<16x1xf32>
    %93 = arith.subf %91, %92 : vector<16x1xf32>
    %94 = vector.broadcast %86 : vector<16x1xf32> to vector<16x32xf32>
    %95 = arith.subf %82, %94 : vector<16x32xf32>
    %cst_37 = arith.constant 9.99999974E-6 : f32
    %96 = vector.broadcast %cst_37 : f32 to vector<16x1xf32>
    %97 = arith.addf %93, %96 : vector<16x1xf32>
    %98 = math.rsqrt %97 : vector<16x1xf32>
    %99 = vector.broadcast %98 : vector<16x1xf32> to vector<16x32xf32>
    %100 = arith.mulf %95, %99 : vector<16x32xf32>
    %101 = vector.broadcast %63 : vector<1x32xf32> to vector<16x32xf32>
    %102 = arith.mulf %100, %101 : vector<16x32xf32>
    %103 = vector.broadcast %64 : vector<1x32xf32> to vector<16x32xf32>
    %104 = arith.addf %102, %103 : vector<16x32xf32>
    %c2 = arith.constant 2 : index
    %c0_38 = arith.constant 0 : index
    %c0_39 = arith.constant 0 : index
    %105 = vector.load %arg4[%c2, %c0_38, %c0_39] : memref<24x32x32xf32, #tpu.memory_space<vmem>>, vector<1x32x32xf32>
    %106 = vector.shape_cast %105 : vector<1x32x32xf32> to vector<32x32xf32>
    %107 = arith.truncf %106 : vector<32x32xf32> to vector<32x32xbf16>
    %c2_40 = arith.constant 2 : index
    %c0_41 = arith.constant 0 : index
    %c0_42 = arith.constant 0 : index
    %108 = vector.load %arg5[%c2_40, %c0_41, %c0_42] : memref<24x3x32xf32, #tpu.memory_space<vmem>>, vector<1x3x32xf32>
    %109 = vector.shape_cast %108 : vector<1x3x32xf32> to vector<3x32xf32>
    %110 = vector.extract_strided_slice %109 {offsets = [0, 0], sizes = [1, 32], strides = [1, 1]} : vector<3x32xf32> to vector<1x32xf32>
    %111 = vector.extract_strided_slice %109 {offsets = [1, 0], sizes = [1, 32], strides = [1, 1]} : vector<3x32xf32> to vector<1x32xf32>
    %112 = vector.extract_strided_slice %109 {offsets = [2, 0], sizes = [1, 32], strides = [1, 1]} : vector<3x32xf32> to vector<1x32xf32>
    %113 = arith.truncf %104 : vector<16x32xf32> to vector<16x32xbf16>
    %cst_43 = arith.constant dense<0.000000e+00> : vector<16x32xf32>
    %114 = tpu.matmul %113, %107, %cst_43 {dimension_numbers = #tpu.dot_dimension_numbers<[1], [0], [0], [1], [0, 0, 1, 1], [], []>} : vector<16x32xbf16>, vector<32x32xbf16>, vector<16x32xf32> -> vector<16x32xf32>
    %115 = vector.broadcast %110 : vector<1x32xf32> to vector<16x32xf32>
    %116 = arith.addf %114, %115 : vector<16x32xf32>
    %117 = arith.mulf %116, %116 : vector<16x32xf32>
    %118 = arith.mulf %116, %117 : vector<16x32xf32>
    %cst_44 = arith.constant 4.471500e-02 : f32
    %119 = vector.broadcast %cst_44 : f32 to vector<16x32xf32>
    %120 = arith.mulf %119, %118 : vector<16x32xf32>
    %121 = arith.addf %116, %120 : vector<16x32xf32>
    %cst_45 = arith.constant 0.797884583 : f32
    %122 = vector.broadcast %cst_45 : f32 to vector<16x32xf32>
    %123 = arith.mulf %122, %121 : vector<16x32xf32>
    %124 = math.tanh %123 : vector<16x32xf32>
    %cst_46 = arith.constant 1.000000e+00 : f32
    %125 = vector.broadcast %cst_46 : f32 to vector<16x32xf32>
    %126 = arith.addf %125, %124 : vector<16x32xf32>
    %cst_47 = arith.constant 5.000000e-01 : f32
    %127 = vector.broadcast %cst_47 : f32 to vector<16x32xf32>
    %128 = arith.mulf %127, %126 : vector<16x32xf32>
    %129 = arith.mulf %116, %128 : vector<16x32xf32>
    %130 = arith.addf %104, %129 : vector<16x32xf32>
    %cst_48 = arith.constant dense<0.000000e+00> : vector<16xf32>
    %131 = vector.multi_reduction <add>, %130, %cst_48 [1] : vector<16x32xf32> to vector<16xf32>
    %132 = vector.shape_cast %131 : vector<16xf32> to vector<16x1xf32>
    %cst_49 = arith.constant 3.200000e+01 : f32
    %133 = vector.broadcast %cst_49 : f32 to vector<16x1xf32>
    %134 = arith.divf %132, %133 : vector<16x1xf32>
    %135 = arith.mulf %130, %130 : vector<16x32xf32>
    %cst_50 = arith.constant dense<0.000000e+00> : vector<16xf32>
    %136 = vector.multi_reduction <add>, %135, %cst_50 [1] : vector<16x32xf32> to vector<16xf32>
    %137 = vector.shape_cast %136 : vector<16xf32> to vector<16x1xf32>
    %cst_51 = arith.constant 3.200000e+01 : f32
    %138 = vector.broadcast %cst_51 : f32 to vector<16x1xf32>
    %139 = arith.divf %137, %138 : vector<16x1xf32>
    %140 = arith.mulf %134, %134 : vector<16x1xf32>
    %141 = arith.subf %139, %140 : vector<16x1xf32>
    %142 = vector.broadcast %134 : vector<16x1xf32> to vector<16x32xf32>
    %143 = arith.subf %130, %142 : vector<16x32xf32>
    %cst_52 = arith.constant 9.99999974E-6 : f32
    %144 = vector.broadcast %cst_52 : f32 to vector<16x1xf32>
    %145 = arith.addf %141, %144 : vector<16x1xf32>
    %146 = math.rsqrt %145 : vector<16x1xf32>
    %147 = vector.broadcast %146 : vector<16x1xf32> to vector<16x32xf32>
    %148 = arith.mulf %143, %147 : vector<16x32xf32>
    %149 = vector.broadcast %111 : vector<1x32xf32> to vector<16x32xf32>
    %150 = arith.mulf %148, %149 : vector<16x32xf32>
    %151 = vector.broadcast %112 : vector<1x32xf32> to vector<16x32xf32>
    %152 = arith.addf %150, %151 : vector<16x32xf32>
    %c3 = arith.constant 3 : index
    %c0_53 = arith.constant 0 : index
    %c0_54 = arith.constant 0 : index
    %153 = vector.load %arg4[%c3, %c0_53, %c0_54] : memref<24x32x32xf32, #tpu.memory_space<vmem>>, vector<1x32x32xf32>
    %154 = vector.shape_cast %153 : vector<1x32x32xf32> to vector<32x32xf32>
    %155 = arith.truncf %154 : vector<32x32xf32> to vector<32x32xbf16>
    %c3_55 = arith.constant 3 : index
    %c0_56 = arith.constant 0 : index
    %c0_57 = arith.constant 0 : index
    %156 = vector.load %arg5[%c3_55, %c0_56, %c0_57] : memref<24x3x32xf32, #tpu.memory_space<vmem>>, vector<1x3x32xf32>
    %157 = vector.shape_cast %156 : vector<1x3x32xf32> to vector<3x32xf32>
    %158 = vector.extract_strided_slice %157 {offsets = [0, 0], sizes = [1, 32], strides = [1, 1]} : vector<3x32xf32> to vector<1x32xf32>
    %159 = vector.extract_strided_slice %157 {offsets = [1, 0], sizes = [1, 32], strides = [1, 1]} : vector<3x32xf32> to vector<1x32xf32>
    %160 = vector.extract_strided_slice %157 {offsets = [2, 0], sizes = [1, 32], strides = [1, 1]} : vector<3x32xf32> to vector<1x32xf32>
    %161 = arith.truncf %152 : vector<16x32xf32> to vector<16x32xbf16>
    %cst_58 = arith.constant dense<0.000000e+00> : vector<16x32xf32>
    %162 = tpu.matmul %161, %155, %cst_58 {dimension_numbers = #tpu.dot_dimension_numbers<[1], [0], [0], [1], [0, 0, 1, 1], [], []>} : vector<16x32xbf16>, vector<32x32xbf16>, vector<16x32xf32> -> vector<16x32xf32>
    %163 = vector.broadcast %158 : vector<1x32xf32> to vector<16x32xf32>
    %164 = arith.addf %162, %163 : vector<16x32xf32>
    %165 = arith.mulf %164, %164 : vector<16x32xf32>
    %166 = arith.mulf %164, %165 : vector<16x32xf32>
    %cst_59 = arith.constant 4.471500e-02 : f32
    %167 = vector.broadcast %cst_59 : f32 to vector<16x32xf32>
    %168 = arith.mulf %167, %166 : vector<16x32xf32>
    %169 = arith.addf %164, %168 : vector<16x32xf32>
    %cst_60 = arith.constant 0.797884583 : f32
    %170 = vector.broadcast %cst_60 : f32 to vector<16x32xf32>
    %171 = arith.mulf %170, %169 : vector<16x32xf32>
    %172 = math.tanh %171 : vector<16x32xf32>
    %cst_61 = arith.constant 1.000000e+00 : f32
    %173 = vector.broadcast %cst_61 : f32 to vector<16x32xf32>
    %174 = arith.addf %173, %172 : vector<16x32xf32>
    %cst_62 = arith.constant 5.000000e-01 : f32
    %175 = vector.broadcast %cst_62 : f32 to vector<16x32xf32>
    %176 = arith.mulf %175, %174 : vector<16x32xf32>
    %177 = arith.mulf %164, %176 : vector<16x32xf32>
    %178 = arith.addf %152, %177 : vector<16x32xf32>
    %cst_63 = arith.constant dense<0.000000e+00> : vector<16xf32>
    %179 = vector.multi_reduction <add>, %178, %cst_63 [1] : vector<16x32xf32> to vector<16xf32>
    %180 = vector.shape_cast %179 : vector<16xf32> to vector<16x1xf32>
    %cst_64 = arith.constant 3.200000e+01 : f32
    %181 = vector.broadcast %cst_64 : f32 to vector<16x1xf32>
    %182 = arith.divf %180, %181 : vector<16x1xf32>
    %183 = arith.mulf %178, %178 : vector<16x32xf32>
    %cst_65 = arith.constant dense<0.000000e+00> : vector<16xf32>
    %184 = vector.multi_reduction <add>, %183, %cst_65 [1] : vector<16x32xf32> to vector<16xf32>
    %185 = vector.shape_cast %184 : vector<16xf32> to vector<16x1xf32>
    %cst_66 = arith.constant 3.200000e+01 : f32
    %186 = vector.broadcast %cst_66 : f32 to vector<16x1xf32>
    %187 = arith.divf %185, %186 : vector<16x1xf32>
    %188 = arith.mulf %182, %182 : vector<16x1xf32>
    %189 = arith.subf %187, %188 : vector<16x1xf32>
    %190 = vector.broadcast %182 : vector<16x1xf32> to vector<16x32xf32>
    %191 = arith.subf %178, %190 : vector<16x32xf32>
    %cst_67 = arith.constant 9.99999974E-6 : f32
    %192 = vector.broadcast %cst_67 : f32 to vector<16x1xf32>
    %193 = arith.addf %189, %192 : vector<16x1xf32>
    %194 = math.rsqrt %193 : vector<16x1xf32>
    %195 = vector.broadcast %194 : vector<16x1xf32> to vector<16x32xf32>
    %196 = arith.mulf %191, %195 : vector<16x32xf32>
    %197 = vector.broadcast %159 : vector<1x32xf32> to vector<16x32xf32>
    %198 = arith.mulf %196, %197 : vector<16x32xf32>
    %199 = vector.broadcast %160 : vector<1x32xf32> to vector<16x32xf32>
    %200 = arith.addf %198, %199 : vector<16x32xf32>
    %c4 = arith.constant 4 : index
    %c0_68 = arith.constant 0 : index
    %c0_69 = arith.constant 0 : index
    %201 = vector.load %arg4[%c4, %c0_68, %c0_69] : memref<24x32x32xf32, #tpu.memory_space<vmem>>, vector<1x32x32xf32>
    %202 = vector.shape_cast %201 : vector<1x32x32xf32> to vector<32x32xf32>
    %203 = arith.truncf %202 : vector<32x32xf32> to vector<32x32xbf16>
    %c4_70 = arith.constant 4 : index
    %c0_71 = arith.constant 0 : index
    %c0_72 = arith.constant 0 : index
    %204 = vector.load %arg5[%c4_70, %c0_71, %c0_72] : memref<24x3x32xf32, #tpu.memory_space<vmem>>, vector<1x3x32xf32>
    %205 = vector.shape_cast %204 : vector<1x3x32xf32> to vector<3x32xf32>
    %206 = vector.extract_strided_slice %205 {offsets = [0, 0], sizes = [1, 32], strides = [1, 1]} : vector<3x32xf32> to vector<1x32xf32>
    %207 = vector.extract_strided_slice %205 {offsets = [1, 0], sizes = [1, 32], strides = [1, 1]} : vector<3x32xf32> to vector<1x32xf32>
    %208 = vector.extract_strided_slice %205 {offsets = [2, 0], sizes = [1, 32], strides = [1, 1]} : vector<3x32xf32> to vector<1x32xf32>
    %209 = arith.truncf %200 : vector<16x32xf32> to vector<16x32xbf16>
    %cst_73 = arith.constant dense<0.000000e+00> : vector<16x32xf32>
    %210 = tpu.matmul %209, %203, %cst_73 {dimension_numbers = #tpu.dot_dimension_numbers<[1], [0], [0], [1], [0, 0, 1, 1], [], []>} : vector<16x32xbf16>, vector<32x32xbf16>, vector<16x32xf32> -> vector<16x32xf32>
    %211 = vector.broadcast %206 : vector<1x32xf32> to vector<16x32xf32>
    %212 = arith.addf %210, %211 : vector<16x32xf32>
    %213 = arith.mulf %212, %212 : vector<16x32xf32>
    %214 = arith.mulf %212, %213 : vector<16x32xf32>
    %cst_74 = arith.constant 4.471500e-02 : f32
    %215 = vector.broadcast %cst_74 : f32 to vector<16x32xf32>
    %216 = arith.mulf %215, %214 : vector<16x32xf32>
    %217 = arith.addf %212, %216 : vector<16x32xf32>
    %cst_75 = arith.constant 0.797884583 : f32
    %218 = vector.broadcast %cst_75 : f32 to vector<16x32xf32>
    %219 = arith.mulf %218, %217 : vector<16x32xf32>
    %220 = math.tanh %219 : vector<16x32xf32>
    %cst_76 = arith.constant 1.000000e+00 : f32
    %221 = vector.broadcast %cst_76 : f32 to vector<16x32xf32>
    %222 = arith.addf %221, %220 : vector<16x32xf32>
    %cst_77 = arith.constant 5.000000e-01 : f32
    %223 = vector.broadcast %cst_77 : f32 to vector<16x32xf32>
    %224 = arith.mulf %223, %222 : vector<16x32xf32>
    %225 = arith.mulf %212, %224 : vector<16x32xf32>
    %226 = arith.addf %200, %225 : vector<16x32xf32>
    %cst_78 = arith.constant dense<0.000000e+00> : vector<16xf32>
    %227 = vector.multi_reduction <add>, %226, %cst_78 [1] : vector<16x32xf32> to vector<16xf32>
    %228 = vector.shape_cast %227 : vector<16xf32> to vector<16x1xf32>
    %cst_79 = arith.constant 3.200000e+01 : f32
    %229 = vector.broadcast %cst_79 : f32 to vector<16x1xf32>
    %230 = arith.divf %228, %229 : vector<16x1xf32>
    %231 = arith.mulf %226, %226 : vector<16x32xf32>
    %cst_80 = arith.constant dense<0.000000e+00> : vector<16xf32>
    %232 = vector.multi_reduction <add>, %231, %cst_80 [1] : vector<16x32xf32> to vector<16xf32>
    %233 = vector.shape_cast %232 : vector<16xf32> to vector<16x1xf32>
    %cst_81 = arith.constant 3.200000e+01 : f32
    %234 = vector.broadcast %cst_81 : f32 to vector<16x1xf32>
    %235 = arith.divf %233, %234 : vector<16x1xf32>
    %236 = arith.mulf %230, %230 : vector<16x1xf32>
    %237 = arith.subf %235, %236 : vector<16x1xf32>
    %238 = vector.broadcast %230 : vector<16x1xf32> to vector<16x32xf32>
    %239 = arith.subf %226, %238 : vector<16x32xf32>
    %cst_82 = arith.constant 9.99999974E-6 : f32
    %240 = vector.broadcast %cst_82 : f32 to vector<16x1xf32>
    %241 = arith.addf %237, %240 : vector<16x1xf32>
    %242 = math.rsqrt %241 : vector<16x1xf32>
    %243 = vector.broadcast %242 : vector<16x1xf32> to vector<16x32xf32>
    %244 = arith.mulf %239, %243 : vector<16x32xf32>
    %245 = vector.broadcast %207 : vector<1x32xf32> to vector<16x32xf32>
    %246 = arith.mulf %244, %245 : vector<16x32xf32>
    %247 = vector.broadcast %208 : vector<1x32xf32> to vector<16x32xf32>
    %248 = arith.addf %246, %247 : vector<16x32xf32>
    %c5 = arith.constant 5 : index
    %c0_83 = arith.constant 0 : index
    %c0_84 = arith.constant 0 : index
    %249 = vector.load %arg4[%c5, %c0_83, %c0_84] : memref<24x32x32xf32, #tpu.memory_space<vmem>>, vector<1x32x32xf32>
    %250 = vector.shape_cast %249 : vector<1x32x32xf32> to vector<32x32xf32>
    %251 = arith.truncf %250 : vector<32x32xf32> to vector<32x32xbf16>
    %c5_85 = arith.constant 5 : index
    %c0_86 = arith.constant 0 : index
    %c0_87 = arith.constant 0 : index
    %252 = vector.load %arg5[%c5_85, %c0_86, %c0_87] : memref<24x3x32xf32, #tpu.memory_space<vmem>>, vector<1x3x32xf32>
    %253 = vector.shape_cast %252 : vector<1x3x32xf32> to vector<3x32xf32>
    %254 = vector.extract_strided_slice %253 {offsets = [0, 0], sizes = [1, 32], strides = [1, 1]} : vector<3x32xf32> to vector<1x32xf32>
    %255 = vector.extract_strided_slice %253 {offsets = [1, 0], sizes = [1, 32], strides = [1, 1]} : vector<3x32xf32> to vector<1x32xf32>
    %256 = vector.extract_strided_slice %253 {offsets = [2, 0], sizes = [1, 32], strides = [1, 1]} : vector<3x32xf32> to vector<1x32xf32>
    %257 = arith.truncf %248 : vector<16x32xf32> to vector<16x32xbf16>
    %cst_88 = arith.constant dense<0.000000e+00> : vector<16x32xf32>
    %258 = tpu.matmul %257, %251, %cst_88 {dimension_numbers = #tpu.dot_dimension_numbers<[1], [0], [0], [1], [0, 0, 1, 1], [], []>} : vector<16x32xbf16>, vector<32x32xbf16>, vector<16x32xf32> -> vector<16x32xf32>
    %259 = vector.broadcast %254 : vector<1x32xf32> to vector<16x32xf32>
    %260 = arith.addf %258, %259 : vector<16x32xf32>
    %261 = arith.mulf %260, %260 : vector<16x32xf32>
    %262 = arith.mulf %260, %261 : vector<16x32xf32>
    %cst_89 = arith.constant 4.471500e-02 : f32
    %263 = vector.broadcast %cst_89 : f32 to vector<16x32xf32>
    %264 = arith.mulf %263, %262 : vector<16x32xf32>
    %265 = arith.addf %260, %264 : vector<16x32xf32>
    %cst_90 = arith.constant 0.797884583 : f32
    %266 = vector.broadcast %cst_90 : f32 to vector<16x32xf32>
    %267 = arith.mulf %266, %265 : vector<16x32xf32>
    %268 = math.tanh %267 : vector<16x32xf32>
    %cst_91 = arith.constant 1.000000e+00 : f32
    %269 = vector.broadcast %cst_91 : f32 to vector<16x32xf32>
    %270 = arith.addf %269, %268 : vector<16x32xf32>
    %cst_92 = arith.constant 5.000000e-01 : f32
    %271 = vector.broadcast %cst_92 : f32 to vector<16x32xf32>
    %272 = arith.mulf %271, %270 : vector<16x32xf32>
    %273 = arith.mulf %260, %272 : vector<16x32xf32>
    %274 = arith.addf %248, %273 : vector<16x32xf32>
    %cst_93 = arith.constant dense<0.000000e+00> : vector<16xf32>
    %275 = vector.multi_reduction <add>, %274, %cst_93 [1] : vector<16x32xf32> to vector<16xf32>
    %276 = vector.shape_cast %275 : vector<16xf32> to vector<16x1xf32>
    %cst_94 = arith.constant 3.200000e+01 : f32
    %277 = vector.broadcast %cst_94 : f32 to vector<16x1xf32>
    %278 = arith.divf %276, %277 : vector<16x1xf32>
    %279 = arith.mulf %274, %274 : vector<16x32xf32>
    %cst_95 = arith.constant dense<0.000000e+00> : vector<16xf32>
    %280 = vector.multi_reduction <add>, %279, %cst_95 [1] : vector<16x32xf32> to vector<16xf32>
    %281 = vector.shape_cast %280 : vector<16xf32> to vector<16x1xf32>
    %cst_96 = arith.constant 3.200000e+01 : f32
    %282 = vector.broadcast %cst_96 : f32 to vector<16x1xf32>
    %283 = arith.divf %281, %282 : vector<16x1xf32>
    %284 = arith.mulf %278, %278 : vector<16x1xf32>
    %285 = arith.subf %283, %284 : vector<16x1xf32>
    %286 = vector.broadcast %278 : vector<16x1xf32> to vector<16x32xf32>
    %287 = arith.subf %274, %286 : vector<16x32xf32>
    %cst_97 = arith.constant 9.99999974E-6 : f32
    %288 = vector.broadcast %cst_97 : f32 to vector<16x1xf32>
    %289 = arith.addf %285, %288 : vector<16x1xf32>
    %290 = math.rsqrt %289 : vector<16x1xf32>
    %291 = vector.broadcast %290 : vector<16x1xf32> to vector<16x32xf32>
    %292 = arith.mulf %287, %291 : vector<16x32xf32>
    %293 = vector.broadcast %255 : vector<1x32xf32> to vector<16x32xf32>
    %294 = arith.mulf %292, %293 : vector<16x32xf32>
    %295 = vector.broadcast %256 : vector<1x32xf32> to vector<16x32xf32>
    %296 = arith.addf %294, %295 : vector<16x32xf32>
    %c6 = arith.constant 6 : index
    %c0_98 = arith.constant 0 : index
    %c0_99 = arith.constant 0 : index
    %297 = vector.load %arg4[%c6, %c0_98, %c0_99] : memref<24x32x32xf32, #tpu.memory_space<vmem>>, vector<1x32x32xf32>
    %298 = vector.shape_cast %297 : vector<1x32x32xf32> to vector<32x32xf32>
    %299 = arith.truncf %298 : vector<32x32xf32> to vector<32x32xbf16>
    %c6_100 = arith.constant 6 : index
    %c0_101 = arith.constant 0 : index
    %c0_102 = arith.constant 0 : index
    %300 = vector.load %arg5[%c6_100, %c0_101, %c0_102] : memref<24x3x32xf32, #tpu.memory_space<vmem>>, vector<1x3x32xf32>
    %301 = vector.shape_cast %300 : vector<1x3x32xf32> to vector<3x32xf32>
    %302 = vector.extract_strided_slice %301 {offsets = [0, 0], sizes = [1, 32], strides = [1, 1]} : vector<3x32xf32> to vector<1x32xf32>
    %303 = vector.extract_strided_slice %301 {offsets = [1, 0], sizes = [1, 32], strides = [1, 1]} : vector<3x32xf32> to vector<1x32xf32>
    %304 = vector.extract_strided_slice %301 {offsets = [2, 0], sizes = [1, 32], strides = [1, 1]} : vector<3x32xf32> to vector<1x32xf32>
    %305 = arith.truncf %296 : vector<16x32xf32> to vector<16x32xbf16>
    %cst_103 = arith.constant dense<0.000000e+00> : vector<16x32xf32>
    %306 = tpu.matmul %305, %299, %cst_103 {dimension_numbers = #tpu.dot_dimension_numbers<[1], [0], [0], [1], [0, 0, 1, 1], [], []>} : vector<16x32xbf16>, vector<32x32xbf16>, vector<16x32xf32> -> vector<16x32xf32>
    %307 = vector.broadcast %302 : vector<1x32xf32> to vector<16x32xf32>
    %308 = arith.addf %306, %307 : vector<16x32xf32>
    %309 = arith.mulf %308, %308 : vector<16x32xf32>
    %310 = arith.mulf %308, %309 : vector<16x32xf32>
    %cst_104 = arith.constant 4.471500e-02 : f32
    %311 = vector.broadcast %cst_104 : f32 to vector<16x32xf32>
    %312 = arith.mulf %311, %310 : vector<16x32xf32>
    %313 = arith.addf %308, %312 : vector<16x32xf32>
    %cst_105 = arith.constant 0.797884583 : f32
    %314 = vector.broadcast %cst_105 : f32 to vector<16x32xf32>
    %315 = arith.mulf %314, %313 : vector<16x32xf32>
    %316 = math.tanh %315 : vector<16x32xf32>
    %cst_106 = arith.constant 1.000000e+00 : f32
    %317 = vector.broadcast %cst_106 : f32 to vector<16x32xf32>
    %318 = arith.addf %317, %316 : vector<16x32xf32>
    %cst_107 = arith.constant 5.000000e-01 : f32
    %319 = vector.broadcast %cst_107 : f32 to vector<16x32xf32>
    %320 = arith.mulf %319, %318 : vector<16x32xf32>
    %321 = arith.mulf %308, %320 : vector<16x32xf32>
    %322 = arith.addf %296, %321 : vector<16x32xf32>
    %cst_108 = arith.constant dense<0.000000e+00> : vector<16xf32>
    %323 = vector.multi_reduction <add>, %322, %cst_108 [1] : vector<16x32xf32> to vector<16xf32>
    %324 = vector.shape_cast %323 : vector<16xf32> to vector<16x1xf32>
    %cst_109 = arith.constant 3.200000e+01 : f32
    %325 = vector.broadcast %cst_109 : f32 to vector<16x1xf32>
    %326 = arith.divf %324, %325 : vector<16x1xf32>
    %327 = arith.mulf %322, %322 : vector<16x32xf32>
    %cst_110 = arith.constant dense<0.000000e+00> : vector<16xf32>
    %328 = vector.multi_reduction <add>, %327, %cst_110 [1] : vector<16x32xf32> to vector<16xf32>
    %329 = vector.shape_cast %328 : vector<16xf32> to vector<16x1xf32>
    %cst_111 = arith.constant 3.200000e+01 : f32
    %330 = vector.broadcast %cst_111 : f32 to vector<16x1xf32>
    %331 = arith.divf %329, %330 : vector<16x1xf32>
    %332 = arith.mulf %326, %326 : vector<16x1xf32>
    %333 = arith.subf %331, %332 : vector<16x1xf32>
    %334 = vector.broadcast %326 : vector<16x1xf32> to vector<16x32xf32>
    %335 = arith.subf %322, %334 : vector<16x32xf32>
    %cst_112 = arith.constant 9.99999974E-6 : f32
    %336 = vector.broadcast %cst_112 : f32 to vector<16x1xf32>
    %337 = arith.addf %333, %336 : vector<16x1xf32>
    %338 = math.rsqrt %337 : vector<16x1xf32>
    %339 = vector.broadcast %338 : vector<16x1xf32> to vector<16x32xf32>
    %340 = arith.mulf %335, %339 : vector<16x32xf32>
    %341 = vector.broadcast %303 : vector<1x32xf32> to vector<16x32xf32>
    %342 = arith.mulf %340, %341 : vector<16x32xf32>
    %343 = vector.broadcast %304 : vector<1x32xf32> to vector<16x32xf32>
    %344 = arith.addf %342, %343 : vector<16x32xf32>
    %c7 = arith.constant 7 : index
    %c0_113 = arith.constant 0 : index
    %c0_114 = arith.constant 0 : index
    %345 = vector.load %arg4[%c7, %c0_113, %c0_114] : memref<24x32x32xf32, #tpu.memory_space<vmem>>, vector<1x32x32xf32>
    %346 = vector.shape_cast %345 : vector<1x32x32xf32> to vector<32x32xf32>
    %347 = arith.truncf %346 : vector<32x32xf32> to vector<32x32xbf16>
    %c7_115 = arith.constant 7 : index
    %c0_116 = arith.constant 0 : index
    %c0_117 = arith.constant 0 : index
    %348 = vector.load %arg5[%c7_115, %c0_116, %c0_117] : memref<24x3x32xf32, #tpu.memory_space<vmem>>, vector<1x3x32xf32>
    %349 = vector.shape_cast %348 : vector<1x3x32xf32> to vector<3x32xf32>
    %350 = vector.extract_strided_slice %349 {offsets = [0, 0], sizes = [1, 32], strides = [1, 1]} : vector<3x32xf32> to vector<1x32xf32>
    %351 = vector.extract_strided_slice %349 {offsets = [1, 0], sizes = [1, 32], strides = [1, 1]} : vector<3x32xf32> to vector<1x32xf32>
    %352 = vector.extract_strided_slice %349 {offsets = [2, 0], sizes = [1, 32], strides = [1, 1]} : vector<3x32xf32> to vector<1x32xf32>
    %353 = arith.truncf %344 : vector<16x32xf32> to vector<16x32xbf16>
    %cst_118 = arith.constant dense<0.000000e+00> : vector<16x32xf32>
    %354 = tpu.matmul %353, %347, %cst_118 {dimension_numbers = #tpu.dot_dimension_numbers<[1], [0], [0], [1], [0, 0, 1, 1], [], []>} : vector<16x32xbf16>, vector<32x32xbf16>, vector<16x32xf32> -> vector<16x32xf32>
    %355 = vector.broadcast %350 : vector<1x32xf32> to vector<16x32xf32>
    %356 = arith.addf %354, %355 : vector<16x32xf32>
    %357 = arith.mulf %356, %356 : vector<16x32xf32>
    %358 = arith.mulf %356, %357 : vector<16x32xf32>
    %cst_119 = arith.constant 4.471500e-02 : f32
    %359 = vector.broadcast %cst_119 : f32 to vector<16x32xf32>
    %360 = arith.mulf %359, %358 : vector<16x32xf32>
    %361 = arith.addf %356, %360 : vector<16x32xf32>
    %cst_120 = arith.constant 0.797884583 : f32
    %362 = vector.broadcast %cst_120 : f32 to vector<16x32xf32>
    %363 = arith.mulf %362, %361 : vector<16x32xf32>
    %364 = math.tanh %363 : vector<16x32xf32>
    %cst_121 = arith.constant 1.000000e+00 : f32
    %365 = vector.broadcast %cst_121 : f32 to vector<16x32xf32>
    %366 = arith.addf %365, %364 : vector<16x32xf32>
    %cst_122 = arith.constant 5.000000e-01 : f32
    %367 = vector.broadcast %cst_122 : f32 to vector<16x32xf32>
    %368 = arith.mulf %367, %366 : vector<16x32xf32>
    %369 = arith.mulf %356, %368 : vector<16x32xf32>
    %370 = arith.addf %344, %369 : vector<16x32xf32>
    %cst_123 = arith.constant dense<0.000000e+00> : vector<16xf32>
    %371 = vector.multi_reduction <add>, %370, %cst_123 [1] : vector<16x32xf32> to vector<16xf32>
    %372 = vector.shape_cast %371 : vector<16xf32> to vector<16x1xf32>
    %cst_124 = arith.constant 3.200000e+01 : f32
    %373 = vector.broadcast %cst_124 : f32 to vector<16x1xf32>
    %374 = arith.divf %372, %373 : vector<16x1xf32>
    %375 = arith.mulf %370, %370 : vector<16x32xf32>
    %cst_125 = arith.constant dense<0.000000e+00> : vector<16xf32>
    %376 = vector.multi_reduction <add>, %375, %cst_125 [1] : vector<16x32xf32> to vector<16xf32>
    %377 = vector.shape_cast %376 : vector<16xf32> to vector<16x1xf32>
    %cst_126 = arith.constant 3.200000e+01 : f32
    %378 = vector.broadcast %cst_126 : f32 to vector<16x1xf32>
    %379 = arith.divf %377, %378 : vector<16x1xf32>
    %380 = arith.mulf %374, %374 : vector<16x1xf32>
    %381 = arith.subf %379, %380 : vector<16x1xf32>
    %382 = vector.broadcast %374 : vector<16x1xf32> to vector<16x32xf32>
    %383 = arith.subf %370, %382 : vector<16x32xf32>
    %cst_127 = arith.constant 9.99999974E-6 : f32
    %384 = vector.broadcast %cst_127 : f32 to vector<16x1xf32>
    %385 = arith.addf %381, %384 : vector<16x1xf32>
    %386 = math.rsqrt %385 : vector<16x1xf32>
    %387 = vector.broadcast %386 : vector<16x1xf32> to vector<16x32xf32>
    %388 = arith.mulf %383, %387 : vector<16x32xf32>
    %389 = vector.broadcast %351 : vector<1x32xf32> to vector<16x32xf32>
    %390 = arith.mulf %388, %389 : vector<16x32xf32>
    %391 = vector.broadcast %352 : vector<1x32xf32> to vector<16x32xf32>
    %392 = arith.addf %390, %391 : vector<16x32xf32>
    %c8 = arith.constant 8 : index
    %c0_128 = arith.constant 0 : index
    %c0_129 = arith.constant 0 : index
    %393 = vector.load %arg4[%c8, %c0_128, %c0_129] : memref<24x32x32xf32, #tpu.memory_space<vmem>>, vector<1x32x32xf32>
    %394 = vector.shape_cast %393 : vector<1x32x32xf32> to vector<32x32xf32>
    %395 = arith.truncf %394 : vector<32x32xf32> to vector<32x32xbf16>
    %c8_130 = arith.constant 8 : index
    %c0_131 = arith.constant 0 : index
    %c0_132 = arith.constant 0 : index
    %396 = vector.load %arg5[%c8_130, %c0_131, %c0_132] : memref<24x3x32xf32, #tpu.memory_space<vmem>>, vector<1x3x32xf32>
    %397 = vector.shape_cast %396 : vector<1x3x32xf32> to vector<3x32xf32>
    %398 = vector.extract_strided_slice %397 {offsets = [0, 0], sizes = [1, 32], strides = [1, 1]} : vector<3x32xf32> to vector<1x32xf32>
    %399 = vector.extract_strided_slice %397 {offsets = [1, 0], sizes = [1, 32], strides = [1, 1]} : vector<3x32xf32> to vector<1x32xf32>
    %400 = vector.extract_strided_slice %397 {offsets = [2, 0], sizes = [1, 32], strides = [1, 1]} : vector<3x32xf32> to vector<1x32xf32>
    %401 = arith.truncf %392 : vector<16x32xf32> to vector<16x32xbf16>
    %cst_133 = arith.constant dense<0.000000e+00> : vector<16x32xf32>
    %402 = tpu.matmul %401, %395, %cst_133 {dimension_numbers = #tpu.dot_dimension_numbers<[1], [0], [0], [1], [0, 0, 1, 1], [], []>} : vector<16x32xbf16>, vector<32x32xbf16>, vector<16x32xf32> -> vector<16x32xf32>
    %403 = vector.broadcast %398 : vector<1x32xf32> to vector<16x32xf32>
    %404 = arith.addf %402, %403 : vector<16x32xf32>
    %405 = arith.mulf %404, %404 : vector<16x32xf32>
    %406 = arith.mulf %404, %405 : vector<16x32xf32>
    %cst_134 = arith.constant 4.471500e-02 : f32
    %407 = vector.broadcast %cst_134 : f32 to vector<16x32xf32>
    %408 = arith.mulf %407, %406 : vector<16x32xf32>
    %409 = arith.addf %404, %408 : vector<16x32xf32>
    %cst_135 = arith.constant 0.797884583 : f32
    %410 = vector.broadcast %cst_135 : f32 to vector<16x32xf32>
    %411 = arith.mulf %410, %409 : vector<16x32xf32>
    %412 = math.tanh %411 : vector<16x32xf32>
    %cst_136 = arith.constant 1.000000e+00 : f32
    %413 = vector.broadcast %cst_136 : f32 to vector<16x32xf32>
    %414 = arith.addf %413, %412 : vector<16x32xf32>
    %cst_137 = arith.constant 5.000000e-01 : f32
    %415 = vector.broadcast %cst_137 : f32 to vector<16x32xf32>
    %416 = arith.mulf %415, %414 : vector<16x32xf32>
    %417 = arith.mulf %404, %416 : vector<16x32xf32>
    %418 = arith.addf %392, %417 : vector<16x32xf32>
    %cst_138 = arith.constant dense<0.000000e+00> : vector<16xf32>
    %419 = vector.multi_reduction <add>, %418, %cst_138 [1] : vector<16x32xf32> to vector<16xf32>
    %420 = vector.shape_cast %419 : vector<16xf32> to vector<16x1xf32>
    %cst_139 = arith.constant 3.200000e+01 : f32
    %421 = vector.broadcast %cst_139 : f32 to vector<16x1xf32>
    %422 = arith.divf %420, %421 : vector<16x1xf32>
    %423 = arith.mulf %418, %418 : vector<16x32xf32>
    %cst_140 = arith.constant dense<0.000000e+00> : vector<16xf32>
    %424 = vector.multi_reduction <add>, %423, %cst_140 [1] : vector<16x32xf32> to vector<16xf32>
    %425 = vector.shape_cast %424 : vector<16xf32> to vector<16x1xf32>
    %cst_141 = arith.constant 3.200000e+01 : f32
    %426 = vector.broadcast %cst_141 : f32 to vector<16x1xf32>
    %427 = arith.divf %425, %426 : vector<16x1xf32>
    %428 = arith.mulf %422, %422 : vector<16x1xf32>
    %429 = arith.subf %427, %428 : vector<16x1xf32>
    %430 = vector.broadcast %422 : vector<16x1xf32> to vector<16x32xf32>
    %431 = arith.subf %418, %430 : vector<16x32xf32>
    %cst_142 = arith.constant 9.99999974E-6 : f32
    %432 = vector.broadcast %cst_142 : f32 to vector<16x1xf32>
    %433 = arith.addf %429, %432 : vector<16x1xf32>
    %434 = math.rsqrt %433 : vector<16x1xf32>
    %435 = vector.broadcast %434 : vector<16x1xf32> to vector<16x32xf32>
    %436 = arith.mulf %431, %435 : vector<16x32xf32>
    %437 = vector.broadcast %399 : vector<1x32xf32> to vector<16x32xf32>
    %438 = arith.mulf %436, %437 : vector<16x32xf32>
    %439 = vector.broadcast %400 : vector<1x32xf32> to vector<16x32xf32>
    %440 = arith.addf %438, %439 : vector<16x32xf32>
    %c9 = arith.constant 9 : index
    %c0_143 = arith.constant 0 : index
    %c0_144 = arith.constant 0 : index
    %441 = vector.load %arg4[%c9, %c0_143, %c0_144] : memref<24x32x32xf32, #tpu.memory_space<vmem>>, vector<1x32x32xf32>
    %442 = vector.shape_cast %441 : vector<1x32x32xf32> to vector<32x32xf32>
    %443 = arith.truncf %442 : vector<32x32xf32> to vector<32x32xbf16>
    %c9_145 = arith.constant 9 : index
    %c0_146 = arith.constant 0 : index
    %c0_147 = arith.constant 0 : index
    %444 = vector.load %arg5[%c9_145, %c0_146, %c0_147] : memref<24x3x32xf32, #tpu.memory_space<vmem>>, vector<1x3x32xf32>
    %445 = vector.shape_cast %444 : vector<1x3x32xf32> to vector<3x32xf32>
    %446 = vector.extract_strided_slice %445 {offsets = [0, 0], sizes = [1, 32], strides = [1, 1]} : vector<3x32xf32> to vector<1x32xf32>
    %447 = vector.extract_strided_slice %445 {offsets = [1, 0], sizes = [1, 32], strides = [1, 1]} : vector<3x32xf32> to vector<1x32xf32>
    %448 = vector.extract_strided_slice %445 {offsets = [2, 0], sizes = [1, 32], strides = [1, 1]} : vector<3x32xf32> to vector<1x32xf32>
    %449 = arith.truncf %440 : vector<16x32xf32> to vector<16x32xbf16>
    %cst_148 = arith.constant dense<0.000000e+00> : vector<16x32xf32>
    %450 = tpu.matmul %449, %443, %cst_148 {dimension_numbers = #tpu.dot_dimension_numbers<[1], [0], [0], [1], [0, 0, 1, 1], [], []>} : vector<16x32xbf16>, vector<32x32xbf16>, vector<16x32xf32> -> vector<16x32xf32>
    %451 = vector.broadcast %446 : vector<1x32xf32> to vector<16x32xf32>
    %452 = arith.addf %450, %451 : vector<16x32xf32>
    %453 = arith.mulf %452, %452 : vector<16x32xf32>
    %454 = arith.mulf %452, %453 : vector<16x32xf32>
    %cst_149 = arith.constant 4.471500e-02 : f32
    %455 = vector.broadcast %cst_149 : f32 to vector<16x32xf32>
    %456 = arith.mulf %455, %454 : vector<16x32xf32>
    %457 = arith.addf %452, %456 : vector<16x32xf32>
    %cst_150 = arith.constant 0.797884583 : f32
    %458 = vector.broadcast %cst_150 : f32 to vector<16x32xf32>
    %459 = arith.mulf %458, %457 : vector<16x32xf32>
    %460 = math.tanh %459 : vector<16x32xf32>
    %cst_151 = arith.constant 1.000000e+00 : f32
    %461 = vector.broadcast %cst_151 : f32 to vector<16x32xf32>
    %462 = arith.addf %461, %460 : vector<16x32xf32>
    %cst_152 = arith.constant 5.000000e-01 : f32
    %463 = vector.broadcast %cst_152 : f32 to vector<16x32xf32>
    %464 = arith.mulf %463, %462 : vector<16x32xf32>
    %465 = arith.mulf %452, %464 : vector<16x32xf32>
    %466 = arith.addf %440, %465 : vector<16x32xf32>
    %cst_153 = arith.constant dense<0.000000e+00> : vector<16xf32>
    %467 = vector.multi_reduction <add>, %466, %cst_153 [1] : vector<16x32xf32> to vector<16xf32>
    %468 = vector.shape_cast %467 : vector<16xf32> to vector<16x1xf32>
    %cst_154 = arith.constant 3.200000e+01 : f32
    %469 = vector.broadcast %cst_154 : f32 to vector<16x1xf32>
    %470 = arith.divf %468, %469 : vector<16x1xf32>
    %471 = arith.mulf %466, %466 : vector<16x32xf32>
    %cst_155 = arith.constant dense<0.000000e+00> : vector<16xf32>
    %472 = vector.multi_reduction <add>, %471, %cst_155 [1] : vector<16x32xf32> to vector<16xf32>
    %473 = vector.shape_cast %472 : vector<16xf32> to vector<16x1xf32>
    %cst_156 = arith.constant 3.200000e+01 : f32
    %474 = vector.broadcast %cst_156 : f32 to vector<16x1xf32>
    %475 = arith.divf %473, %474 : vector<16x1xf32>
    %476 = arith.mulf %470, %470 : vector<16x1xf32>
    %477 = arith.subf %475, %476 : vector<16x1xf32>
    %478 = vector.broadcast %470 : vector<16x1xf32> to vector<16x32xf32>
    %479 = arith.subf %466, %478 : vector<16x32xf32>
    %cst_157 = arith.constant 9.99999974E-6 : f32
    %480 = vector.broadcast %cst_157 : f32 to vector<16x1xf32>
    %481 = arith.addf %477, %480 : vector<16x1xf32>
    %482 = math.rsqrt %481 : vector<16x1xf32>
    %483 = vector.broadcast %482 : vector<16x1xf32> to vector<16x32xf32>
    %484 = arith.mulf %479, %483 : vector<16x32xf32>
    %485 = vector.broadcast %447 : vector<1x32xf32> to vector<16x32xf32>
    %486 = arith.mulf %484, %485 : vector<16x32xf32>
    %487 = vector.broadcast %448 : vector<1x32xf32> to vector<16x32xf32>
    %488 = arith.addf %486, %487 : vector<16x32xf32>
    %c10 = arith.constant 10 : index
    %c0_158 = arith.constant 0 : index
    %c0_159 = arith.constant 0 : index
    %489 = vector.load %arg4[%c10, %c0_158, %c0_159] : memref<24x32x32xf32, #tpu.memory_space<vmem>>, vector<1x32x32xf32>
    %490 = vector.shape_cast %489 : vector<1x32x32xf32> to vector<32x32xf32>
    %491 = arith.truncf %490 : vector<32x32xf32> to vector<32x32xbf16>
    %c10_160 = arith.constant 10 : index
    %c0_161 = arith.constant 0 : index
    %c0_162 = arith.constant 0 : index
    %492 = vector.load %arg5[%c10_160, %c0_161, %c0_162] : memref<24x3x32xf32, #tpu.memory_space<vmem>>, vector<1x3x32xf32>
    %493 = vector.shape_cast %492 : vector<1x3x32xf32> to vector<3x32xf32>
    %494 = vector.extract_strided_slice %493 {offsets = [0, 0], sizes = [1, 32], strides = [1, 1]} : vector<3x32xf32> to vector<1x32xf32>
    %495 = vector.extract_strided_slice %493 {offsets = [1, 0], sizes = [1, 32], strides = [1, 1]} : vector<3x32xf32> to vector<1x32xf32>
    %496 = vector.extract_strided_slice %493 {offsets = [2, 0], sizes = [1, 32], strides = [1, 1]} : vector<3x32xf32> to vector<1x32xf32>
    %497 = arith.truncf %488 : vector<16x32xf32> to vector<16x32xbf16>
    %cst_163 = arith.constant dense<0.000000e+00> : vector<16x32xf32>
    %498 = tpu.matmul %497, %491, %cst_163 {dimension_numbers = #tpu.dot_dimension_numbers<[1], [0], [0], [1], [0, 0, 1, 1], [], []>} : vector<16x32xbf16>, vector<32x32xbf16>, vector<16x32xf32> -> vector<16x32xf32>
    %499 = vector.broadcast %494 : vector<1x32xf32> to vector<16x32xf32>
    %500 = arith.addf %498, %499 : vector<16x32xf32>
    %501 = arith.mulf %500, %500 : vector<16x32xf32>
    %502 = arith.mulf %500, %501 : vector<16x32xf32>
    %cst_164 = arith.constant 4.471500e-02 : f32
    %503 = vector.broadcast %cst_164 : f32 to vector<16x32xf32>
    %504 = arith.mulf %503, %502 : vector<16x32xf32>
    %505 = arith.addf %500, %504 : vector<16x32xf32>
    %cst_165 = arith.constant 0.797884583 : f32
    %506 = vector.broadcast %cst_165 : f32 to vector<16x32xf32>
    %507 = arith.mulf %506, %505 : vector<16x32xf32>
    %508 = math.tanh %507 : vector<16x32xf32>
    %cst_166 = arith.constant 1.000000e+00 : f32
    %509 = vector.broadcast %cst_166 : f32 to vector<16x32xf32>
    %510 = arith.addf %509, %508 : vector<16x32xf32>
    %cst_167 = arith.constant 5.000000e-01 : f32
    %511 = vector.broadcast %cst_167 : f32 to vector<16x32xf32>
    %512 = arith.mulf %511, %510 : vector<16x32xf32>
    %513 = arith.mulf %500, %512 : vector<16x32xf32>
    %514 = arith.addf %488, %513 : vector<16x32xf32>
    %cst_168 = arith.constant dense<0.000000e+00> : vector<16xf32>
    %515 = vector.multi_reduction <add>, %514, %cst_168 [1] : vector<16x32xf32> to vector<16xf32>
    %516 = vector.shape_cast %515 : vector<16xf32> to vector<16x1xf32>
    %cst_169 = arith.constant 3.200000e+01 : f32
    %517 = vector.broadcast %cst_169 : f32 to vector<16x1xf32>
    %518 = arith.divf %516, %517 : vector<16x1xf32>
    %519 = arith.mulf %514, %514 : vector<16x32xf32>
    %cst_170 = arith.constant dense<0.000000e+00> : vector<16xf32>
    %520 = vector.multi_reduction <add>, %519, %cst_170 [1] : vector<16x32xf32> to vector<16xf32>
    %521 = vector.shape_cast %520 : vector<16xf32> to vector<16x1xf32>
    %cst_171 = arith.constant 3.200000e+01 : f32
    %522 = vector.broadcast %cst_171 : f32 to vector<16x1xf32>
    %523 = arith.divf %521, %522 : vector<16x1xf32>
    %524 = arith.mulf %518, %518 : vector<16x1xf32>
    %525 = arith.subf %523, %524 : vector<16x1xf32>
    %526 = vector.broadcast %518 : vector<16x1xf32> to vector<16x32xf32>
    %527 = arith.subf %514, %526 : vector<16x32xf32>
    %cst_172 = arith.constant 9.99999974E-6 : f32
    %528 = vector.broadcast %cst_172 : f32 to vector<16x1xf32>
    %529 = arith.addf %525, %528 : vector<16x1xf32>
    %530 = math.rsqrt %529 : vector<16x1xf32>
    %531 = vector.broadcast %530 : vector<16x1xf32> to vector<16x32xf32>
    %532 = arith.mulf %527, %531 : vector<16x32xf32>
    %533 = vector.broadcast %495 : vector<1x32xf32> to vector<16x32xf32>
    %534 = arith.mulf %532, %533 : vector<16x32xf32>
    %535 = vector.broadcast %496 : vector<1x32xf32> to vector<16x32xf32>
    %536 = arith.addf %534, %535 : vector<16x32xf32>
    %c11 = arith.constant 11 : index
    %c0_173 = arith.constant 0 : index
    %c0_174 = arith.constant 0 : index
    %537 = vector.load %arg4[%c11, %c0_173, %c0_174] : memref<24x32x32xf32, #tpu.memory_space<vmem>>, vector<1x32x32xf32>
    %538 = vector.shape_cast %537 : vector<1x32x32xf32> to vector<32x32xf32>
    %539 = arith.truncf %538 : vector<32x32xf32> to vector<32x32xbf16>
    %c11_175 = arith.constant 11 : index
    %c0_176 = arith.constant 0 : index
    %c0_177 = arith.constant 0 : index
    %540 = vector.load %arg5[%c11_175, %c0_176, %c0_177] : memref<24x3x32xf32, #tpu.memory_space<vmem>>, vector<1x3x32xf32>
    %541 = vector.shape_cast %540 : vector<1x3x32xf32> to vector<3x32xf32>
    %542 = vector.extract_strided_slice %541 {offsets = [0, 0], sizes = [1, 32], strides = [1, 1]} : vector<3x32xf32> to vector<1x32xf32>
    %543 = vector.extract_strided_slice %541 {offsets = [1, 0], sizes = [1, 32], strides = [1, 1]} : vector<3x32xf32> to vector<1x32xf32>
    %544 = vector.extract_strided_slice %541 {offsets = [2, 0], sizes = [1, 32], strides = [1, 1]} : vector<3x32xf32> to vector<1x32xf32>
    %545 = arith.truncf %536 : vector<16x32xf32> to vector<16x32xbf16>
    %cst_178 = arith.constant dense<0.000000e+00> : vector<16x32xf32>
    %546 = tpu.matmul %545, %539, %cst_178 {dimension_numbers = #tpu.dot_dimension_numbers<[1], [0], [0], [1], [0, 0, 1, 1], [], []>} : vector<16x32xbf16>, vector<32x32xbf16>, vector<16x32xf32> -> vector<16x32xf32>
    %547 = vector.broadcast %542 : vector<1x32xf32> to vector<16x32xf32>
    %548 = arith.addf %546, %547 : vector<16x32xf32>
    %549 = arith.mulf %548, %548 : vector<16x32xf32>
    %550 = arith.mulf %548, %549 : vector<16x32xf32>
    %cst_179 = arith.constant 4.471500e-02 : f32
    %551 = vector.broadcast %cst_179 : f32 to vector<16x32xf32>
    %552 = arith.mulf %551, %550 : vector<16x32xf32>
    %553 = arith.addf %548, %552 : vector<16x32xf32>
    %cst_180 = arith.constant 0.797884583 : f32
    %554 = vector.broadcast %cst_180 : f32 to vector<16x32xf32>
    %555 = arith.mulf %554, %553 : vector<16x32xf32>
    %556 = math.tanh %555 : vector<16x32xf32>
    %cst_181 = arith.constant 1.000000e+00 : f32
    %557 = vector.broadcast %cst_181 : f32 to vector<16x32xf32>
    %558 = arith.addf %557, %556 : vector<16x32xf32>
    %cst_182 = arith.constant 5.000000e-01 : f32
    %559 = vector.broadcast %cst_182 : f32 to vector<16x32xf32>
    %560 = arith.mulf %559, %558 : vector<16x32xf32>
    %561 = arith.mulf %548, %560 : vector<16x32xf32>
    %562 = arith.addf %536, %561 : vector<16x32xf32>
    %cst_183 = arith.constant dense<0.000000e+00> : vector<16xf32>
    %563 = vector.multi_reduction <add>, %562, %cst_183 [1] : vector<16x32xf32> to vector<16xf32>
    %564 = vector.shape_cast %563 : vector<16xf32> to vector<16x1xf32>
    %cst_184 = arith.constant 3.200000e+01 : f32
    %565 = vector.broadcast %cst_184 : f32 to vector<16x1xf32>
    %566 = arith.divf %564, %565 : vector<16x1xf32>
    %567 = arith.mulf %562, %562 : vector<16x32xf32>
    %cst_185 = arith.constant dense<0.000000e+00> : vector<16xf32>
    %568 = vector.multi_reduction <add>, %567, %cst_185 [1] : vector<16x32xf32> to vector<16xf32>
    %569 = vector.shape_cast %568 : vector<16xf32> to vector<16x1xf32>
    %cst_186 = arith.constant 3.200000e+01 : f32
    %570 = vector.broadcast %cst_186 : f32 to vector<16x1xf32>
    %571 = arith.divf %569, %570 : vector<16x1xf32>
    %572 = arith.mulf %566, %566 : vector<16x1xf32>
    %573 = arith.subf %571, %572 : vector<16x1xf32>
    %574 = vector.broadcast %566 : vector<16x1xf32> to vector<16x32xf32>
    %575 = arith.subf %562, %574 : vector<16x32xf32>
    %cst_187 = arith.constant 9.99999974E-6 : f32
    %576 = vector.broadcast %cst_187 : f32 to vector<16x1xf32>
    %577 = arith.addf %573, %576 : vector<16x1xf32>
    %578 = math.rsqrt %577 : vector<16x1xf32>
    %579 = vector.broadcast %578 : vector<16x1xf32> to vector<16x32xf32>
    %580 = arith.mulf %575, %579 : vector<16x32xf32>
    %581 = vector.broadcast %543 : vector<1x32xf32> to vector<16x32xf32>
    %582 = arith.mulf %580, %581 : vector<16x32xf32>
    %583 = vector.broadcast %544 : vector<1x32xf32> to vector<16x32xf32>
    %584 = arith.addf %582, %583 : vector<16x32xf32>
    %c12 = arith.constant 12 : index
    %c0_188 = arith.constant 0 : index
    %c0_189 = arith.constant 0 : index
    %585 = vector.load %arg4[%c12, %c0_188, %c0_189] : memref<24x32x32xf32, #tpu.memory_space<vmem>>, vector<1x32x32xf32>
    %586 = vector.shape_cast %585 : vector<1x32x32xf32> to vector<32x32xf32>
    %587 = arith.truncf %586 : vector<32x32xf32> to vector<32x32xbf16>
    %c12_190 = arith.constant 12 : index
    %c0_191 = arith.constant 0 : index
    %c0_192 = arith.constant 0 : index
    %588 = vector.load %arg5[%c12_190, %c0_191, %c0_192] : memref<24x3x32xf32, #tpu.memory_space<vmem>>, vector<1x3x32xf32>
    %589 = vector.shape_cast %588 : vector<1x3x32xf32> to vector<3x32xf32>
    %590 = vector.extract_strided_slice %589 {offsets = [0, 0], sizes = [1, 32], strides = [1, 1]} : vector<3x32xf32> to vector<1x32xf32>
    %591 = vector.extract_strided_slice %589 {offsets = [1, 0], sizes = [1, 32], strides = [1, 1]} : vector<3x32xf32> to vector<1x32xf32>
    %592 = vector.extract_strided_slice %589 {offsets = [2, 0], sizes = [1, 32], strides = [1, 1]} : vector<3x32xf32> to vector<1x32xf32>
    %593 = arith.truncf %584 : vector<16x32xf32> to vector<16x32xbf16>
    %cst_193 = arith.constant dense<0.000000e+00> : vector<16x32xf32>
    %594 = tpu.matmul %593, %587, %cst_193 {dimension_numbers = #tpu.dot_dimension_numbers<[1], [0], [0], [1], [0, 0, 1, 1], [], []>} : vector<16x32xbf16>, vector<32x32xbf16>, vector<16x32xf32> -> vector<16x32xf32>
    %595 = vector.broadcast %590 : vector<1x32xf32> to vector<16x32xf32>
    %596 = arith.addf %594, %595 : vector<16x32xf32>
    %597 = arith.mulf %596, %596 : vector<16x32xf32>
    %598 = arith.mulf %596, %597 : vector<16x32xf32>
    %cst_194 = arith.constant 4.471500e-02 : f32
    %599 = vector.broadcast %cst_194 : f32 to vector<16x32xf32>
    %600 = arith.mulf %599, %598 : vector<16x32xf32>
    %601 = arith.addf %596, %600 : vector<16x32xf32>
    %cst_195 = arith.constant 0.797884583 : f32
    %602 = vector.broadcast %cst_195 : f32 to vector<16x32xf32>
    %603 = arith.mulf %602, %601 : vector<16x32xf32>
    %604 = math.tanh %603 : vector<16x32xf32>
    %cst_196 = arith.constant 1.000000e+00 : f32
    %605 = vector.broadcast %cst_196 : f32 to vector<16x32xf32>
    %606 = arith.addf %605, %604 : vector<16x32xf32>
    %cst_197 = arith.constant 5.000000e-01 : f32
    %607 = vector.broadcast %cst_197 : f32 to vector<16x32xf32>
    %608 = arith.mulf %607, %606 : vector<16x32xf32>
    %609 = arith.mulf %596, %608 : vector<16x32xf32>
    %610 = arith.addf %584, %609 : vector<16x32xf32>
    %cst_198 = arith.constant dense<0.000000e+00> : vector<16xf32>
    %611 = vector.multi_reduction <add>, %610, %cst_198 [1] : vector<16x32xf32> to vector<16xf32>
    %612 = vector.shape_cast %611 : vector<16xf32> to vector<16x1xf32>
    %cst_199 = arith.constant 3.200000e+01 : f32
    %613 = vector.broadcast %cst_199 : f32 to vector<16x1xf32>
    %614 = arith.divf %612, %613 : vector<16x1xf32>
    %615 = arith.mulf %610, %610 : vector<16x32xf32>
    %cst_200 = arith.constant dense<0.000000e+00> : vector<16xf32>
    %616 = vector.multi_reduction <add>, %615, %cst_200 [1] : vector<16x32xf32> to vector<16xf32>
    %617 = vector.shape_cast %616 : vector<16xf32> to vector<16x1xf32>
    %cst_201 = arith.constant 3.200000e+01 : f32
    %618 = vector.broadcast %cst_201 : f32 to vector<16x1xf32>
    %619 = arith.divf %617, %618 : vector<16x1xf32>
    %620 = arith.mulf %614, %614 : vector<16x1xf32>
    %621 = arith.subf %619, %620 : vector<16x1xf32>
    %622 = vector.broadcast %614 : vector<16x1xf32> to vector<16x32xf32>
    %623 = arith.subf %610, %622 : vector<16x32xf32>
    %cst_202 = arith.constant 9.99999974E-6 : f32
    %624 = vector.broadcast %cst_202 : f32 to vector<16x1xf32>
    %625 = arith.addf %621, %624 : vector<16x1xf32>
    %626 = math.rsqrt %625 : vector<16x1xf32>
    %627 = vector.broadcast %626 : vector<16x1xf32> to vector<16x32xf32>
    %628 = arith.mulf %623, %627 : vector<16x32xf32>
    %629 = vector.broadcast %591 : vector<1x32xf32> to vector<16x32xf32>
    %630 = arith.mulf %628, %629 : vector<16x32xf32>
    %631 = vector.broadcast %592 : vector<1x32xf32> to vector<16x32xf32>
    %632 = arith.addf %630, %631 : vector<16x32xf32>
    %c13 = arith.constant 13 : index
    %c0_203 = arith.constant 0 : index
    %c0_204 = arith.constant 0 : index
    %633 = vector.load %arg4[%c13, %c0_203, %c0_204] : memref<24x32x32xf32, #tpu.memory_space<vmem>>, vector<1x32x32xf32>
    %634 = vector.shape_cast %633 : vector<1x32x32xf32> to vector<32x32xf32>
    %635 = arith.truncf %634 : vector<32x32xf32> to vector<32x32xbf16>
    %c13_205 = arith.constant 13 : index
    %c0_206 = arith.constant 0 : index
    %c0_207 = arith.constant 0 : index
    %636 = vector.load %arg5[%c13_205, %c0_206, %c0_207] : memref<24x3x32xf32, #tpu.memory_space<vmem>>, vector<1x3x32xf32>
    %637 = vector.shape_cast %636 : vector<1x3x32xf32> to vector<3x32xf32>
    %638 = vector.extract_strided_slice %637 {offsets = [0, 0], sizes = [1, 32], strides = [1, 1]} : vector<3x32xf32> to vector<1x32xf32>
    %639 = vector.extract_strided_slice %637 {offsets = [1, 0], sizes = [1, 32], strides = [1, 1]} : vector<3x32xf32> to vector<1x32xf32>
    %640 = vector.extract_strided_slice %637 {offsets = [2, 0], sizes = [1, 32], strides = [1, 1]} : vector<3x32xf32> to vector<1x32xf32>
    %641 = arith.truncf %632 : vector<16x32xf32> to vector<16x32xbf16>
    %cst_208 = arith.constant dense<0.000000e+00> : vector<16x32xf32>
    %642 = tpu.matmul %641, %635, %cst_208 {dimension_numbers = #tpu.dot_dimension_numbers<[1], [0], [0], [1], [0, 0, 1, 1], [], []>} : vector<16x32xbf16>, vector<32x32xbf16>, vector<16x32xf32> -> vector<16x32xf32>
    %643 = vector.broadcast %638 : vector<1x32xf32> to vector<16x32xf32>
    %644 = arith.addf %642, %643 : vector<16x32xf32>
    %645 = arith.mulf %644, %644 : vector<16x32xf32>
    %646 = arith.mulf %644, %645 : vector<16x32xf32>
    %cst_209 = arith.constant 4.471500e-02 : f32
    %647 = vector.broadcast %cst_209 : f32 to vector<16x32xf32>
    %648 = arith.mulf %647, %646 : vector<16x32xf32>
    %649 = arith.addf %644, %648 : vector<16x32xf32>
    %cst_210 = arith.constant 0.797884583 : f32
    %650 = vector.broadcast %cst_210 : f32 to vector<16x32xf32>
    %651 = arith.mulf %650, %649 : vector<16x32xf32>
    %652 = math.tanh %651 : vector<16x32xf32>
    %cst_211 = arith.constant 1.000000e+00 : f32
    %653 = vector.broadcast %cst_211 : f32 to vector<16x32xf32>
    %654 = arith.addf %653, %652 : vector<16x32xf32>
    %cst_212 = arith.constant 5.000000e-01 : f32
    %655 = vector.broadcast %cst_212 : f32 to vector<16x32xf32>
    %656 = arith.mulf %655, %654 : vector<16x32xf32>
    %657 = arith.mulf %644, %656 : vector<16x32xf32>
    %658 = arith.addf %632, %657 : vector<16x32xf32>
    %cst_213 = arith.constant dense<0.000000e+00> : vector<16xf32>
    %659 = vector.multi_reduction <add>, %658, %cst_213 [1] : vector<16x32xf32> to vector<16xf32>
    %660 = vector.shape_cast %659 : vector<16xf32> to vector<16x1xf32>
    %cst_214 = arith.constant 3.200000e+01 : f32
    %661 = vector.broadcast %cst_214 : f32 to vector<16x1xf32>
    %662 = arith.divf %660, %661 : vector<16x1xf32>
    %663 = arith.mulf %658, %658 : vector<16x32xf32>
    %cst_215 = arith.constant dense<0.000000e+00> : vector<16xf32>
    %664 = vector.multi_reduction <add>, %663, %cst_215 [1] : vector<16x32xf32> to vector<16xf32>
    %665 = vector.shape_cast %664 : vector<16xf32> to vector<16x1xf32>
    %cst_216 = arith.constant 3.200000e+01 : f32
    %666 = vector.broadcast %cst_216 : f32 to vector<16x1xf32>
    %667 = arith.divf %665, %666 : vector<16x1xf32>
    %668 = arith.mulf %662, %662 : vector<16x1xf32>
    %669 = arith.subf %667, %668 : vector<16x1xf32>
    %670 = vector.broadcast %662 : vector<16x1xf32> to vector<16x32xf32>
    %671 = arith.subf %658, %670 : vector<16x32xf32>
    %cst_217 = arith.constant 9.99999974E-6 : f32
    %672 = vector.broadcast %cst_217 : f32 to vector<16x1xf32>
    %673 = arith.addf %669, %672 : vector<16x1xf32>
    %674 = math.rsqrt %673 : vector<16x1xf32>
    %675 = vector.broadcast %674 : vector<16x1xf32> to vector<16x32xf32>
    %676 = arith.mulf %671, %675 : vector<16x32xf32>
    %677 = vector.broadcast %639 : vector<1x32xf32> to vector<16x32xf32>
    %678 = arith.mulf %676, %677 : vector<16x32xf32>
    %679 = vector.broadcast %640 : vector<1x32xf32> to vector<16x32xf32>
    %680 = arith.addf %678, %679 : vector<16x32xf32>
    %c14 = arith.constant 14 : index
    %c0_218 = arith.constant 0 : index
    %c0_219 = arith.constant 0 : index
    %681 = vector.load %arg4[%c14, %c0_218, %c0_219] : memref<24x32x32xf32, #tpu.memory_space<vmem>>, vector<1x32x32xf32>
    %682 = vector.shape_cast %681 : vector<1x32x32xf32> to vector<32x32xf32>
    %683 = arith.truncf %682 : vector<32x32xf32> to vector<32x32xbf16>
    %c14_220 = arith.constant 14 : index
    %c0_221 = arith.constant 0 : index
    %c0_222 = arith.constant 0 : index
    %684 = vector.load %arg5[%c14_220, %c0_221, %c0_222] : memref<24x3x32xf32, #tpu.memory_space<vmem>>, vector<1x3x32xf32>
    %685 = vector.shape_cast %684 : vector<1x3x32xf32> to vector<3x32xf32>
    %686 = vector.extract_strided_slice %685 {offsets = [0, 0], sizes = [1, 32], strides = [1, 1]} : vector<3x32xf32> to vector<1x32xf32>
    %687 = vector.extract_strided_slice %685 {offsets = [1, 0], sizes = [1, 32], strides = [1, 1]} : vector<3x32xf32> to vector<1x32xf32>
    %688 = vector.extract_strided_slice %685 {offsets = [2, 0], sizes = [1, 32], strides = [1, 1]} : vector<3x32xf32> to vector<1x32xf32>
    %689 = arith.truncf %680 : vector<16x32xf32> to vector<16x32xbf16>
    %cst_223 = arith.constant dense<0.000000e+00> : vector<16x32xf32>
    %690 = tpu.matmul %689, %683, %cst_223 {dimension_numbers = #tpu.dot_dimension_numbers<[1], [0], [0], [1], [0, 0, 1, 1], [], []>} : vector<16x32xbf16>, vector<32x32xbf16>, vector<16x32xf32> -> vector<16x32xf32>
    %691 = vector.broadcast %686 : vector<1x32xf32> to vector<16x32xf32>
    %692 = arith.addf %690, %691 : vector<16x32xf32>
    %693 = arith.mulf %692, %692 : vector<16x32xf32>
    %694 = arith.mulf %692, %693 : vector<16x32xf32>
    %cst_224 = arith.constant 4.471500e-02 : f32
    %695 = vector.broadcast %cst_224 : f32 to vector<16x32xf32>
    %696 = arith.mulf %695, %694 : vector<16x32xf32>
    %697 = arith.addf %692, %696 : vector<16x32xf32>
    %cst_225 = arith.constant 0.797884583 : f32
    %698 = vector.broadcast %cst_225 : f32 to vector<16x32xf32>
    %699 = arith.mulf %698, %697 : vector<16x32xf32>
    %700 = math.tanh %699 : vector<16x32xf32>
    %cst_226 = arith.constant 1.000000e+00 : f32
    %701 = vector.broadcast %cst_226 : f32 to vector<16x32xf32>
    %702 = arith.addf %701, %700 : vector<16x32xf32>
    %cst_227 = arith.constant 5.000000e-01 : f32
    %703 = vector.broadcast %cst_227 : f32 to vector<16x32xf32>
    %704 = arith.mulf %703, %702 : vector<16x32xf32>
    %705 = arith.mulf %692, %704 : vector<16x32xf32>
    %706 = arith.addf %680, %705 : vector<16x32xf32>
    %cst_228 = arith.constant dense<0.000000e+00> : vector<16xf32>
    %707 = vector.multi_reduction <add>, %706, %cst_228 [1] : vector<16x32xf32> to vector<16xf32>
    %708 = vector.shape_cast %707 : vector<16xf32> to vector<16x1xf32>
    %cst_229 = arith.constant 3.200000e+01 : f32
    %709 = vector.broadcast %cst_229 : f32 to vector<16x1xf32>
    %710 = arith.divf %708, %709 : vector<16x1xf32>
    %711 = arith.mulf %706, %706 : vector<16x32xf32>
    %cst_230 = arith.constant dense<0.000000e+00> : vector<16xf32>
    %712 = vector.multi_reduction <add>, %711, %cst_230 [1] : vector<16x32xf32> to vector<16xf32>
    %713 = vector.shape_cast %712 : vector<16xf32> to vector<16x1xf32>
    %cst_231 = arith.constant 3.200000e+01 : f32
    %714 = vector.broadcast %cst_231 : f32 to vector<16x1xf32>
    %715 = arith.divf %713, %714 : vector<16x1xf32>
    %716 = arith.mulf %710, %710 : vector<16x1xf32>
    %717 = arith.subf %715, %716 : vector<16x1xf32>
    %718 = vector.broadcast %710 : vector<16x1xf32> to vector<16x32xf32>
    %719 = arith.subf %706, %718 : vector<16x32xf32>
    %cst_232 = arith.constant 9.99999974E-6 : f32
    %720 = vector.broadcast %cst_232 : f32 to vector<16x1xf32>
    %721 = arith.addf %717, %720 : vector<16x1xf32>
    %722 = math.rsqrt %721 : vector<16x1xf32>
    %723 = vector.broadcast %722 : vector<16x1xf32> to vector<16x32xf32>
    %724 = arith.mulf %719, %723 : vector<16x32xf32>
    %725 = vector.broadcast %687 : vector<1x32xf32> to vector<16x32xf32>
    %726 = arith.mulf %724, %725 : vector<16x32xf32>
    %727 = vector.broadcast %688 : vector<1x32xf32> to vector<16x32xf32>
    %728 = arith.addf %726, %727 : vector<16x32xf32>
    %c15 = arith.constant 15 : index
    %c0_233 = arith.constant 0 : index
    %c0_234 = arith.constant 0 : index
    %729 = vector.load %arg4[%c15, %c0_233, %c0_234] : memref<24x32x32xf32, #tpu.memory_space<vmem>>, vector<1x32x32xf32>
    %730 = vector.shape_cast %729 : vector<1x32x32xf32> to vector<32x32xf32>
    %731 = arith.truncf %730 : vector<32x32xf32> to vector<32x32xbf16>
    %c15_235 = arith.constant 15 : index
    %c0_236 = arith.constant 0 : index
    %c0_237 = arith.constant 0 : index
    %732 = vector.load %arg5[%c15_235, %c0_236, %c0_237] : memref<24x3x32xf32, #tpu.memory_space<vmem>>, vector<1x3x32xf32>
    %733 = vector.shape_cast %732 : vector<1x3x32xf32> to vector<3x32xf32>
    %734 = vector.extract_strided_slice %733 {offsets = [0, 0], sizes = [1, 32], strides = [1, 1]} : vector<3x32xf32> to vector<1x32xf32>
    %735 = vector.extract_strided_slice %733 {offsets = [1, 0], sizes = [1, 32], strides = [1, 1]} : vector<3x32xf32> to vector<1x32xf32>
    %736 = vector.extract_strided_slice %733 {offsets = [2, 0], sizes = [1, 32], strides = [1, 1]} : vector<3x32xf32> to vector<1x32xf32>
    %737 = arith.truncf %728 : vector<16x32xf32> to vector<16x32xbf16>
    %cst_238 = arith.constant dense<0.000000e+00> : vector<16x32xf32>
    %738 = tpu.matmul %737, %731, %cst_238 {dimension_numbers = #tpu.dot_dimension_numbers<[1], [0], [0], [1], [0, 0, 1, 1], [], []>} : vector<16x32xbf16>, vector<32x32xbf16>, vector<16x32xf32> -> vector<16x32xf32>
    %739 = vector.broadcast %734 : vector<1x32xf32> to vector<16x32xf32>
    %740 = arith.addf %738, %739 : vector<16x32xf32>
    %741 = arith.mulf %740, %740 : vector<16x32xf32>
    %742 = arith.mulf %740, %741 : vector<16x32xf32>
    %cst_239 = arith.constant 4.471500e-02 : f32
    %743 = vector.broadcast %cst_239 : f32 to vector<16x32xf32>
    %744 = arith.mulf %743, %742 : vector<16x32xf32>
    %745 = arith.addf %740, %744 : vector<16x32xf32>
    %cst_240 = arith.constant 0.797884583 : f32
    %746 = vector.broadcast %cst_240 : f32 to vector<16x32xf32>
    %747 = arith.mulf %746, %745 : vector<16x32xf32>
    %748 = math.tanh %747 : vector<16x32xf32>
    %cst_241 = arith.constant 1.000000e+00 : f32
    %749 = vector.broadcast %cst_241 : f32 to vector<16x32xf32>
    %750 = arith.addf %749, %748 : vector<16x32xf32>
    %cst_242 = arith.constant 5.000000e-01 : f32
    %751 = vector.broadcast %cst_242 : f32 to vector<16x32xf32>
    %752 = arith.mulf %751, %750 : vector<16x32xf32>
    %753 = arith.mulf %740, %752 : vector<16x32xf32>
    %754 = arith.addf %728, %753 : vector<16x32xf32>
    %cst_243 = arith.constant dense<0.000000e+00> : vector<16xf32>
    %755 = vector.multi_reduction <add>, %754, %cst_243 [1] : vector<16x32xf32> to vector<16xf32>
    %756 = vector.shape_cast %755 : vector<16xf32> to vector<16x1xf32>
    %cst_244 = arith.constant 3.200000e+01 : f32
    %757 = vector.broadcast %cst_244 : f32 to vector<16x1xf32>
    %758 = arith.divf %756, %757 : vector<16x1xf32>
    %759 = arith.mulf %754, %754 : vector<16x32xf32>
    %cst_245 = arith.constant dense<0.000000e+00> : vector<16xf32>
    %760 = vector.multi_reduction <add>, %759, %cst_245 [1] : vector<16x32xf32> to vector<16xf32>
    %761 = vector.shape_cast %760 : vector<16xf32> to vector<16x1xf32>
    %cst_246 = arith.constant 3.200000e+01 : f32
    %762 = vector.broadcast %cst_246 : f32 to vector<16x1xf32>
    %763 = arith.divf %761, %762 : vector<16x1xf32>
    %764 = arith.mulf %758, %758 : vector<16x1xf32>
    %765 = arith.subf %763, %764 : vector<16x1xf32>
    %766 = vector.broadcast %758 : vector<16x1xf32> to vector<16x32xf32>
    %767 = arith.subf %754, %766 : vector<16x32xf32>
    %cst_247 = arith.constant 9.99999974E-6 : f32
    %768 = vector.broadcast %cst_247 : f32 to vector<16x1xf32>
    %769 = arith.addf %765, %768 : vector<16x1xf32>
    %770 = math.rsqrt %769 : vector<16x1xf32>
    %771 = vector.broadcast %770 : vector<16x1xf32> to vector<16x32xf32>
    %772 = arith.mulf %767, %771 : vector<16x32xf32>
    %773 = vector.broadcast %735 : vector<1x32xf32> to vector<16x32xf32>
    %774 = arith.mulf %772, %773 : vector<16x32xf32>
    %775 = vector.broadcast %736 : vector<1x32xf32> to vector<16x32xf32>
    %776 = arith.addf %774, %775 : vector<16x32xf32>
    %c16 = arith.constant 16 : index
    %c0_248 = arith.constant 0 : index
    %c0_249 = arith.constant 0 : index
    %777 = vector.load %arg4[%c16, %c0_248, %c0_249] : memref<24x32x32xf32, #tpu.memory_space<vmem>>, vector<1x32x32xf32>
    %778 = vector.shape_cast %777 : vector<1x32x32xf32> to vector<32x32xf32>
    %779 = arith.truncf %778 : vector<32x32xf32> to vector<32x32xbf16>
    %c16_250 = arith.constant 16 : index
    %c0_251 = arith.constant 0 : index
    %c0_252 = arith.constant 0 : index
    %780 = vector.load %arg5[%c16_250, %c0_251, %c0_252] : memref<24x3x32xf32, #tpu.memory_space<vmem>>, vector<1x3x32xf32>
    %781 = vector.shape_cast %780 : vector<1x3x32xf32> to vector<3x32xf32>
    %782 = vector.extract_strided_slice %781 {offsets = [0, 0], sizes = [1, 32], strides = [1, 1]} : vector<3x32xf32> to vector<1x32xf32>
    %783 = vector.extract_strided_slice %781 {offsets = [1, 0], sizes = [1, 32], strides = [1, 1]} : vector<3x32xf32> to vector<1x32xf32>
    %784 = vector.extract_strided_slice %781 {offsets = [2, 0], sizes = [1, 32], strides = [1, 1]} : vector<3x32xf32> to vector<1x32xf32>
    %785 = arith.truncf %776 : vector<16x32xf32> to vector<16x32xbf16>
    %cst_253 = arith.constant dense<0.000000e+00> : vector<16x32xf32>
    %786 = tpu.matmul %785, %779, %cst_253 {dimension_numbers = #tpu.dot_dimension_numbers<[1], [0], [0], [1], [0, 0, 1, 1], [], []>} : vector<16x32xbf16>, vector<32x32xbf16>, vector<16x32xf32> -> vector<16x32xf32>
    %787 = vector.broadcast %782 : vector<1x32xf32> to vector<16x32xf32>
    %788 = arith.addf %786, %787 : vector<16x32xf32>
    %789 = arith.mulf %788, %788 : vector<16x32xf32>
    %790 = arith.mulf %788, %789 : vector<16x32xf32>
    %cst_254 = arith.constant 4.471500e-02 : f32
    %791 = vector.broadcast %cst_254 : f32 to vector<16x32xf32>
    %792 = arith.mulf %791, %790 : vector<16x32xf32>
    %793 = arith.addf %788, %792 : vector<16x32xf32>
    %cst_255 = arith.constant 0.797884583 : f32
    %794 = vector.broadcast %cst_255 : f32 to vector<16x32xf32>
    %795 = arith.mulf %794, %793 : vector<16x32xf32>
    %796 = math.tanh %795 : vector<16x32xf32>
    %cst_256 = arith.constant 1.000000e+00 : f32
    %797 = vector.broadcast %cst_256 : f32 to vector<16x32xf32>
    %798 = arith.addf %797, %796 : vector<16x32xf32>
    %cst_257 = arith.constant 5.000000e-01 : f32
    %799 = vector.broadcast %cst_257 : f32 to vector<16x32xf32>
    %800 = arith.mulf %799, %798 : vector<16x32xf32>
    %801 = arith.mulf %788, %800 : vector<16x32xf32>
    %802 = arith.addf %776, %801 : vector<16x32xf32>
    %cst_258 = arith.constant dense<0.000000e+00> : vector<16xf32>
    %803 = vector.multi_reduction <add>, %802, %cst_258 [1] : vector<16x32xf32> to vector<16xf32>
    %804 = vector.shape_cast %803 : vector<16xf32> to vector<16x1xf32>
    %cst_259 = arith.constant 3.200000e+01 : f32
    %805 = vector.broadcast %cst_259 : f32 to vector<16x1xf32>
    %806 = arith.divf %804, %805 : vector<16x1xf32>
    %807 = arith.mulf %802, %802 : vector<16x32xf32>
    %cst_260 = arith.constant dense<0.000000e+00> : vector<16xf32>
    %808 = vector.multi_reduction <add>, %807, %cst_260 [1] : vector<16x32xf32> to vector<16xf32>
    %809 = vector.shape_cast %808 : vector<16xf32> to vector<16x1xf32>
    %cst_261 = arith.constant 3.200000e+01 : f32
    %810 = vector.broadcast %cst_261 : f32 to vector<16x1xf32>
    %811 = arith.divf %809, %810 : vector<16x1xf32>
    %812 = arith.mulf %806, %806 : vector<16x1xf32>
    %813 = arith.subf %811, %812 : vector<16x1xf32>
    %814 = vector.broadcast %806 : vector<16x1xf32> to vector<16x32xf32>
    %815 = arith.subf %802, %814 : vector<16x32xf32>
    %cst_262 = arith.constant 9.99999974E-6 : f32
    %816 = vector.broadcast %cst_262 : f32 to vector<16x1xf32>
    %817 = arith.addf %813, %816 : vector<16x1xf32>
    %818 = math.rsqrt %817 : vector<16x1xf32>
    %819 = vector.broadcast %818 : vector<16x1xf32> to vector<16x32xf32>
    %820 = arith.mulf %815, %819 : vector<16x32xf32>
    %821 = vector.broadcast %783 : vector<1x32xf32> to vector<16x32xf32>
    %822 = arith.mulf %820, %821 : vector<16x32xf32>
    %823 = vector.broadcast %784 : vector<1x32xf32> to vector<16x32xf32>
    %824 = arith.addf %822, %823 : vector<16x32xf32>
    %c17 = arith.constant 17 : index
    %c0_263 = arith.constant 0 : index
    %c0_264 = arith.constant 0 : index
    %825 = vector.load %arg4[%c17, %c0_263, %c0_264] : memref<24x32x32xf32, #tpu.memory_space<vmem>>, vector<1x32x32xf32>
    %826 = vector.shape_cast %825 : vector<1x32x32xf32> to vector<32x32xf32>
    %827 = arith.truncf %826 : vector<32x32xf32> to vector<32x32xbf16>
    %c17_265 = arith.constant 17 : index
    %c0_266 = arith.constant 0 : index
    %c0_267 = arith.constant 0 : index
    %828 = vector.load %arg5[%c17_265, %c0_266, %c0_267] : memref<24x3x32xf32, #tpu.memory_space<vmem>>, vector<1x3x32xf32>
    %829 = vector.shape_cast %828 : vector<1x3x32xf32> to vector<3x32xf32>
    %830 = vector.extract_strided_slice %829 {offsets = [0, 0], sizes = [1, 32], strides = [1, 1]} : vector<3x32xf32> to vector<1x32xf32>
    %831 = vector.extract_strided_slice %829 {offsets = [1, 0], sizes = [1, 32], strides = [1, 1]} : vector<3x32xf32> to vector<1x32xf32>
    %832 = vector.extract_strided_slice %829 {offsets = [2, 0], sizes = [1, 32], strides = [1, 1]} : vector<3x32xf32> to vector<1x32xf32>
    %833 = arith.truncf %824 : vector<16x32xf32> to vector<16x32xbf16>
    %cst_268 = arith.constant dense<0.000000e+00> : vector<16x32xf32>
    %834 = tpu.matmul %833, %827, %cst_268 {dimension_numbers = #tpu.dot_dimension_numbers<[1], [0], [0], [1], [0, 0, 1, 1], [], []>} : vector<16x32xbf16>, vector<32x32xbf16>, vector<16x32xf32> -> vector<16x32xf32>
    %835 = vector.broadcast %830 : vector<1x32xf32> to vector<16x32xf32>
    %836 = arith.addf %834, %835 : vector<16x32xf32>
    %837 = arith.mulf %836, %836 : vector<16x32xf32>
    %838 = arith.mulf %836, %837 : vector<16x32xf32>
    %cst_269 = arith.constant 4.471500e-02 : f32
    %839 = vector.broadcast %cst_269 : f32 to vector<16x32xf32>
    %840 = arith.mulf %839, %838 : vector<16x32xf32>
    %841 = arith.addf %836, %840 : vector<16x32xf32>
    %cst_270 = arith.constant 0.797884583 : f32
    %842 = vector.broadcast %cst_270 : f32 to vector<16x32xf32>
    %843 = arith.mulf %842, %841 : vector<16x32xf32>
    %844 = math.tanh %843 : vector<16x32xf32>
    %cst_271 = arith.constant 1.000000e+00 : f32
    %845 = vector.broadcast %cst_271 : f32 to vector<16x32xf32>
    %846 = arith.addf %845, %844 : vector<16x32xf32>
    %cst_272 = arith.constant 5.000000e-01 : f32
    %847 = vector.broadcast %cst_272 : f32 to vector<16x32xf32>
    %848 = arith.mulf %847, %846 : vector<16x32xf32>
    %849 = arith.mulf %836, %848 : vector<16x32xf32>
    %850 = arith.addf %824, %849 : vector<16x32xf32>
    %cst_273 = arith.constant dense<0.000000e+00> : vector<16xf32>
    %851 = vector.multi_reduction <add>, %850, %cst_273 [1] : vector<16x32xf32> to vector<16xf32>
    %852 = vector.shape_cast %851 : vector<16xf32> to vector<16x1xf32>
    %cst_274 = arith.constant 3.200000e+01 : f32
    %853 = vector.broadcast %cst_274 : f32 to vector<16x1xf32>
    %854 = arith.divf %852, %853 : vector<16x1xf32>
    %855 = arith.mulf %850, %850 : vector<16x32xf32>
    %cst_275 = arith.constant dense<0.000000e+00> : vector<16xf32>
    %856 = vector.multi_reduction <add>, %855, %cst_275 [1] : vector<16x32xf32> to vector<16xf32>
    %857 = vector.shape_cast %856 : vector<16xf32> to vector<16x1xf32>
    %cst_276 = arith.constant 3.200000e+01 : f32
    %858 = vector.broadcast %cst_276 : f32 to vector<16x1xf32>
    %859 = arith.divf %857, %858 : vector<16x1xf32>
    %860 = arith.mulf %854, %854 : vector<16x1xf32>
    %861 = arith.subf %859, %860 : vector<16x1xf32>
    %862 = vector.broadcast %854 : vector<16x1xf32> to vector<16x32xf32>
    %863 = arith.subf %850, %862 : vector<16x32xf32>
    %cst_277 = arith.constant 9.99999974E-6 : f32
    %864 = vector.broadcast %cst_277 : f32 to vector<16x1xf32>
    %865 = arith.addf %861, %864 : vector<16x1xf32>
    %866 = math.rsqrt %865 : vector<16x1xf32>
    %867 = vector.broadcast %866 : vector<16x1xf32> to vector<16x32xf32>
    %868 = arith.mulf %863, %867 : vector<16x32xf32>
    %869 = vector.broadcast %831 : vector<1x32xf32> to vector<16x32xf32>
    %870 = arith.mulf %868, %869 : vector<16x32xf32>
    %871 = vector.broadcast %832 : vector<1x32xf32> to vector<16x32xf32>
    %872 = arith.addf %870, %871 : vector<16x32xf32>
    %c18 = arith.constant 18 : index
    %c0_278 = arith.constant 0 : index
    %c0_279 = arith.constant 0 : index
    %873 = vector.load %arg4[%c18, %c0_278, %c0_279] : memref<24x32x32xf32, #tpu.memory_space<vmem>>, vector<1x32x32xf32>
    %874 = vector.shape_cast %873 : vector<1x32x32xf32> to vector<32x32xf32>
    %875 = arith.truncf %874 : vector<32x32xf32> to vector<32x32xbf16>
    %c18_280 = arith.constant 18 : index
    %c0_281 = arith.constant 0 : index
    %c0_282 = arith.constant 0 : index
    %876 = vector.load %arg5[%c18_280, %c0_281, %c0_282] : memref<24x3x32xf32, #tpu.memory_space<vmem>>, vector<1x3x32xf32>
    %877 = vector.shape_cast %876 : vector<1x3x32xf32> to vector<3x32xf32>
    %878 = vector.extract_strided_slice %877 {offsets = [0, 0], sizes = [1, 32], strides = [1, 1]} : vector<3x32xf32> to vector<1x32xf32>
    %879 = vector.extract_strided_slice %877 {offsets = [1, 0], sizes = [1, 32], strides = [1, 1]} : vector<3x32xf32> to vector<1x32xf32>
    %880 = vector.extract_strided_slice %877 {offsets = [2, 0], sizes = [1, 32], strides = [1, 1]} : vector<3x32xf32> to vector<1x32xf32>
    %881 = arith.truncf %872 : vector<16x32xf32> to vector<16x32xbf16>
    %cst_283 = arith.constant dense<0.000000e+00> : vector<16x32xf32>
    %882 = tpu.matmul %881, %875, %cst_283 {dimension_numbers = #tpu.dot_dimension_numbers<[1], [0], [0], [1], [0, 0, 1, 1], [], []>} : vector<16x32xbf16>, vector<32x32xbf16>, vector<16x32xf32> -> vector<16x32xf32>
    %883 = vector.broadcast %878 : vector<1x32xf32> to vector<16x32xf32>
    %884 = arith.addf %882, %883 : vector<16x32xf32>
    %885 = arith.mulf %884, %884 : vector<16x32xf32>
    %886 = arith.mulf %884, %885 : vector<16x32xf32>
    %cst_284 = arith.constant 4.471500e-02 : f32
    %887 = vector.broadcast %cst_284 : f32 to vector<16x32xf32>
    %888 = arith.mulf %887, %886 : vector<16x32xf32>
    %889 = arith.addf %884, %888 : vector<16x32xf32>
    %cst_285 = arith.constant 0.797884583 : f32
    %890 = vector.broadcast %cst_285 : f32 to vector<16x32xf32>
    %891 = arith.mulf %890, %889 : vector<16x32xf32>
    %892 = math.tanh %891 : vector<16x32xf32>
    %cst_286 = arith.constant 1.000000e+00 : f32
    %893 = vector.broadcast %cst_286 : f32 to vector<16x32xf32>
    %894 = arith.addf %893, %892 : vector<16x32xf32>
    %cst_287 = arith.constant 5.000000e-01 : f32
    %895 = vector.broadcast %cst_287 : f32 to vector<16x32xf32>
    %896 = arith.mulf %895, %894 : vector<16x32xf32>
    %897 = arith.mulf %884, %896 : vector<16x32xf32>
    %898 = arith.addf %872, %897 : vector<16x32xf32>
    %cst_288 = arith.constant dense<0.000000e+00> : vector<16xf32>
    %899 = vector.multi_reduction <add>, %898, %cst_288 [1] : vector<16x32xf32> to vector<16xf32>
    %900 = vector.shape_cast %899 : vector<16xf32> to vector<16x1xf32>
    %cst_289 = arith.constant 3.200000e+01 : f32
    %901 = vector.broadcast %cst_289 : f32 to vector<16x1xf32>
    %902 = arith.divf %900, %901 : vector<16x1xf32>
    %903 = arith.mulf %898, %898 : vector<16x32xf32>
    %cst_290 = arith.constant dense<0.000000e+00> : vector<16xf32>
    %904 = vector.multi_reduction <add>, %903, %cst_290 [1] : vector<16x32xf32> to vector<16xf32>
    %905 = vector.shape_cast %904 : vector<16xf32> to vector<16x1xf32>
    %cst_291 = arith.constant 3.200000e+01 : f32
    %906 = vector.broadcast %cst_291 : f32 to vector<16x1xf32>
    %907 = arith.divf %905, %906 : vector<16x1xf32>
    %908 = arith.mulf %902, %902 : vector<16x1xf32>
    %909 = arith.subf %907, %908 : vector<16x1xf32>
    %910 = vector.broadcast %902 : vector<16x1xf32> to vector<16x32xf32>
    %911 = arith.subf %898, %910 : vector<16x32xf32>
    %cst_292 = arith.constant 9.99999974E-6 : f32
    %912 = vector.broadcast %cst_292 : f32 to vector<16x1xf32>
    %913 = arith.addf %909, %912 : vector<16x1xf32>
    %914 = math.rsqrt %913 : vector<16x1xf32>
    %915 = vector.broadcast %914 : vector<16x1xf32> to vector<16x32xf32>
    %916 = arith.mulf %911, %915 : vector<16x32xf32>
    %917 = vector.broadcast %879 : vector<1x32xf32> to vector<16x32xf32>
    %918 = arith.mulf %916, %917 : vector<16x32xf32>
    %919 = vector.broadcast %880 : vector<1x32xf32> to vector<16x32xf32>
    %920 = arith.addf %918, %919 : vector<16x32xf32>
    %c19 = arith.constant 19 : index
    %c0_293 = arith.constant 0 : index
    %c0_294 = arith.constant 0 : index
    %921 = vector.load %arg4[%c19, %c0_293, %c0_294] : memref<24x32x32xf32, #tpu.memory_space<vmem>>, vector<1x32x32xf32>
    %922 = vector.shape_cast %921 : vector<1x32x32xf32> to vector<32x32xf32>
    %923 = arith.truncf %922 : vector<32x32xf32> to vector<32x32xbf16>
    %c19_295 = arith.constant 19 : index
    %c0_296 = arith.constant 0 : index
    %c0_297 = arith.constant 0 : index
    %924 = vector.load %arg5[%c19_295, %c0_296, %c0_297] : memref<24x3x32xf32, #tpu.memory_space<vmem>>, vector<1x3x32xf32>
    %925 = vector.shape_cast %924 : vector<1x3x32xf32> to vector<3x32xf32>
    %926 = vector.extract_strided_slice %925 {offsets = [0, 0], sizes = [1, 32], strides = [1, 1]} : vector<3x32xf32> to vector<1x32xf32>
    %927 = vector.extract_strided_slice %925 {offsets = [1, 0], sizes = [1, 32], strides = [1, 1]} : vector<3x32xf32> to vector<1x32xf32>
    %928 = vector.extract_strided_slice %925 {offsets = [2, 0], sizes = [1, 32], strides = [1, 1]} : vector<3x32xf32> to vector<1x32xf32>
    %929 = arith.truncf %920 : vector<16x32xf32> to vector<16x32xbf16>
    %cst_298 = arith.constant dense<0.000000e+00> : vector<16x32xf32>
    %930 = tpu.matmul %929, %923, %cst_298 {dimension_numbers = #tpu.dot_dimension_numbers<[1], [0], [0], [1], [0, 0, 1, 1], [], []>} : vector<16x32xbf16>, vector<32x32xbf16>, vector<16x32xf32> -> vector<16x32xf32>
    %931 = vector.broadcast %926 : vector<1x32xf32> to vector<16x32xf32>
    %932 = arith.addf %930, %931 : vector<16x32xf32>
    %933 = arith.mulf %932, %932 : vector<16x32xf32>
    %934 = arith.mulf %932, %933 : vector<16x32xf32>
    %cst_299 = arith.constant 4.471500e-02 : f32
    %935 = vector.broadcast %cst_299 : f32 to vector<16x32xf32>
    %936 = arith.mulf %935, %934 : vector<16x32xf32>
    %937 = arith.addf %932, %936 : vector<16x32xf32>
    %cst_300 = arith.constant 0.797884583 : f32
    %938 = vector.broadcast %cst_300 : f32 to vector<16x32xf32>
    %939 = arith.mulf %938, %937 : vector<16x32xf32>
    %940 = math.tanh %939 : vector<16x32xf32>
    %cst_301 = arith.constant 1.000000e+00 : f32
    %941 = vector.broadcast %cst_301 : f32 to vector<16x32xf32>
    %942 = arith.addf %941, %940 : vector<16x32xf32>
    %cst_302 = arith.constant 5.000000e-01 : f32
    %943 = vector.broadcast %cst_302 : f32 to vector<16x32xf32>
    %944 = arith.mulf %943, %942 : vector<16x32xf32>
    %945 = arith.mulf %932, %944 : vector<16x32xf32>
    %946 = arith.addf %920, %945 : vector<16x32xf32>
    %cst_303 = arith.constant dense<0.000000e+00> : vector<16xf32>
    %947 = vector.multi_reduction <add>, %946, %cst_303 [1] : vector<16x32xf32> to vector<16xf32>
    %948 = vector.shape_cast %947 : vector<16xf32> to vector<16x1xf32>
    %cst_304 = arith.constant 3.200000e+01 : f32
    %949 = vector.broadcast %cst_304 : f32 to vector<16x1xf32>
    %950 = arith.divf %948, %949 : vector<16x1xf32>
    %951 = arith.mulf %946, %946 : vector<16x32xf32>
    %cst_305 = arith.constant dense<0.000000e+00> : vector<16xf32>
    %952 = vector.multi_reduction <add>, %951, %cst_305 [1] : vector<16x32xf32> to vector<16xf32>
    %953 = vector.shape_cast %952 : vector<16xf32> to vector<16x1xf32>
    %cst_306 = arith.constant 3.200000e+01 : f32
    %954 = vector.broadcast %cst_306 : f32 to vector<16x1xf32>
    %955 = arith.divf %953, %954 : vector<16x1xf32>
    %956 = arith.mulf %950, %950 : vector<16x1xf32>
    %957 = arith.subf %955, %956 : vector<16x1xf32>
    %958 = vector.broadcast %950 : vector<16x1xf32> to vector<16x32xf32>
    %959 = arith.subf %946, %958 : vector<16x32xf32>
    %cst_307 = arith.constant 9.99999974E-6 : f32
    %960 = vector.broadcast %cst_307 : f32 to vector<16x1xf32>
    %961 = arith.addf %957, %960 : vector<16x1xf32>
    %962 = math.rsqrt %961 : vector<16x1xf32>
    %963 = vector.broadcast %962 : vector<16x1xf32> to vector<16x32xf32>
    %964 = arith.mulf %959, %963 : vector<16x32xf32>
    %965 = vector.broadcast %927 : vector<1x32xf32> to vector<16x32xf32>
    %966 = arith.mulf %964, %965 : vector<16x32xf32>
    %967 = vector.broadcast %928 : vector<1x32xf32> to vector<16x32xf32>
    %968 = arith.addf %966, %967 : vector<16x32xf32>
    %c20 = arith.constant 20 : index
    %c0_308 = arith.constant 0 : index
    %c0_309 = arith.constant 0 : index
    %969 = vector.load %arg4[%c20, %c0_308, %c0_309] : memref<24x32x32xf32, #tpu.memory_space<vmem>>, vector<1x32x32xf32>
    %970 = vector.shape_cast %969 : vector<1x32x32xf32> to vector<32x32xf32>
    %971 = arith.truncf %970 : vector<32x32xf32> to vector<32x32xbf16>
    %c20_310 = arith.constant 20 : index
    %c0_311 = arith.constant 0 : index
    %c0_312 = arith.constant 0 : index
    %972 = vector.load %arg5[%c20_310, %c0_311, %c0_312] : memref<24x3x32xf32, #tpu.memory_space<vmem>>, vector<1x3x32xf32>
    %973 = vector.shape_cast %972 : vector<1x3x32xf32> to vector<3x32xf32>
    %974 = vector.extract_strided_slice %973 {offsets = [0, 0], sizes = [1, 32], strides = [1, 1]} : vector<3x32xf32> to vector<1x32xf32>
    %975 = vector.extract_strided_slice %973 {offsets = [1, 0], sizes = [1, 32], strides = [1, 1]} : vector<3x32xf32> to vector<1x32xf32>
    %976 = vector.extract_strided_slice %973 {offsets = [2, 0], sizes = [1, 32], strides = [1, 1]} : vector<3x32xf32> to vector<1x32xf32>
    %977 = arith.truncf %968 : vector<16x32xf32> to vector<16x32xbf16>
    %cst_313 = arith.constant dense<0.000000e+00> : vector<16x32xf32>
    %978 = tpu.matmul %977, %971, %cst_313 {dimension_numbers = #tpu.dot_dimension_numbers<[1], [0], [0], [1], [0, 0, 1, 1], [], []>} : vector<16x32xbf16>, vector<32x32xbf16>, vector<16x32xf32> -> vector<16x32xf32>
    %979 = vector.broadcast %974 : vector<1x32xf32> to vector<16x32xf32>
    %980 = arith.addf %978, %979 : vector<16x32xf32>
    %981 = arith.mulf %980, %980 : vector<16x32xf32>
    %982 = arith.mulf %980, %981 : vector<16x32xf32>
    %cst_314 = arith.constant 4.471500e-02 : f32
    %983 = vector.broadcast %cst_314 : f32 to vector<16x32xf32>
    %984 = arith.mulf %983, %982 : vector<16x32xf32>
    %985 = arith.addf %980, %984 : vector<16x32xf32>
    %cst_315 = arith.constant 0.797884583 : f32
    %986 = vector.broadcast %cst_315 : f32 to vector<16x32xf32>
    %987 = arith.mulf %986, %985 : vector<16x32xf32>
    %988 = math.tanh %987 : vector<16x32xf32>
    %cst_316 = arith.constant 1.000000e+00 : f32
    %989 = vector.broadcast %cst_316 : f32 to vector<16x32xf32>
    %990 = arith.addf %989, %988 : vector<16x32xf32>
    %cst_317 = arith.constant 5.000000e-01 : f32
    %991 = vector.broadcast %cst_317 : f32 to vector<16x32xf32>
    %992 = arith.mulf %991, %990 : vector<16x32xf32>
    %993 = arith.mulf %980, %992 : vector<16x32xf32>
    %994 = arith.addf %968, %993 : vector<16x32xf32>
    %cst_318 = arith.constant dense<0.000000e+00> : vector<16xf32>
    %995 = vector.multi_reduction <add>, %994, %cst_318 [1] : vector<16x32xf32> to vector<16xf32>
    %996 = vector.shape_cast %995 : vector<16xf32> to vector<16x1xf32>
    %cst_319 = arith.constant 3.200000e+01 : f32
    %997 = vector.broadcast %cst_319 : f32 to vector<16x1xf32>
    %998 = arith.divf %996, %997 : vector<16x1xf32>
    %999 = arith.mulf %994, %994 : vector<16x32xf32>
    %cst_320 = arith.constant dense<0.000000e+00> : vector<16xf32>
    %1000 = vector.multi_reduction <add>, %999, %cst_320 [1] : vector<16x32xf32> to vector<16xf32>
    %1001 = vector.shape_cast %1000 : vector<16xf32> to vector<16x1xf32>
    %cst_321 = arith.constant 3.200000e+01 : f32
    %1002 = vector.broadcast %cst_321 : f32 to vector<16x1xf32>
    %1003 = arith.divf %1001, %1002 : vector<16x1xf32>
    %1004 = arith.mulf %998, %998 : vector<16x1xf32>
    %1005 = arith.subf %1003, %1004 : vector<16x1xf32>
    %1006 = vector.broadcast %998 : vector<16x1xf32> to vector<16x32xf32>
    %1007 = arith.subf %994, %1006 : vector<16x32xf32>
    %cst_322 = arith.constant 9.99999974E-6 : f32
    %1008 = vector.broadcast %cst_322 : f32 to vector<16x1xf32>
    %1009 = arith.addf %1005, %1008 : vector<16x1xf32>
    %1010 = math.rsqrt %1009 : vector<16x1xf32>
    %1011 = vector.broadcast %1010 : vector<16x1xf32> to vector<16x32xf32>
    %1012 = arith.mulf %1007, %1011 : vector<16x32xf32>
    %1013 = vector.broadcast %975 : vector<1x32xf32> to vector<16x32xf32>
    %1014 = arith.mulf %1012, %1013 : vector<16x32xf32>
    %1015 = vector.broadcast %976 : vector<1x32xf32> to vector<16x32xf32>
    %1016 = arith.addf %1014, %1015 : vector<16x32xf32>
    %c21 = arith.constant 21 : index
    %c0_323 = arith.constant 0 : index
    %c0_324 = arith.constant 0 : index
    %1017 = vector.load %arg4[%c21, %c0_323, %c0_324] : memref<24x32x32xf32, #tpu.memory_space<vmem>>, vector<1x32x32xf32>
    %1018 = vector.shape_cast %1017 : vector<1x32x32xf32> to vector<32x32xf32>
    %1019 = arith.truncf %1018 : vector<32x32xf32> to vector<32x32xbf16>
    %c21_325 = arith.constant 21 : index
    %c0_326 = arith.constant 0 : index
    %c0_327 = arith.constant 0 : index
    %1020 = vector.load %arg5[%c21_325, %c0_326, %c0_327] : memref<24x3x32xf32, #tpu.memory_space<vmem>>, vector<1x3x32xf32>
    %1021 = vector.shape_cast %1020 : vector<1x3x32xf32> to vector<3x32xf32>
    %1022 = vector.extract_strided_slice %1021 {offsets = [0, 0], sizes = [1, 32], strides = [1, 1]} : vector<3x32xf32> to vector<1x32xf32>
    %1023 = vector.extract_strided_slice %1021 {offsets = [1, 0], sizes = [1, 32], strides = [1, 1]} : vector<3x32xf32> to vector<1x32xf32>
    %1024 = vector.extract_strided_slice %1021 {offsets = [2, 0], sizes = [1, 32], strides = [1, 1]} : vector<3x32xf32> to vector<1x32xf32>
    %1025 = arith.truncf %1016 : vector<16x32xf32> to vector<16x32xbf16>
    %cst_328 = arith.constant dense<0.000000e+00> : vector<16x32xf32>
    %1026 = tpu.matmul %1025, %1019, %cst_328 {dimension_numbers = #tpu.dot_dimension_numbers<[1], [0], [0], [1], [0, 0, 1, 1], [], []>} : vector<16x32xbf16>, vector<32x32xbf16>, vector<16x32xf32> -> vector<16x32xf32>
    %1027 = vector.broadcast %1022 : vector<1x32xf32> to vector<16x32xf32>
    %1028 = arith.addf %1026, %1027 : vector<16x32xf32>
    %1029 = arith.mulf %1028, %1028 : vector<16x32xf32>
    %1030 = arith.mulf %1028, %1029 : vector<16x32xf32>
    %cst_329 = arith.constant 4.471500e-02 : f32
    %1031 = vector.broadcast %cst_329 : f32 to vector<16x32xf32>
    %1032 = arith.mulf %1031, %1030 : vector<16x32xf32>
    %1033 = arith.addf %1028, %1032 : vector<16x32xf32>
    %cst_330 = arith.constant 0.797884583 : f32
    %1034 = vector.broadcast %cst_330 : f32 to vector<16x32xf32>
    %1035 = arith.mulf %1034, %1033 : vector<16x32xf32>
    %1036 = math.tanh %1035 : vector<16x32xf32>
    %cst_331 = arith.constant 1.000000e+00 : f32
    %1037 = vector.broadcast %cst_331 : f32 to vector<16x32xf32>
    %1038 = arith.addf %1037, %1036 : vector<16x32xf32>
    %cst_332 = arith.constant 5.000000e-01 : f32
    %1039 = vector.broadcast %cst_332 : f32 to vector<16x32xf32>
    %1040 = arith.mulf %1039, %1038 : vector<16x32xf32>
    %1041 = arith.mulf %1028, %1040 : vector<16x32xf32>
    %1042 = arith.addf %1016, %1041 : vector<16x32xf32>
    %cst_333 = arith.constant dense<0.000000e+00> : vector<16xf32>
    %1043 = vector.multi_reduction <add>, %1042, %cst_333 [1] : vector<16x32xf32> to vector<16xf32>
    %1044 = vector.shape_cast %1043 : vector<16xf32> to vector<16x1xf32>
    %cst_334 = arith.constant 3.200000e+01 : f32
    %1045 = vector.broadcast %cst_334 : f32 to vector<16x1xf32>
    %1046 = arith.divf %1044, %1045 : vector<16x1xf32>
    %1047 = arith.mulf %1042, %1042 : vector<16x32xf32>
    %cst_335 = arith.constant dense<0.000000e+00> : vector<16xf32>
    %1048 = vector.multi_reduction <add>, %1047, %cst_335 [1] : vector<16x32xf32> to vector<16xf32>
    %1049 = vector.shape_cast %1048 : vector<16xf32> to vector<16x1xf32>
    %cst_336 = arith.constant 3.200000e+01 : f32
    %1050 = vector.broadcast %cst_336 : f32 to vector<16x1xf32>
    %1051 = arith.divf %1049, %1050 : vector<16x1xf32>
    %1052 = arith.mulf %1046, %1046 : vector<16x1xf32>
    %1053 = arith.subf %1051, %1052 : vector<16x1xf32>
    %1054 = vector.broadcast %1046 : vector<16x1xf32> to vector<16x32xf32>
    %1055 = arith.subf %1042, %1054 : vector<16x32xf32>
    %cst_337 = arith.constant 9.99999974E-6 : f32
    %1056 = vector.broadcast %cst_337 : f32 to vector<16x1xf32>
    %1057 = arith.addf %1053, %1056 : vector<16x1xf32>
    %1058 = math.rsqrt %1057 : vector<16x1xf32>
    %1059 = vector.broadcast %1058 : vector<16x1xf32> to vector<16x32xf32>
    %1060 = arith.mulf %1055, %1059 : vector<16x32xf32>
    %1061 = vector.broadcast %1023 : vector<1x32xf32> to vector<16x32xf32>
    %1062 = arith.mulf %1060, %1061 : vector<16x32xf32>
    %1063 = vector.broadcast %1024 : vector<1x32xf32> to vector<16x32xf32>
    %1064 = arith.addf %1062, %1063 : vector<16x32xf32>
    %c22 = arith.constant 22 : index
    %c0_338 = arith.constant 0 : index
    %c0_339 = arith.constant 0 : index
    %1065 = vector.load %arg4[%c22, %c0_338, %c0_339] : memref<24x32x32xf32, #tpu.memory_space<vmem>>, vector<1x32x32xf32>
    %1066 = vector.shape_cast %1065 : vector<1x32x32xf32> to vector<32x32xf32>
    %1067 = arith.truncf %1066 : vector<32x32xf32> to vector<32x32xbf16>
    %c22_340 = arith.constant 22 : index
    %c0_341 = arith.constant 0 : index
    %c0_342 = arith.constant 0 : index
    %1068 = vector.load %arg5[%c22_340, %c0_341, %c0_342] : memref<24x3x32xf32, #tpu.memory_space<vmem>>, vector<1x3x32xf32>
    %1069 = vector.shape_cast %1068 : vector<1x3x32xf32> to vector<3x32xf32>
    %1070 = vector.extract_strided_slice %1069 {offsets = [0, 0], sizes = [1, 32], strides = [1, 1]} : vector<3x32xf32> to vector<1x32xf32>
    %1071 = vector.extract_strided_slice %1069 {offsets = [1, 0], sizes = [1, 32], strides = [1, 1]} : vector<3x32xf32> to vector<1x32xf32>
    %1072 = vector.extract_strided_slice %1069 {offsets = [2, 0], sizes = [1, 32], strides = [1, 1]} : vector<3x32xf32> to vector<1x32xf32>
    %1073 = arith.truncf %1064 : vector<16x32xf32> to vector<16x32xbf16>
    %cst_343 = arith.constant dense<0.000000e+00> : vector<16x32xf32>
    %1074 = tpu.matmul %1073, %1067, %cst_343 {dimension_numbers = #tpu.dot_dimension_numbers<[1], [0], [0], [1], [0, 0, 1, 1], [], []>} : vector<16x32xbf16>, vector<32x32xbf16>, vector<16x32xf32> -> vector<16x32xf32>
    %1075 = vector.broadcast %1070 : vector<1x32xf32> to vector<16x32xf32>
    %1076 = arith.addf %1074, %1075 : vector<16x32xf32>
    %1077 = arith.mulf %1076, %1076 : vector<16x32xf32>
    %1078 = arith.mulf %1076, %1077 : vector<16x32xf32>
    %cst_344 = arith.constant 4.471500e-02 : f32
    %1079 = vector.broadcast %cst_344 : f32 to vector<16x32xf32>
    %1080 = arith.mulf %1079, %1078 : vector<16x32xf32>
    %1081 = arith.addf %1076, %1080 : vector<16x32xf32>
    %cst_345 = arith.constant 0.797884583 : f32
    %1082 = vector.broadcast %cst_345 : f32 to vector<16x32xf32>
    %1083 = arith.mulf %1082, %1081 : vector<16x32xf32>
    %1084 = math.tanh %1083 : vector<16x32xf32>
    %cst_346 = arith.constant 1.000000e+00 : f32
    %1085 = vector.broadcast %cst_346 : f32 to vector<16x32xf32>
    %1086 = arith.addf %1085, %1084 : vector<16x32xf32>
    %cst_347 = arith.constant 5.000000e-01 : f32
    %1087 = vector.broadcast %cst_347 : f32 to vector<16x32xf32>
    %1088 = arith.mulf %1087, %1086 : vector<16x32xf32>
    %1089 = arith.mulf %1076, %1088 : vector<16x32xf32>
    %1090 = arith.addf %1064, %1089 : vector<16x32xf32>
    %cst_348 = arith.constant dense<0.000000e+00> : vector<16xf32>
    %1091 = vector.multi_reduction <add>, %1090, %cst_348 [1] : vector<16x32xf32> to vector<16xf32>
    %1092 = vector.shape_cast %1091 : vector<16xf32> to vector<16x1xf32>
    %cst_349 = arith.constant 3.200000e+01 : f32
    %1093 = vector.broadcast %cst_349 : f32 to vector<16x1xf32>
    %1094 = arith.divf %1092, %1093 : vector<16x1xf32>
    %1095 = arith.mulf %1090, %1090 : vector<16x32xf32>
    %cst_350 = arith.constant dense<0.000000e+00> : vector<16xf32>
    %1096 = vector.multi_reduction <add>, %1095, %cst_350 [1] : vector<16x32xf32> to vector<16xf32>
    %1097 = vector.shape_cast %1096 : vector<16xf32> to vector<16x1xf32>
    %cst_351 = arith.constant 3.200000e+01 : f32
    %1098 = vector.broadcast %cst_351 : f32 to vector<16x1xf32>
    %1099 = arith.divf %1097, %1098 : vector<16x1xf32>
    %1100 = arith.mulf %1094, %1094 : vector<16x1xf32>
    %1101 = arith.subf %1099, %1100 : vector<16x1xf32>
    %1102 = vector.broadcast %1094 : vector<16x1xf32> to vector<16x32xf32>
    %1103 = arith.subf %1090, %1102 : vector<16x32xf32>
    %cst_352 = arith.constant 9.99999974E-6 : f32
    %1104 = vector.broadcast %cst_352 : f32 to vector<16x1xf32>
    %1105 = arith.addf %1101, %1104 : vector<16x1xf32>
    %1106 = math.rsqrt %1105 : vector<16x1xf32>
    %1107 = vector.broadcast %1106 : vector<16x1xf32> to vector<16x32xf32>
    %1108 = arith.mulf %1103, %1107 : vector<16x32xf32>
    %1109 = vector.broadcast %1071 : vector<1x32xf32> to vector<16x32xf32>
    %1110 = arith.mulf %1108, %1109 : vector<16x32xf32>
    %1111 = vector.broadcast %1072 : vector<1x32xf32> to vector<16x32xf32>
    %1112 = arith.addf %1110, %1111 : vector<16x32xf32>
    %c23 = arith.constant 23 : index
    %c0_353 = arith.constant 0 : index
    %c0_354 = arith.constant 0 : index
    %1113 = vector.load %arg4[%c23, %c0_353, %c0_354] : memref<24x32x32xf32, #tpu.memory_space<vmem>>, vector<1x32x32xf32>
    %1114 = vector.shape_cast %1113 : vector<1x32x32xf32> to vector<32x32xf32>
    %1115 = arith.truncf %1114 : vector<32x32xf32> to vector<32x32xbf16>
    %c23_355 = arith.constant 23 : index
    %c0_356 = arith.constant 0 : index
    %c0_357 = arith.constant 0 : index
    %1116 = vector.load %arg5[%c23_355, %c0_356, %c0_357] : memref<24x3x32xf32, #tpu.memory_space<vmem>>, vector<1x3x32xf32>
    %1117 = vector.shape_cast %1116 : vector<1x3x32xf32> to vector<3x32xf32>
    %1118 = vector.extract_strided_slice %1117 {offsets = [0, 0], sizes = [1, 32], strides = [1, 1]} : vector<3x32xf32> to vector<1x32xf32>
    %1119 = vector.extract_strided_slice %1117 {offsets = [1, 0], sizes = [1, 32], strides = [1, 1]} : vector<3x32xf32> to vector<1x32xf32>
    %1120 = vector.extract_strided_slice %1117 {offsets = [2, 0], sizes = [1, 32], strides = [1, 1]} : vector<3x32xf32> to vector<1x32xf32>
    %1121 = arith.truncf %1112 : vector<16x32xf32> to vector<16x32xbf16>
    %cst_358 = arith.constant dense<0.000000e+00> : vector<16x32xf32>
    %1122 = tpu.matmul %1121, %1115, %cst_358 {dimension_numbers = #tpu.dot_dimension_numbers<[1], [0], [0], [1], [0, 0, 1, 1], [], []>} : vector<16x32xbf16>, vector<32x32xbf16>, vector<16x32xf32> -> vector<16x32xf32>
    %1123 = vector.broadcast %1118 : vector<1x32xf32> to vector<16x32xf32>
    %1124 = arith.addf %1122, %1123 : vector<16x32xf32>
    %1125 = arith.mulf %1124, %1124 : vector<16x32xf32>
    %1126 = arith.mulf %1124, %1125 : vector<16x32xf32>
    %cst_359 = arith.constant 4.471500e-02 : f32
    %1127 = vector.broadcast %cst_359 : f32 to vector<16x32xf32>
    %1128 = arith.mulf %1127, %1126 : vector<16x32xf32>
    %1129 = arith.addf %1124, %1128 : vector<16x32xf32>
    %cst_360 = arith.constant 0.797884583 : f32
    %1130 = vector.broadcast %cst_360 : f32 to vector<16x32xf32>
    %1131 = arith.mulf %1130, %1129 : vector<16x32xf32>
    %1132 = math.tanh %1131 : vector<16x32xf32>
    %cst_361 = arith.constant 1.000000e+00 : f32
    %1133 = vector.broadcast %cst_361 : f32 to vector<16x32xf32>
    %1134 = arith.addf %1133, %1132 : vector<16x32xf32>
    %cst_362 = arith.constant 5.000000e-01 : f32
    %1135 = vector.broadcast %cst_362 : f32 to vector<16x32xf32>
    %1136 = arith.mulf %1135, %1134 : vector<16x32xf32>
    %1137 = arith.mulf %1124, %1136 : vector<16x32xf32>
    %1138 = arith.addf %1112, %1137 : vector<16x32xf32>
    %cst_363 = arith.constant dense<0.000000e+00> : vector<16xf32>
    %1139 = vector.multi_reduction <add>, %1138, %cst_363 [1] : vector<16x32xf32> to vector<16xf32>
    %1140 = vector.shape_cast %1139 : vector<16xf32> to vector<16x1xf32>
    %cst_364 = arith.constant 3.200000e+01 : f32
    %1141 = vector.broadcast %cst_364 : f32 to vector<16x1xf32>
    %1142 = arith.divf %1140, %1141 : vector<16x1xf32>
    %1143 = arith.mulf %1138, %1138 : vector<16x32xf32>
    %cst_365 = arith.constant dense<0.000000e+00> : vector<16xf32>
    %1144 = vector.multi_reduction <add>, %1143, %cst_365 [1] : vector<16x32xf32> to vector<16xf32>
    %1145 = vector.shape_cast %1144 : vector<16xf32> to vector<16x1xf32>
    %cst_366 = arith.constant 3.200000e+01 : f32
    %1146 = vector.broadcast %cst_366 : f32 to vector<16x1xf32>
    %1147 = arith.divf %1145, %1146 : vector<16x1xf32>
    %1148 = arith.mulf %1142, %1142 : vector<16x1xf32>
    %1149 = arith.subf %1147, %1148 : vector<16x1xf32>
    %1150 = vector.broadcast %1142 : vector<16x1xf32> to vector<16x32xf32>
    %1151 = arith.subf %1138, %1150 : vector<16x32xf32>
    %cst_367 = arith.constant 9.99999974E-6 : f32
    %1152 = vector.broadcast %cst_367 : f32 to vector<16x1xf32>
    %1153 = arith.addf %1149, %1152 : vector<16x1xf32>
    %1154 = math.rsqrt %1153 : vector<16x1xf32>
    %1155 = vector.broadcast %1154 : vector<16x1xf32> to vector<16x32xf32>
    %1156 = arith.mulf %1151, %1155 : vector<16x32xf32>
    %1157 = vector.broadcast %1119 : vector<1x32xf32> to vector<16x32xf32>
    %1158 = arith.mulf %1156, %1157 : vector<16x32xf32>
    %1159 = vector.broadcast %1120 : vector<1x32xf32> to vector<16x32xf32>
    %1160 = arith.addf %1158, %1159 : vector<16x32xf32>
    %1161 = tpu.concatenate %296, %584, %872, %1160 in 0 : vector<16x32xf32>, vector<16x32xf32>, vector<16x32xf32>, vector<16x32xf32> -> vector<64x32xf32>
    %1162 = arith.truncf %1161 : vector<64x32xf32> to vector<64x32xbf16>
    %c0_368 = arith.constant 0 : index
    %c0_369 = arith.constant 0 : index
    %1163 = vector.load %arg6[%c0_368, %c0_369] : memref<32x256xf32, #tpu.memory_space<vmem>>, vector<32x256xf32>
    %1164 = arith.truncf %1163 : vector<32x256xf32> to vector<32x256xbf16>
    %cst_370 = arith.constant dense<0.000000e+00> : vector<64x256xf32>
    %1165 = tpu.matmul %1162, %1164, %cst_370 {dimension_numbers = #tpu.dot_dimension_numbers<[1], [0], [0], [1], [0, 0, 1, 1], [], []>} : vector<64x32xbf16>, vector<32x256xbf16>, vector<64x256xf32> -> vector<64x256xf32>
    %c0_371 = arith.constant 0 : index
    %c0_372 = arith.constant 0 : index
    %1166 = vector.load %arg7[%c0_371, %c0_372] : memref<1x256xf32, #tpu.memory_space<vmem>>, vector<1x256xf32>
    %1167 = vector.broadcast %1166 : vector<1x256xf32> to vector<64x256xf32>
    %1168 = arith.addf %1165, %1167 : vector<64x256xf32>
    %c0_373 = arith.constant 0 : index
    %c0_374 = arith.constant 0 : index
    %1169 = vector.load %arg8[%c0_373, %c0_374] : memref<64x256xf32, #tpu.memory_space<vmem>>, vector<64x256xf32>
    tpu.vector_store %arg8[%c0_373, %c0_374], %1168 {strides = array<i32>} : memref<64x256xf32, #tpu.memory_space<vmem>>, vector<64x256xf32>,
    return
  }
}

</mosaic_0001>

<llo_original>
// kernel: forward.1
$region0: #{forward.1}
  #allocation0 [shape = 'u32[]', space=smem, size = 0x4, offset = 0x4, fixed_abs, tag = 'smem constant byte address 0x4 - core index']
  #allocation1 [shape = 'u32[144,128]{1,0:T(1,128)}', space=vmem, size = 0x12000, scoped, tag = 'internal scratch']
  %s0 = inlined_call_operand.vmem [shape: f32[16,8], index: 0, kind: input, shape index: {}]
  %s1 = inlined_call_operand.vmem [shape: f32[16,1], index: 1, kind: input, shape index: {}]
  %s2 = inlined_call_operand.vmem [shape: f32[8,32], index: 2, kind: input, shape index: {}]
  %s3 = inlined_call_operand.vmem [shape: f32[1,32], index: 3, kind: input, shape index: {}]
  %s4 = inlined_call_operand.hbm [shape: f32[24,32,32], index: 4, kind: input, shape index: {}]
  %s5 = inlined_call_operand.vmem [shape: f32[24,3,32], index: 5, kind: input, shape index: {}]
  %s6 = inlined_call_operand.vmem [shape: f32[32,256], index: 6, kind: input, shape index: {}]
  %s7 = inlined_call_operand.vmem [shape: f32[1,256], index: 7, kind: input, shape index: {}]
  %s8 = inlined_call_operand.vmem [shape: f32[64,256], index: 8, kind: output, shape index: {}]
  %s9 = sld [smem:[#allocation0]]
  $region46: #{forward.1} parent=0
    _
  %s11 = ssub.s32 1, %s9
  %s12 = scalar_select 0, %s11, %s9
  $region1: #{forward.1} parent=0
    #allocation2 [shape = 'u8[393216]{0}', space=vmem, size = 0x60000, scoped, tag = 'input window, operand 4, single buffered']
    #allocation3 [shape = 's32[1]{0}', space=sflag, size = 0x4, scoped, tag = 'scoped memory for forward.1']
    %13 = vsyncpa [#allocation3], 0
    // Predicated region
    $region2: #{forward.1} parent=1 // pred_check
      _
    $region3: #{forward.1} parent=1 // pred_check_branch
      %15 = sbr.rel (0) target = $region5
    $region4: #{forward.1} parent=1 // pred_region
      _
    $region5: #{forward.1} parent=1 // pred_fallthru
      _
    // Predicated region
    $region6: #{forward.1} parent=1 // pred_check
      _
    $region7: #{forward.1} parent=1 // pred_check_branch
      %17 = sbr.rel (0) target = $region9
    $region8: #{forward.1} parent=1 // pred_region
      _
    $region9: #{forward.1} parent=1 // pred_fallthru
      _
    // Predicated region
    $region10: #{forward.1} parent=1 // pred_check
      _
    $region11: #{forward.1} parent=1 // pred_check_branch
      %19 = sbr.rel (0) target = $region13
    $region12: #{forward.1} parent=1 // pred_region
      _
    $region13: #{forward.1} parent=1 // pred_fallthru
      _
    // Predicated region
    $region14: #{forward.1} parent=1 // pred_check
      _
    $region15: #{forward.1} parent=1 // pred_check_branch
      %21 = sbr.rel (0) target = $region17
    $region16: #{forward.1} parent=1 // pred_region
      _
    $region17: #{forward.1} parent=1 // pred_fallthru
      _
    // Predicated region
    $region18: #{forward.1} parent=1 // pred_check
      _
    $region19: #{forward.1} parent=1 // pred_check_branch
      %23 = sbr.rel (0) target = $region21
    $region20: #{forward.1} parent=1 // pred_region
      %s25 = ssub.s32 12288, 12288
      %26 = vsyncadd [#allocation3], %s25
      %s27 = sshll.u32 [#allocation2], 4
      %s28 = int_to_ptr.vmem [resolvable:$true] %s27
      %33 = dma.hbm_to_vmem [thread:$0]  %s4, 12288, %s28, [#allocation3], 128, 128, 8
    $region21: #{forward.1} parent=1 // pred_fallthru
      _
    // Predicated region
    $region22: #{forward.1} parent=1 // pred_check
      _
    $region23: #{forward.1} parent=1 // pred_check_branch
      %35 = sbr.rel (0) target = $region25
    $region24: #{forward.1} parent=1 // pred_region
      _
    $region25: #{forward.1} parent=1 // pred_fallthru
      _
    // Predicated region
    $region26: #{forward.1} parent=1 // pred_check
      _
    $region27: #{forward.1} parent=1 // pred_check_branch
      %37 = sbr.rel (0) target = $region29
    $region28: #{forward.1} parent=1 // pred_region
      _
    $region29: #{forward.1} parent=1 // pred_fallthru
      _
    // Predicated region
    $region30: #{forward.1} parent=1 // pred_check
      _
    $region31: #{forward.1} parent=1 // pred_check_branch
      %39 = sbr.rel (0) target = $region33
    $region32: #{forward.1} parent=1 // pred_region
      _
    $region33: #{forward.1} parent=1 // pred_fallthru
      _
    // Predicated region
    $region34: #{forward.1} parent=1 // pred_check
      _
    $region35: #{forward.1} parent=1 // pred_check_branch
      %41 = sbr.rel (0) target = $region37
    $region36: #{forward.1} parent=1 // pred_region
      %42 = dma.done [#allocation3], 12288
    $region37: #{forward.1} parent=1 // pred_fallthru
      _
    %v44 = vld [vmem:[%s0] sm:$0xff]
    %v45 = vld [vmem:[%s0 + $0x8] sm:$0xff]
    %v46 = vld [vmem:[%s2] sm:$0xff]
    %v47 = vld [vmem:[%s3] sm:$0x1]
    %v49 = vlaneseq
    %v50 = vshrl.u32 %v49, 7
    %v51 = vsub.s32 0, %v50
    %v52 = vrot.slane %v47, %v51
    %vm54 = vcmask 64512
    %v56 = vsel %vm54, %v44, 0
    %v59 = vsel %vm54, %v45, 0
    %61 = vmatprep.subr.mxu0 0.0
    %62 = vmatpush1.msra.mxu0 %v46
    %63 = vmatprep.subr.mxu0 0.0
    %64 = vmatpush1.msra.mxu0 0.0
    %65 = vmatprep.subr.mxu0 0.0
    %66 = vmatpush1.msra.mxu0 0.0
    %67 = vmatprep.subr.mxu0 0.0
    %68 = vmatpush1.msra.mxu0 0.0
    %69 = vmatprep.subr.mxu0 0.0
    %70 = vmatpush1.msra.mxu0 0.0
    %71 = vmatprep.subr.mxu0 0.0
    %72 = vmatpush1.msra.mxu0 0.0
    %73 = vmatprep.subr.mxu0 0.0
    %74 = vmatpush1.msra.mxu0 0.0
    %75 = vmatprep.subr.mxu0 0.0
    %76 = vmatpush1.msra.mxu0 0.0
    %77 = vmatprep.subr.mxu0 0.0
    %78 = vmatpush1.msra.mxu0 0.0
    %79 = vmatprep.subr.mxu0 0.0
    %80 = vmatpush1.msra.mxu0 0.0
    %81 = vmatprep.subr.mxu0 0.0
    %82 = vmatpush1.msra.mxu0 0.0
    %83 = vmatprep.subr.mxu0 0.0
    %84 = vmatpush1.msra.mxu0 0.0
    %85 = vmatprep.subr.mxu0 0.0
    %86 = vmatpush1.msra.mxu0 0.0
    %87 = vmatprep.subr.mxu0 0.0
    %88 = vmatpush1.msra.mxu0 0.0
    %89 = vmatprep.subr.mxu0 0.0
    %90 = vmatpush1.msra.mxu0 0.0
    %91 = vmatprep.subr.mxu0 0.0
    %92 = vmatpush1.msra.mxu0 0.0
    %93 = vmatprep.subr.mxu0 0.0
    %94 = vmatpush1.msra.mxu0 0.0
    %95 = vmatprep.subr.mxu0 0.0
    %96 = vmatpush1.msra.mxu0 0.0
    %97 = vmatprep.subr.mxu0 0.0
    %98 = vmatpush1.msra.mxu0 0.0
    %99 = vmatprep.subr.mxu0 0.0
    %100 = vmatpush1.msra.mxu0 0.0
    %101 = vmatprep.subr.mxu0 0.0
    %102 = vmatpush1.msra.mxu0 0.0
    %103 = vmatprep.subr.mxu0 0.0
    %104 = vmatpush1.msra.mxu0 0.0
    %105 = vmatprep.subr.mxu0 0.0
    %106 = vmatpush1.msra.mxu0 0.0
    %107 = vmatprep.subr.mxu0 0.0
    %108 = vmatpush1.msra.mxu0 0.0
    %109 = vmatprep.subr.mxu0 0.0
    %110 = vmatpush1.msra.mxu0 0.0
    %111 = vmatprep.subr.mxu0 0.0
    %112 = vmatpush1.msra.mxu0 0.0
    %113 = vmatprep.subr.mxu0 0.0
    %114 = vmatpush1.msra.mxu0 0.0
    %115 = vmatprep.subr.mxu0 0.0
    %116 = vmatpush1.msra.mxu0 0.0
    %117 = vmatprep.subr.mxu0 0.0
    %118 = vmatpush1.msra.mxu0 0.0
    %119 = vmatprep.subr.mxu0 0.0
    %120 = vmatpush1.msra.mxu0 0.0
    %121 = vmatprep.subr.mxu0 0.0
    %122 = vmatpush1.msra.mxu0 0.0
    %123 = vmatprep.subr.mxu0 0.0
    %124 = vmatpush1.msra.mxu0 0.0
    %125 = vmatprep.mubr.f32.mxu0 0.0
    %126 = vmatmul.mubr.f32.gmra.mrb[0].mxu0 %v56
    %v127 = vpop.f32.mrb[0].mxu0
    %v128 = vadd.f32 %v52, %v127
    %v129 = vpop.f32.mrb[0].mxu0
    %130 = vmatprep.mubr.f32.mxu0 0.0
    %131 = vmatmul.mubr.f32.gmra.mrb[0].mxu0 %v59
    %v132 = vpop.f32.mrb[0].mxu0
    %v133 = vadd.f32 %v52, %v132
    %v134 = vpop.f32.mrb[0].mxu0
    %135 = vdwg.mxu0
    %v136 = vld [vmem:[%s1] sm:$0xff]
    %v137 = vld [vmem:[%s1 + $0x8] sm:$0xff]
    %139 = vset.pattern.permute.xlu0 0
    %140 = vperm.xlu0 %139, %v136
    %v141 = vpop.permute.xlu0 %140
    %144 = vset.pattern.permute.xlu0 0
    %145 = vperm.xlu0 %144, %v137
    %v146 = vpop.permute.xlu0 %145
    %v148 = vmul.f32 %v128, %v141
    %v149 = vmul.f32 %v133, %v146
    %v150 = vld [vmem:[#allocation2] sm:$0xff]
    %v151 = vld [vmem:[#allocation2 + $0x8] sm:$0xff]
    %v152 = vld [vmem:[#allocation2 + $0x10] sm:$0xff]
    %v153 = vld [vmem:[#allocation2 + $0x18] sm:$0xff]
    %v154 = vpack.c.bf16 %v151, %v150
    %v155 = vpack.c.bf16 %v153, %v152
    %v156 = vld [vmem:[%s5] sm:$0x7]
    %v157 = vpack.c.bf16 %v149, %v148
    %v158 = vlaneseq
    %v159 = vshrl.u32 %v158, 7
    %v160 = vsub.s32 0, %v159
    %v161 = vrot.slane %v156, %v160
    %vm162 = vcmask 261120
    %v164 = vsel %vm162, %v157, 0
    %166 = vmatprep.subr.bf16.mxu0 0
    %167 = vmatpush1.bf16.msra.mxu0 %v154
    %168 = vmatprep.subr.bf16.mxu0 0
    %169 = vmatpush1.bf16.msra.mxu0 %v155
    %170 = vmatprep.subr.bf16.mxu0 0
    %171 = vmatpush1.bf16.msra.mxu0 0
    %172 = vmatprep.subr.bf16.mxu0 0
    %173 = vmatpush1.bf16.msra.mxu0 0
    %174 = vmatprep.subr.bf16.mxu0 0
    %175 = vmatpush1.bf16.msra.mxu0 0
    %176 = vmatprep.subr.bf16.mxu0 0
    %177 = vmatpush1.bf16.msra.mxu0 0
    %178 = vmatprep.subr.bf16.mxu0 0
    %179 = vmatpush1.bf16.msra.mxu0 0
    %180 = vmatprep.subr.bf16.mxu0 0
    %181 = vmatpush1.bf16.msra.mxu0 0
    %182 = vmatprep.subr.bf16.mxu0 0
    %183 = vmatpush1.bf16.msra.mxu0 0
    %184 = vmatprep.subr.bf16.mxu0 0
    %185 = vmatpush1.bf16.msra.mxu0 0
    %186 = vmatprep.subr.bf16.mxu0 0
    %187 = vmatpush1.bf16.msra.mxu0 0
    %188 = vmatprep.subr.bf16.mxu0 0
    %189 = vmatpush1.bf16.msra.mxu0 0
    %190 = vmatprep.subr.bf16.mxu0 0
    %191 = vmatpush1.bf16.msra.mxu0 0
    %192 = vmatprep.subr.bf16.mxu0 0
    %193 = vmatpush1.bf16.msra.mxu0 0
    %194 = vmatprep.subr.bf16.mxu0 0
    %195 = vmatpush1.bf16.msra.mxu0 0
    %196 = vmatprep.subr.bf16.mxu0 0
    %197 = vmatpush1.bf16.msra.mxu0 0
    %198 = vmatprep.mubr.bf16.mxu0 0
    %199 = vmatmul.mubr.bf16.gmra.mrb[0].mxu0 %v164
    %v200 = vpop.f32.mrb[0].mxu0
    %v201 = vadd.f32 %v161, %v200
    %v202 = vpop.f32.mrb[0].mxu0
    %v203 = vpop.f32.mrb[0].mxu0
    %v204 = vadd.f32 %v161, %v203
    %v205 = vpop.f32.mrb[0].mxu0
    %206 = vdwg.mxu0
    %v207 = vmul.f32 %v201, %v201
    %v208 = vmul.f32 %v204, %v204
    %v209 = vmul.f32 %v201, %v207
    %v210 = vmul.f32 %v204, %v208
    %v211 = vmul.f32 %v209, 0.044715
    %v212 = vmul.f32 %v210, 0.044715
    %v213 = vadd.f32 %v201, %v211
    %v214 = vadd.f32 %v204, %v212
    %v215 = vmul.f32 %v213, 0.7978846
    %v216 = vmul.f32 %v214, 0.7978846
    %v217 = vtanh.pop %v215
    %v218 = vtanh.pop %v216
    %v219 = vadd.f32 %v217, 1.0
    %v220 = vadd.f32 %v218, 1.0
    %v221 = vmul.f32 %v219, 0.5
    %v222 = vmul.f32 %v220, 0.5
    %v223 = vmul.f32 %v201, %v221
    %v224 = vmul.f32 %v204, %v222
    %v225 = vadd.f32 %v148, %v223
    %v226 = vadd.f32 %v149, %v224
    %v227 = vsel %vm162, %v225, 0.0
    %228 = vadd.xlane.f32.xlu0 %v227
    %v229 = vpop.xlane.xlu0 %228
    %v230 = vsel %vm162, %v226, 0.0
    %231 = vadd.xlane.f32.xlu0 %v230
    %v232 = vpop.xlane.xlu0 %231
    %v233 = vrcp.pop 32.0
    %v234 = vmul.f32 %v229, %v233
    %v235 = vmul.f32 %v232, %v233
    %v236 = vmul.f32 %v225, %v225
    %v237 = vmul.f32 %v226, %v226
    %v238 = vsel %vm162, %v236, 0.0
    %239 = vadd.xlane.f32.xlu0 %v238
    %v240 = vpop.xlane.xlu0 %239
    %v241 = vsel %vm162, %v237, 0.0
    %242 = vadd.xlane.f32.xlu0 %v241
    %v243 = vpop.xlane.xlu0 %242
    %v244 = vmul.f32 %v240, %v233
    %v245 = vmul.f32 %v243, %v233
    %v246 = vmul.f32 %v234, %v234
    %v247 = vmul.f32 %v235, %v235
    %v248 = vsub.f32 %v244, %v246
    %v249 = vsub.f32 %v245, %v247
    %v250 = vsub.f32 %v225, %v234
    %v251 = vsub.f32 %v226, %v235
    %v252 = vadd.f32 %v248, 1e-05
    %v253 = vadd.f32 %v249, 1e-05
    %v254 = vrsqrt.pop %v252
    %v255 = vrsqrt.pop %v253
    %v256 = vmul.f32 %v250, %v254
    %v257 = vmul.f32 %v251, %v255
    %v258 = vlaneseq
    %v259 = vshrl.u32 %v258, 7
    %v260 = vsub.s32 1, %v259
    %v261 = vrot.slane %v156, %v260
    %v262 = vmul.f32 %v256, %v261
    %v263 = vmul.f32 %v257, %v261
    %v264 = vlaneseq
    %v265 = vshrl.u32 %v264, 7
    %v266 = vsub.s32 2, %v265
    %v267 = vrot.slane %v156, %v266
    %v268 = vadd.f32 %v262, %v267
    %v269 = vadd.f32 %v263, %v267
    %s270 = scalar_lea.vmem [#allocation2], 32
    %v271 = vld [vmem:[%s270] sm:$0xff]
    %v272 = vld [vmem:[%s270 + $0x8] sm:$0xff]
    %v273 = vld [vmem:[%s270 + $0x10] sm:$0xff]
    %v274 = vld [vmem:[%s270 + $0x18] sm:$0xff]
    %v275 = vpack.c.bf16 %v272, %v271
    %v276 = vpack.c.bf16 %v274, %v273
    %s277 = scalar_lea.vmem %s5, 4
    %v278 = vld [vmem:[%s277] sm:$0x7]
    %v279 = vpack.c.bf16 %v269, %v268
    %v280 = vlaneseq
    %v281 = vshrl.u32 %v280, 7
    %v282 = vsub.s32 0, %v281
    %v283 = vrot.slane %v278, %v282
    %v285 = vsel %vm162, %v279, 0
    %287 = vmatprep.subr.bf16.mxu0 0
    %288 = vmatpush1.bf16.msra.mxu0 %v275
    %289 = vmatprep.subr.bf16.mxu0 0
    %290 = vmatpush1.bf16.msra.mxu0 %v276
    %291 = vmatprep.subr.bf16.mxu0 0
    %292 = vmatpush1.bf16.msra.mxu0 0
    %293 = vmatprep.subr.bf16.mxu0 0
    %294 = vmatpush1.bf16.msra.mxu0 0
    %295 = vmatprep.subr.bf16.mxu0 0
    %296 = vmatpush1.bf16.msra.mxu0 0
    %297 = vmatprep.subr.bf16.mxu0 0
    %298 = vmatpush1.bf16.msra.mxu0 0
    %299 = vmatprep.subr.bf16.mxu0 0
    %300 = vmatpush1.bf16.msra.mxu0 0
    %301 = vmatprep.subr.bf16.mxu0 0
    %302 = vmatpush1.bf16.msra.mxu0 0
    %303 = vmatprep.subr.bf16.mxu0 0
    %304 = vmatpush1.bf16.msra.mxu0 0
    %305 = vmatprep.subr.bf16.mxu0 0
    %306 = vmatpush1.bf16.msra.mxu0 0
    %307 = vmatprep.subr.bf16.mxu0 0
    %308 = vmatpush1.bf16.msra.mxu0 0
    %309 = vmatprep.subr.bf16.mxu0 0
    %310 = vmatpush1.bf16.msra.mxu0 0
    %311 = vmatprep.subr.bf16.mxu0 0
    %312 = vmatpush1.bf16.msra.mxu0 0
    %313 = vmatprep.subr.bf16.mxu0 0
    %314 = vmatpush1.bf16.msra.mxu0 0
    %315 = vmatprep.subr.bf16.mxu0 0
    %316 = vmatpush1.bf16.msra.mxu0 0
    %317 = vmatprep.subr.bf16.mxu0 0
    %318 = vmatpush1.bf16.msra.mxu0 0
    %319 = vmatprep.mubr.bf16.mxu0 0
    %320 = vmatmul.mubr.bf16.gmra.mrb[0].mxu0 %v285
    %v321 = vpop.f32.mrb[0].mxu0
    %v322 = vadd.f32 %v283, %v321
    %v323 = vpop.f32.mrb[0].mxu0
    %v324 = vpop.f32.mrb[0].mxu0
    %v325 = vadd.f32 %v283, %v324
    %v326 = vpop.f32.mrb[0].mxu0
    %327 = vdwg.mxu0
    %v328 = vmul.f32 %v322, %v322
    %v329 = vmul.f32 %v325, %v325
    %v330 = vmul.f32 %v322, %v328
    %v331 = vmul.f32 %v325, %v329
    %v332 = vmul.f32 %v330, 0.044715
    %v333 = vmul.f32 %v331, 0.044715
    %v334 = vadd.f32 %v322, %v332
    %v335 = vadd.f32 %v325, %v333
    %v336 = vmul.f32 %v334, 0.7978846
    %v337 = vmul.f32 %v335, 0.7978846
    %v338 = vtanh.pop %v336
    %v339 = vtanh.pop %v337
    %v340 = vadd.f32 %v338, 1.0
    %v341 = vadd.f32 %v339, 1.0
    %v342 = vmul.f32 %v340, 0.5
    %v343 = vmul.f32 %v341, 0.5
    %v344 = vmul.f32 %v322, %v342
    %v345 = vmul.f32 %v325, %v343
    %v346 = vadd.f32 %v268, %v344
    %v347 = vadd.f32 %v269, %v345
    %v348 = vsel %vm162, %v346, 0.0
    %349 = vadd.xlane.f32.xlu0 %v348
    %v350 = vpop.xlane.xlu0 %349
    %v351 = vsel %vm162, %v347, 0.0
    %352 = vadd.xlane.f32.xlu0 %v351
    %v353 = vpop.xlane.xlu0 %352
    %v354 = vmul.f32 %v350, %v233
    %v355 = vmul.f32 %v353, %v233
    %v356 = vmul.f32 %v346, %v346
    %v357 = vmul.f32 %v347, %v347
    %v358 = vsel %vm162, %v356, 0.0
    %359 = vadd.xlane.f32.xlu0 %v358
    %v360 = vpop.xlane.xlu0 %359
    %v361 = vsel %vm162, %v357, 0.0
    %362 = vadd.xlane.f32.xlu0 %v361
    %v363 = vpop.xlane.xlu0 %362
    %v364 = vmul.f32 %v360, %v233
    %v365 = vmul.f32 %v363, %v233
    %v366 = vmul.f32 %v354, %v354
    %v367 = vmul.f32 %v355, %v355
    %v368 = vsub.f32 %v364, %v366
    %v369 = vsub.f32 %v365, %v367
    %v370 = vsub.f32 %v346, %v354
    %v371 = vsub.f32 %v347, %v355
    %v372 = vadd.f32 %v368, 1e-05
    %v373 = vadd.f32 %v369, 1e-05
    %v374 = vrsqrt.pop %v372
    %v375 = vrsqrt.pop %v373
    %v376 = vmul.f32 %v370, %v374
    %v377 = vmul.f32 %v371, %v375
    %v378 = vlaneseq
    %v379 = vshrl.u32 %v378, 7
    %v380 = vsub.s32 1, %v379
    %v381 = vrot.slane %v278, %v380
    %v382 = vmul.f32 %v376, %v381
    %v383 = vmul.f32 %v377, %v381
    %v384 = vlaneseq
    %v385 = vshrl.u32 %v384, 7
    %v386 = vsub.s32 2, %v385
    %v387 = vrot.slane %v278, %v386
    %v388 = vadd.f32 %v382, %v387
    %v389 = vadd.f32 %v383, %v387
    %s390 = scalar_lea.vmem [#allocation2], 64
    %v391 = vld [vmem:[%s390] sm:$0xff]
    %v392 = vld [vmem:[%s390 + $0x8] sm:$0xff]
    %v393 = vld [vmem:[%s390 + $0x10] sm:$0xff]
    %v394 = vld [vmem:[%s390 + $0x18] sm:$0xff]
    %v395 = vpack.c.bf16 %v392, %v391
    %v396 = vpack.c.bf16 %v394, %v393
    %s397 = scalar_lea.vmem %s5, 8
    %v398 = vld [vmem:[%s397] sm:$0x7]
    %v399 = vpack.c.bf16 %v389, %v388
    %v400 = vlaneseq
    %v401 = vshrl.u32 %v400, 7
    %v402 = vsub.s32 0, %v401
    %v403 = vrot.slane %v398, %v402
    %v405 = vsel %vm162, %v399, 0
    %407 = vmatprep.subr.bf16.mxu0 0
    %408 = vmatpush1.bf16.msra.mxu0 %v395
    %409 = vmatprep.subr.bf16.mxu0 0
    %410 = vmatpush1.bf16.msra.mxu0 %v396
    %411 = vmatprep.subr.bf16.mxu0 0
    %412 = vmatpush1.bf16.msra.mxu0 0
    %413 = vmatprep.subr.bf16.mxu0 0
    %414 = vmatpush1.bf16.msra.mxu0 0
    %415 = vmatprep.subr.bf16.mxu0 0
    %416 = vmatpush1.bf16.msra.mxu0 0
    %417 = vmatprep.subr.bf16.mxu0 0
    %418 = vmatpush1.bf16.msra.mxu0 0
    %419 = vmatprep.subr.bf16.mxu0 0
    %420 = vmatpush1.bf16.msra.mxu0 0
    %421 = vmatprep.subr.bf16.mxu0 0
    %422 = vmatpush1.bf16.msra.mxu0 0
    %423 = vmatprep.subr.bf16.mxu0 0
    %424 = vmatpush1.bf16.msra.mxu0 0
    %425 = vmatprep.subr.bf16.mxu0 0
    %426 = vmatpush1.bf16.msra.mxu0 0
    %427 = vmatprep.subr.bf16.mxu0 0
    %428 = vmatpush1.bf16.msra.mxu0 0
    %429 = vmatprep.subr.bf16.mxu0 0
    %430 = vmatpush1.bf16.msra.mxu0 0
    %431 = vmatprep.subr.bf16.mxu0 0
    %432 = vmatpush1.bf16.msra.mxu0 0
    %433 = vmatprep.subr.bf16.mxu0 0
    %434 = vmatpush1.bf16.msra.mxu0 0
    %435 = vmatprep.subr.bf16.mxu0 0
    %436 = vmatpush1.bf16.msra.mxu0 0
    %437 = vmatprep.subr.bf16.mxu0 0
    %438 = vmatpush1.bf16.msra.mxu0 0
    %439 = vmatprep.mubr.bf16.mxu0 0
    %440 = vmatmul.mubr.bf16.gmra.mrb[0].mxu0 %v405
    %v441 = vpop.f32.mrb[0].mxu0
    %v442 = vadd.f32 %v403, %v441
    %v443 = vpop.f32.mrb[0].mxu0
    %v444 = vpop.f32.mrb[0].mxu0
    %v445 = vadd.f32 %v403, %v444
    %v446 = vpop.f32.mrb[0].mxu0
    %447 = vdwg.mxu0
    %v448 = vmul.f32 %v442, %v442
    %v449 = vmul.f32 %v445, %v445
    %v450 = vmul.f32 %v442, %v448
    %v451 = vmul.f32 %v445, %v449
    %v452 = vmul.f32 %v450, 0.044715
    %v453 = vmul.f32 %v451, 0.044715
    %v454 = vadd.f32 %v442, %v452
    %v455 = vadd.f32 %v445, %v453
    %v456 = vmul.f32 %v454, 0.7978846
    %v457 = vmul.f32 %v455, 0.7978846
    %v458 = vtanh.pop %v456
    %v459 = vtanh.pop %v457
    %v460 = vadd.f32 %v458, 1.0
    %v461 = vadd.f32 %v459, 1.0
    %v462 = vmul.f32 %v460, 0.5
    %v463 = vmul.f32 %v461, 0.5
    %v464 = vmul.f32 %v442, %v462
    %v465 = vmul.f32 %v445, %v463
    %v466 = vadd.f32 %v388, %v464
    %v467 = vadd.f32 %v389, %v465
    %v468 = vsel %vm162, %v466, 0.0
    %469 = vadd.xlane.f32.xlu0 %v468
    %v470 = vpop.xlane.xlu0 %469
    %v471 = vsel %vm162, %v467, 0.0
    %472 = vadd.xlane.f32.xlu0 %v471
    %v473 = vpop.xlane.xlu0 %472
    %v474 = vmul.f32 %v470, %v233
    %v475 = vmul.f32 %v473, %v233
    %v476 = vmul.f32 %v466, %v466
    %v477 = vmul.f32 %v467, %v467
    %v478 = vsel %vm162, %v476, 0.0
    %479 = vadd.xlane.f32.xlu0 %v478
    %v480 = vpop.xlane.xlu0 %479
    %v481 = vsel %vm162, %v477, 0.0
    %482 = vadd.xlane.f32.xlu0 %v481
    %v483 = vpop.xlane.xlu0 %482
    %v484 = vmul.f32 %v480, %v233
    %v485 = vmul.f32 %v483, %v233
    %v486 = vmul.f32 %v474, %v474
    %v487 = vmul.f32 %v475, %v475
    %v488 = vsub.f32 %v484, %v486
    %v489 = vsub.f32 %v485, %v487
    %v490 = vsub.f32 %v466, %v474
    %v491 = vsub.f32 %v467, %v475
    %v492 = vadd.f32 %v488, 1e-05
    %v493 = vadd.f32 %v489, 1e-05
    %v494 = vrsqrt.pop %v492
    %v495 = vrsqrt.pop %v493
    %v496 = vmul.f32 %v490, %v494
    %v497 = vmul.f32 %v491, %v495
    %v498 = vlaneseq
    %v499 = vshrl.u32 %v498, 7
    %v500 = vsub.s32 1, %v499
    %v501 = vrot.slane %v398, %v500
    %v502 = vmul.f32 %v496, %v501
    %v503 = vmul.f32 %v497, %v501
    %v504 = vlaneseq
    %v505 = vshrl.u32 %v504, 7
    %v506 = vsub.s32 2, %v505
    %v507 = vrot.slane %v398, %v506
    %v508 = vadd.f32 %v502, %v507
    %v509 = vadd.f32 %v503, %v507
    %s510 = scalar_lea.vmem [#allocation2], 96
    %v511 = vld [vmem:[%s510] sm:$0xff]
    %v512 = vld [vmem:[%s510 + $0x8] sm:$0xff]
    %v513 = vld [vmem:[%s510 + $0x10] sm:$0xff]
    %v514 = vld [vmem:[%s510 + $0x18] sm:$0xff]
    %v515 = vpack.c.bf16 %v512, %v511
    %v516 = vpack.c.bf16 %v514, %v513
    %s517 = scalar_lea.vmem %s5, 12
    %v518 = vld [vmem:[%s517] sm:$0x7]
    %v519 = vpack.c.bf16 %v509, %v508
    %v520 = vlaneseq
    %v521 = vshrl.u32 %v520, 7
    %v522 = vsub.s32 0, %v521
    %v523 = vrot.slane %v518, %v522
    %v525 = vsel %vm162, %v519, 0
    %527 = vmatprep.subr.bf16.mxu0 0
    %528 = vmatpush1.bf16.msra.mxu0 %v515
    %529 = vmatprep.subr.bf16.mxu0 0
    %530 = vmatpush1.bf16.msra.mxu0 %v516
    %531 = vmatprep.subr.bf16.mxu0 0
    %532 = vmatpush1.bf16.msra.mxu0 0
    %533 = vmatprep.subr.bf16.mxu0 0
    %534 = vmatpush1.bf16.msra.mxu0 0
    %535 = vmatprep.subr.bf16.mxu0 0
    %536 = vmatpush1.bf16.msra.mxu0 0
    %537 = vmatprep.subr.bf16.mxu0 0
    %538 = vmatpush1.bf16.msra.mxu0 0
    %539 = vmatprep.subr.bf16.mxu0 0
    %540 = vmatpush1.bf16.msra.mxu0 0
    %541 = vmatprep.subr.bf16.mxu0 0
    %542 = vmatpush1.bf16.msra.mxu0 0
    %543 = vmatprep.subr.bf16.mxu0 0
    %544 = vmatpush1.bf16.msra.mxu0 0
    %545 = vmatprep.subr.bf16.mxu0 0
    %546 = vmatpush1.bf16.msra.mxu0 0
    %547 = vmatprep.subr.bf16.mxu0 0
    %548 = vmatpush1.bf16.msra.mxu0 0
    %549 = vmatprep.subr.bf16.mxu0 0
    %550 = vmatpush1.bf16.msra.mxu0 0
    %551 = vmatprep.subr.bf16.mxu0 0
    %552 = vmatpush1.bf16.msra.mxu0 0
    %553 = vmatprep.subr.bf16.mxu0 0
    %554 = vmatpush1.bf16.msra.mxu0 0
    %555 = vmatprep.subr.bf16.mxu0 0
    %556 = vmatpush1.bf16.msra.mxu0 0
    %557 = vmatprep.subr.bf16.mxu0 0
    %558 = vmatpush1.bf16.msra.mxu0 0
    %559 = vmatprep.mubr.bf16.mxu0 0
    %560 = vmatmul.mubr.bf16.gmra.mrb[0].mxu0 %v525
    %v561 = vpop.f32.mrb[0].mxu0
    %v562 = vadd.f32 %v523, %v561
    %v563 = vpop.f32.mrb[0].mxu0
    %v564 = vpop.f32.mrb[0].mxu0
    %v565 = vadd.f32 %v523, %v564
    %v566 = vpop.f32.mrb[0].mxu0
    %567 = vdwg.mxu0
    %v568 = vmul.f32 %v562, %v562
    %v569 = vmul.f32 %v565, %v565
    %v570 = vmul.f32 %v562, %v568
    %v571 = vmul.f32 %v565, %v569
    %v572 = vmul.f32 %v570, 0.044715
    %v573 = vmul.f32 %v571, 0.044715
    %v574 = vadd.f32 %v562, %v572
    %v575 = vadd.f32 %v565, %v573
    %v576 = vmul.f32 %v574, 0.7978846
    %v577 = vmul.f32 %v575, 0.7978846
    %v578 = vtanh.pop %v576
    %v579 = vtanh.pop %v577
    %v580 = vadd.f32 %v578, 1.0
    %v581 = vadd.f32 %v579, 1.0
    %v582 = vmul.f32 %v580, 0.5
    %v583 = vmul.f32 %v581, 0.5
    %v584 = vmul.f32 %v562, %v582
    %v585 = vmul.f32 %v565, %v583
    %v586 = vadd.f32 %v508, %v584
    %v587 = vadd.f32 %v509, %v585
    %v588 = vsel %vm162, %v586, 0.0
    %589 = vadd.xlane.f32.xlu0 %v588
    %v590 = vpop.xlane.xlu0 %589
    %v591 = vsel %vm162, %v587, 0.0
    %592 = vadd.xlane.f32.xlu0 %v591
    %v593 = vpop.xlane.xlu0 %592
    %v594 = vmul.f32 %v590, %v233
    %v595 = vmul.f32 %v593, %v233
    %v596 = vmul.f32 %v586, %v586
    %v597 = vmul.f32 %v587, %v587
    %v598 = vsel %vm162, %v596, 0.0
    %599 = vadd.xlane.f32.xlu0 %v598
    %v600 = vpop.xlane.xlu0 %599
    %v601 = vsel %vm162, %v597, 0.0
    %602 = vadd.xlane.f32.xlu0 %v601
    %v603 = vpop.xlane.xlu0 %602
    %v604 = vmul.f32 %v600, %v233
    %v605 = vmul.f32 %v603, %v233
    %v606 = vmul.f32 %v594, %v594
    %v607 = vmul.f32 %v595, %v595
    %v608 = vsub.f32 %v604, %v606
    %v609 = vsub.f32 %v605, %v607
    %v610 = vsub.f32 %v586, %v594
    %v611 = vsub.f32 %v587, %v595
    %v612 = vadd.f32 %v608, 1e-05
    %v613 = vadd.f32 %v609, 1e-05
    %v614 = vrsqrt.pop %v612
    %v615 = vrsqrt.pop %v613
    %v616 = vmul.f32 %v610, %v614
    %v617 = vmul.f32 %v611, %v615
    %v618 = vlaneseq
    %v619 = vshrl.u32 %v618, 7
    %v620 = vsub.s32 1, %v619
    %v621 = vrot.slane %v518, %v620
    %v622 = vmul.f32 %v616, %v621
    %v623 = vmul.f32 %v617, %v621
    %v624 = vlaneseq
    %v625 = vshrl.u32 %v624, 7
    %v626 = vsub.s32 2, %v625
    %v627 = vrot.slane %v518, %v626
    %v628 = vadd.f32 %v622, %v627
    %v629 = vadd.f32 %v623, %v627
    %s630 = scalar_lea.vmem [#allocation2], 128
    %v631 = vld [vmem:[%s630] sm:$0xff]
    %v632 = vld [vmem:[%s630 + $0x8] sm:$0xff]
    %v633 = vld [vmem:[%s630 + $0x10] sm:$0xff]
    %v634 = vld [vmem:[%s630 + $0x18] sm:$0xff]
    %v635 = vpack.c.bf16 %v632, %v631
    %v636 = vpack.c.bf16 %v634, %v633
    %s637 = scalar_lea.vmem %s5, 16
    %v638 = vld [vmem:[%s637] sm:$0x7]
    %v639 = vpack.c.bf16 %v629, %v628
    %v640 = vlaneseq
    %v641 = vshrl.u32 %v640, 7
    %v642 = vsub.s32 0, %v641
    %v643 = vrot.slane %v638, %v642
    %v645 = vsel %vm162, %v639, 0
    %647 = vmatprep.subr.bf16.mxu0 0
    %648 = vmatpush1.bf16.msra.mxu0 %v635
    %649 = vmatprep.subr.bf16.mxu0 0
    %650 = vmatpush1.bf16.msra.mxu0 %v636
    %651 = vmatprep.subr.bf16.mxu0 0
    %652 = vmatpush1.bf16.msra.mxu0 0
    %653 = vmatprep.subr.bf16.mxu0 0
    %654 = vmatpush1.bf16.msra.mxu0 0
    %655 = vmatprep.subr.bf16.mxu0 0
    %656 = vmatpush1.bf16.msra.mxu0 0
    %657 = vmatprep.subr.bf16.mxu0 0
    %658 = vmatpush1.bf16.msra.mxu0 0
    %659 = vmatprep.subr.bf16.mxu0 0
    %660 = vmatpush1.bf16.msra.mxu0 0
    %661 = vmatprep.subr.bf16.mxu0 0
    %662 = vmatpush1.bf16.msra.mxu0 0
    %663 = vmatprep.subr.bf16.mxu0 0
    %664 = vmatpush1.bf16.msra.mxu0 0
    %665 = vmatprep.subr.bf16.mxu0 0
    %666 = vmatpush1.bf16.msra.mxu0 0
    %667 = vmatprep.subr.bf16.mxu0 0
    %668 = vmatpush1.bf16.msra.mxu0 0
    %669 = vmatprep.subr.bf16.mxu0 0
    %670 = vmatpush1.bf16.msra.mxu0 0
    %671 = vmatprep.subr.bf16.mxu0 0
    %672 = vmatpush1.bf16.msra.mxu0 0
    %673 = vmatprep.subr.bf16.mxu0 0
    %674 = vmatpush1.bf16.msra.mxu0 0
    %675 = vmatprep.subr.bf16.mxu0 0
    %676 = vmatpush1.bf16.msra.mxu0 0
    %677 = vmatprep.subr.bf16.mxu0 0
    %678 = vmatpush1.bf16.msra.mxu0 0
    %679 = vmatprep.mubr.bf16.mxu0 0
    %680 = vmatmul.mubr.bf16.gmra.mrb[0].mxu0 %v645
    %v681 = vpop.f32.mrb[0].mxu0
    %v682 = vadd.f32 %v643, %v681
    %v683 = vpop.f32.mrb[0].mxu0
    %v684 = vpop.f32.mrb[0].mxu0
    %v685 = vadd.f32 %v643, %v684
    %v686 = vpop.f32.mrb[0].mxu0
    %687 = vdwg.mxu0
    %v688 = vmul.f32 %v682, %v682
    %v689 = vmul.f32 %v685, %v685
    %v690 = vmul.f32 %v682, %v688
    %v691 = vmul.f32 %v685, %v689
    %v692 = vmul.f32 %v690, 0.044715
    %v693 = vmul.f32 %v691, 0.044715
    %v694 = vadd.f32 %v682, %v692
    %v695 = vadd.f32 %v685, %v693
    %v696 = vmul.f32 %v694, 0.7978846
    %v697 = vmul.f32 %v695, 0.7978846
    %v698 = vtanh.pop %v696
    %v699 = vtanh.pop %v697
    %v700 = vadd.f32 %v698, 1.0
    %v701 = vadd.f32 %v699, 1.0
    %v702 = vmul.f32 %v700, 0.5
    %v703 = vmul.f32 %v701, 0.5
    %v704 = vmul.f32 %v682, %v702
    %v705 = vmul.f32 %v685, %v703
    %v706 = vadd.f32 %v628, %v704
    %v707 = vadd.f32 %v629, %v705
    %v708 = vsel %vm162, %v706, 0.0
    %709 = vadd.xlane.f32.xlu0 %v708
    %v710 = vpop.xlane.xlu0 %709
    %v711 = vsel %vm162, %v707, 0.0
    %712 = vadd.xlane.f32.xlu0 %v711
    %v713 = vpop.xlane.xlu0 %712
    %v714 = vmul.f32 %v710, %v233
    %v715 = vmul.f32 %v713, %v233
    %v716 = vmul.f32 %v706, %v706
    %v717 = vmul.f32 %v707, %v707
    %v718 = vsel %vm162, %v716, 0.0
    %719 = vadd.xlane.f32.xlu0 %v718
    %v720 = vpop.xlane.xlu0 %719
    %v721 = vsel %vm162, %v717, 0.0
    %722 = vadd.xlane.f32.xlu0 %v721
    %v723 = vpop.xlane.xlu0 %722
    %v724 = vmul.f32 %v720, %v233
    %v725 = vmul.f32 %v723, %v233
    %v726 = vmul.f32 %v714, %v714
    %v727 = vmul.f32 %v715, %v715
    %v728 = vsub.f32 %v724, %v726
    %v729 = vsub.f32 %v725, %v727
    %v730 = vsub.f32 %v706, %v714
    %v731 = vsub.f32 %v707, %v715
    %v732 = vadd.f32 %v728, 1e-05
    %v733 = vadd.f32 %v729, 1e-05
    %v734 = vrsqrt.pop %v732
    %v735 = vrsqrt.pop %v733
    %v736 = vmul.f32 %v730, %v734
    %v737 = vmul.f32 %v731, %v735
    %v738 = vlaneseq
    %v739 = vshrl.u32 %v738, 7
    %v740 = vsub.s32 1, %v739
    %v741 = vrot.slane %v638, %v740
    %v742 = vmul.f32 %v736, %v741
    %v743 = vmul.f32 %v737, %v741
    %v744 = vlaneseq
    %v745 = vshrl.u32 %v744, 7
    %v746 = vsub.s32 2, %v745
    %v747 = vrot.slane %v638, %v746
    %v748 = vadd.f32 %v742, %v747
    %v749 = vadd.f32 %v743, %v747
    %s750 = scalar_lea.vmem [#allocation2], 160
    %v751 = vld [vmem:[%s750] sm:$0xff]
    %v752 = vld [vmem:[%s750 + $0x8] sm:$0xff]
    %v753 = vld [vmem:[%s750 + $0x10] sm:$0xff]
    %v754 = vld [vmem:[%s750 + $0x18] sm:$0xff]
    %v755 = vpack.c.bf16 %v752, %v751
    %v756 = vpack.c.bf16 %v754, %v753
    %s757 = scalar_lea.vmem %s5, 20
    %v758 = vld [vmem:[%s757] sm:$0x7]
    %v759 = vpack.c.bf16 %v749, %v748
    %v760 = vlaneseq
    %v761 = vshrl.u32 %v760, 7
    %v762 = vsub.s32 0, %v761
    %v763 = vrot.slane %v758, %v762
    %v765 = vsel %vm162, %v759, 0
    %767 = vmatprep.subr.bf16.mxu0 0
    %768 = vmatpush1.bf16.msra.mxu0 %v755
    %769 = vmatprep.subr.bf16.mxu0 0
    %770 = vmatpush1.bf16.msra.mxu0 %v756
    %771 = vmatprep.subr.bf16.mxu0 0
    %772 = vmatpush1.bf16.msra.mxu0 0
    %773 = vmatprep.subr.bf16.mxu0 0
    %774 = vmatpush1.bf16.msra.mxu0 0
    %775 = vmatprep.subr.bf16.mxu0 0
    %776 = vmatpush1.bf16.msra.mxu0 0
    %777 = vmatprep.subr.bf16.mxu0 0
    %778 = vmatpush1.bf16.msra.mxu0 0
    %779 = vmatprep.subr.bf16.mxu0 0
    %780 = vmatpush1.bf16.msra.mxu0 0
    %781 = vmatprep.subr.bf16.mxu0 0
    %782 = vmatpush1.bf16.msra.mxu0 0
    %783 = vmatprep.subr.bf16.mxu0 0
    %784 = vmatpush1.bf16.msra.mxu0 0
    %785 = vmatprep.subr.bf16.mxu0 0
    %786 = vmatpush1.bf16.msra.mxu0 0
    %787 = vmatprep.subr.bf16.mxu0 0
    %788 = vmatpush1.bf16.msra.mxu0 0
    %789 = vmatprep.subr.bf16.mxu0 0
    %790 = vmatpush1.bf16.msra.mxu0 0
    %791 = vmatprep.subr.bf16.mxu0 0
    %792 = vmatpush1.bf16.msra.mxu0 0
    %793 = vmatprep.subr.bf16.mxu0 0
    %794 = vmatpush1.bf16.msra.mxu0 0
    %795 = vmatprep.subr.bf16.mxu0 0
    %796 = vmatpush1.bf16.msra.mxu0 0
    %797 = vmatprep.subr.bf16.mxu0 0
    %798 = vmatpush1.bf16.msra.mxu0 0
    %799 = vmatprep.mubr.bf16.mxu0 0
    %800 = vmatmul.mubr.bf16.gmra.mrb[0].mxu0 %v765
    %v801 = vpop.f32.mrb[0].mxu0
    %v802 = vadd.f32 %v763, %v801
    %v803 = vpop.f32.mrb[0].mxu0
    %v804 = vpop.f32.mrb[0].mxu0
    %v805 = vadd.f32 %v763, %v804
    %v806 = vpop.f32.mrb[0].mxu0
    %807 = vdwg.mxu0
    %v808 = vmul.f32 %v802, %v802
    %v809 = vmul.f32 %v805, %v805
    %v810 = vmul.f32 %v802, %v808
    %v811 = vmul.f32 %v805, %v809
    %v812 = vmul.f32 %v810, 0.044715
    %v813 = vmul.f32 %v811, 0.044715
    %v814 = vadd.f32 %v802, %v812
    %v815 = vadd.f32 %v805, %v813
    %v816 = vmul.f32 %v814, 0.7978846
    %v817 = vmul.f32 %v815, 0.7978846
    %v818 = vtanh.pop %v816
    %v819 = vtanh.pop %v817
    %v820 = vadd.f32 %v818, 1.0
    %v821 = vadd.f32 %v819, 1.0
    %v822 = vmul.f32 %v820, 0.5
    %v823 = vmul.f32 %v821, 0.5
    %v824 = vmul.f32 %v802, %v822
    %v825 = vmul.f32 %v805, %v823
    %v826 = vadd.f32 %v748, %v824
    %v827 = vadd.f32 %v749, %v825
    %v828 = vsel %vm162, %v826, 0.0
    %829 = vadd.xlane.f32.xlu0 %v828
    %v830 = vpop.xlane.xlu0 %829
    %v831 = vsel %vm162, %v827, 0.0
    %832 = vadd.xlane.f32.xlu0 %v831
    %v833 = vpop.xlane.xlu0 %832
    %v834 = vmul.f32 %v830, %v233
    %v835 = vmul.f32 %v833, %v233
    %v836 = vmul.f32 %v826, %v826
    %v837 = vmul.f32 %v827, %v827
    %v838 = vsel %vm162, %v836, 0.0
    %839 = vadd.xlane.f32.xlu0 %v838
    %v840 = vpop.xlane.xlu0 %839
    %v841 = vsel %vm162, %v837, 0.0
    %842 = vadd.xlane.f32.xlu0 %v841
    %v843 = vpop.xlane.xlu0 %842
    %v844 = vmul.f32 %v840, %v233
    %v845 = vmul.f32 %v843, %v233
    %v846 = vmul.f32 %v834, %v834
    %v847 = vmul.f32 %v835, %v835
    %v848 = vsub.f32 %v844, %v846
    %v849 = vsub.f32 %v845, %v847
    %v850 = vsub.f32 %v826, %v834
    %v851 = vsub.f32 %v827, %v835
    %v852 = vadd.f32 %v848, 1e-05
    %v853 = vadd.f32 %v849, 1e-05
    %v854 = vrsqrt.pop %v852
    %v855 = vrsqrt.pop %v853
    %v856 = vmul.f32 %v850, %v854
    %v857 = vmul.f32 %v851, %v855
    %v858 = vlaneseq
    %v859 = vshrl.u32 %v858, 7
    %v860 = vsub.s32 1, %v859
    %v861 = vrot.slane %v758, %v860
    %v862 = vmul.f32 %v856, %v861
    %v863 = vmul.f32 %v857, %v861
    %v864 = vlaneseq
    %v865 = vshrl.u32 %v864, 7
    %v866 = vsub.s32 2, %v865
    %v867 = vrot.slane %v758, %v866
    %v868 = vadd.f32 %v862, %v867
    %v869 = vadd.f32 %v863, %v867
    %s870 = scalar_lea.vmem [#allocation2], 192
    %v871 = vld [vmem:[%s870] sm:$0xff]
    %v872 = vld [vmem:[%s870 + $0x8] sm:$0xff]
    %v873 = vld [vmem:[%s870 + $0x10] sm:$0xff]
    %v874 = vld [vmem:[%s870 + $0x18] sm:$0xff]
    %v875 = vpack.c.bf16 %v872, %v871
    %v876 = vpack.c.bf16 %v874, %v873
    %s877 = scalar_lea.vmem %s5, 24
    %v878 = vld [vmem:[%s877] sm:$0x7]
    %v879 = vpack.c.bf16 %v869, %v868
    %v880 = vlaneseq
    %v881 = vshrl.u32 %v880, 7
    %v882 = vsub.s32 0, %v881
    %v883 = vrot.slane %v878, %v882
    %v885 = vsel %vm162, %v879, 0
    %887 = vmatprep.subr.bf16.mxu0 0
    %888 = vmatpush1.bf16.msra.mxu0 %v875
    %889 = vmatprep.subr.bf16.mxu0 0
    %890 = vmatpush1.bf16.msra.mxu0 %v876
    %891 = vmatprep.subr.bf16.mxu0 0
    %892 = vmatpush1.bf16.msra.mxu0 0
    %893 = vmatprep.subr.bf16.mxu0 0
    %894 = vmatpush1.bf16.msra.mxu0 0
    %895 = vmatprep.subr.bf16.mxu0 0
    %896 = vmatpush1.bf16.msra.mxu0 0
    %897 = vmatprep.subr.bf16.mxu0 0
    %898 = vmatpush1.bf16.msra.mxu0 0
    %899 = vmatprep.subr.bf16.mxu0 0
    %900 = vmatpush1.bf16.msra.mxu0 0
    %901 = vmatprep.subr.bf16.mxu0 0
    %902 = vmatpush1.bf16.msra.mxu0 0
    %903 = vmatprep.subr.bf16.mxu0 0
    %904 = vmatpush1.bf16.msra.mxu0 0
    %905 = vmatprep.subr.bf16.mxu0 0
    %906 = vmatpush1.bf16.msra.mxu0 0
    %907 = vmatprep.subr.bf16.mxu0 0
    %908 = vmatpush1.bf16.msra.mxu0 0
    %909 = vmatprep.subr.bf16.mxu0 0
    %910 = vmatpush1.bf16.msra.mxu0 0
    %911 = vmatprep.subr.bf16.mxu0 0
    %912 = vmatpush1.bf16.msra.mxu0 0
    %913 = vmatprep.subr.bf16.mxu0 0
    %914 = vmatpush1.bf16.msra.mxu0 0
    %915 = vmatprep.subr.bf16.mxu0 0
    %916 = vmatpush1.bf16.msra.mxu0 0
    %917 = vmatprep.subr.bf16.mxu0 0
    %918 = vmatpush1.bf16.msra.mxu0 0
    %919 = vmatprep.mubr.bf16.mxu0 0
    %920 = vmatmul.mubr.bf16.gmra.mrb[0].mxu0 %v885
    %v921 = vpop.f32.mrb[0].mxu0
    %v922 = vadd.f32 %v883, %v921
    %v923 = vpop.f32.mrb[0].mxu0
    %v924 = vpop.f32.mrb[0].mxu0
    %v925 = vadd.f32 %v883, %v924
    %v926 = vpop.f32.mrb[0].mxu0
    %927 = vdwg.mxu0
    %v928 = vmul.f32 %v922, %v922
    %v929 = vmul.f32 %v925, %v925
    %v930 = vmul.f32 %v922, %v928
    %v931 = vmul.f32 %v925, %v929
    %v932 = vmul.f32 %v930, 0.044715
    %v933 = vmul.f32 %v931, 0.044715
    %v934 = vadd.f32 %v922, %v932
    %v935 = vadd.f32 %v925, %v933
    %v936 = vmul.f32 %v934, 0.7978846
    %v937 = vmul.f32 %v935, 0.7978846
    %v938 = vtanh.pop %v936
    %v939 = vtanh.pop %v937
    %v940 = vadd.f32 %v938, 1.0
    %v941 = vadd.f32 %v939, 1.0
    %v942 = vmul.f32 %v940, 0.5
    %v943 = vmul.f32 %v941, 0.5
    %v944 = vmul.f32 %v922, %v942
    %v945 = vmul.f32 %v925, %v943
    %v946 = vadd.f32 %v868, %v944
    %v947 = vadd.f32 %v869, %v945
    %v948 = vsel %vm162, %v946, 0.0
    %949 = vadd.xlane.f32.xlu0 %v948
    %v950 = vpop.xlane.xlu0 %949
    %v951 = vsel %vm162, %v947, 0.0
    %952 = vadd.xlane.f32.xlu0 %v951
    %v953 = vpop.xlane.xlu0 %952
    %v954 = vmul.f32 %v950, %v233
    %v955 = vmul.f32 %v953, %v233
    %v956 = vmul.f32 %v946, %v946
    %v957 = vmul.f32 %v947, %v947
    %v958 = vsel %vm162, %v956, 0.0
    %959 = vadd.xlane.f32.xlu0 %v958
    %v960 = vpop.xlane.xlu0 %959
    %v961 = vsel %vm162, %v957, 0.0
    %962 = vadd.xlane.f32.xlu0 %v961
    %v963 = vpop.xlane.xlu0 %962
    %v964 = vmul.f32 %v960, %v233
    %v965 = vmul.f32 %v963, %v233
    %v966 = vmul.f32 %v954, %v954
    %v967 = vmul.f32 %v955, %v955
    %v968 = vsub.f32 %v964, %v966
    %v969 = vsub.f32 %v965, %v967
    %v970 = vsub.f32 %v946, %v954
    %v971 = vsub.f32 %v947, %v955
    %v972 = vadd.f32 %v968, 1e-05
    %v973 = vadd.f32 %v969, 1e-05
    %v974 = vrsqrt.pop %v972
    %v975 = vrsqrt.pop %v973
    %v976 = vmul.f32 %v970, %v974
    %v977 = vmul.f32 %v971, %v975
    %v978 = vlaneseq
    %v979 = vshrl.u32 %v978, 7
    %v980 = vsub.s32 1, %v979
    %v981 = vrot.slane %v878, %v980
    %v982 = vmul.f32 %v976, %v981
    %v983 = vmul.f32 %v977, %v981
    %v984 = vlaneseq
    %v985 = vshrl.u32 %v984, 7
    %v986 = vsub.s32 2, %v985
    %v987 = vrot.slane %v878, %v986
    %v988 = vadd.f32 %v982, %v987
    %v989 = vadd.f32 %v983, %v987
    %s990 = scalar_lea.vmem [#allocation2], 224
    %v991 = vld [vmem:[%s990] sm:$0xff]
    %v992 = vld [vmem:[%s990 + $0x8] sm:$0xff]
    %v993 = vld [vmem:[%s990 + $0x10] sm:$0xff]
    %v994 = vld [vmem:[%s990 + $0x18] sm:$0xff]
    %v995 = vpack.c.bf16 %v992, %v991
    %v996 = vpack.c.bf16 %v994, %v993
    %s997 = scalar_lea.vmem %s5, 28
    %v998 = vld [vmem:[%s997] sm:$0x7]
    %v999 = vpack.c.bf16 %v989, %v988
    %v1000 = vlaneseq
    %v1001 = vshrl.u32 %v1000, 7
    %v1002 = vsub.s32 0, %v1001
    %v1003 = vrot.slane %v998, %v1002
    %v1005 = vsel %vm162, %v999, 0
    %1007 = vmatprep.subr.bf16.mxu0 0
    %1008 = vmatpush1.bf16.msra.mxu0 %v995
    %1009 = vmatprep.subr.bf16.mxu0 0
    %1010 = vmatpush1.bf16.msra.mxu0 %v996
    %1011 = vmatprep.subr.bf16.mxu0 0
    %1012 = vmatpush1.bf16.msra.mxu0 0
    %1013 = vmatprep.subr.bf16.mxu0 0
    %1014 = vmatpush1.bf16.msra.mxu0 0
    %1015 = vmatprep.subr.bf16.mxu0 0
    %1016 = vmatpush1.bf16.msra.mxu0 0
    %1017 = vmatprep.subr.bf16.mxu0 0
    %1018 = vmatpush1.bf16.msra.mxu0 0
    %1019 = vmatprep.subr.bf16.mxu0 0
    %1020 = vmatpush1.bf16.msra.mxu0 0
    %1021 = vmatprep.subr.bf16.mxu0 0
    %1022 = vmatpush1.bf16.msra.mxu0 0
    %1023 = vmatprep.subr.bf16.mxu0 0
    %1024 = vmatpush1.bf16.msra.mxu0 0
    %1025 = vmatprep.subr.bf16.mxu0 0
    %1026 = vmatpush1.bf16.msra.mxu0 0
    %1027 = vmatprep.subr.bf16.mxu0 0
    %1028 = vmatpush1.bf16.msra.mxu0 0
    %1029 = vmatprep.subr.bf16.mxu0 0
    %1030 = vmatpush1.bf16.msra.mxu0 0
    %1031 = vmatprep.subr.bf16.mxu0 0
    %1032 = vmatpush1.bf16.msra.mxu0 0
    %1033 = vmatprep.subr.bf16.mxu0 0
    %1034 = vmatpush1.bf16.msra.mxu0 0
    %1035 = vmatprep.subr.bf16.mxu0 0
    %1036 = vmatpush1.bf16.msra.mxu0 0
    %1037 = vmatprep.subr.bf16.mxu0 0
    %1038 = vmatpush1.bf16.msra.mxu0 0
    %1039 = vmatprep.mubr.bf16.mxu0 0
    %1040 = vmatmul.mubr.bf16.gmra.mrb[0].mxu0 %v1005
    %v1041 = vpop.f32.mrb[0].mxu0
    %v1042 = vadd.f32 %v1003, %v1041
    %v1043 = vpop.f32.mrb[0].mxu0
    %v1044 = vpop.f32.mrb[0].mxu0
    %v1045 = vadd.f32 %v1003, %v1044
    %v1046 = vpop.f32.mrb[0].mxu0
    %1047 = vdwg.mxu0
    %v1048 = vmul.f32 %v1042, %v1042
    %v1049 = vmul.f32 %v1045, %v1045
    %v1050 = vmul.f32 %v1042, %v1048
    %v1051 = vmul.f32 %v1045, %v1049
    %v1052 = vmul.f32 %v1050, 0.044715
    %v1053 = vmul.f32 %v1051, 0.044715
    %v1054 = vadd.f32 %v1042, %v1052
    %v1055 = vadd.f32 %v1045, %v1053
    %v1056 = vmul.f32 %v1054, 0.7978846
    %v1057 = vmul.f32 %v1055, 0.7978846
    %v1058 = vtanh.pop %v1056
    %v1059 = vtanh.pop %v1057
    %v1060 = vadd.f32 %v1058, 1.0
    %v1061 = vadd.f32 %v1059, 1.0
    %v1062 = vmul.f32 %v1060, 0.5
    %v1063 = vmul.f32 %v1061, 0.5
    %v1064 = vmul.f32 %v1042, %v1062
    %v1065 = vmul.f32 %v1045, %v1063
    %v1066 = vadd.f32 %v988, %v1064
    %v1067 = vadd.f32 %v989, %v1065
    %v1068 = vsel %vm162, %v1066, 0.0
    %1069 = vadd.xlane.f32.xlu0 %v1068
    %v1070 = vpop.xlane.xlu0 %1069
    %v1071 = vsel %vm162, %v1067, 0.0
    %1072 = vadd.xlane.f32.xlu0 %v1071
    %v1073 = vpop.xlane.xlu0 %1072
    %v1074 = vmul.f32 %v1070, %v233
    %v1075 = vmul.f32 %v1073, %v233
    %v1076 = vmul.f32 %v1066, %v1066
    %v1077 = vmul.f32 %v1067, %v1067
    %v1078 = vsel %vm162, %v1076, 0.0
    %1079 = vadd.xlane.f32.xlu0 %v1078
    %v1080 = vpop.xlane.xlu0 %1079
    %v1081 = vsel %vm162, %v1077, 0.0
    %1082 = vadd.xlane.f32.xlu0 %v1081
    %v1083 = vpop.xlane.xlu0 %1082
    %v1084 = vmul.f32 %v1080, %v233
    %v1085 = vmul.f32 %v1083, %v233
    %v1086 = vmul.f32 %v1074, %v1074
    %v1087 = vmul.f32 %v1075, %v1075
    %v1088 = vsub.f32 %v1084, %v1086
    %v1089 = vsub.f32 %v1085, %v1087
    %v1090 = vsub.f32 %v1066, %v1074
    %v1091 = vsub.f32 %v1067, %v1075
    %v1092 = vadd.f32 %v1088, 1e-05
    %v1093 = vadd.f32 %v1089, 1e-05
    %v1094 = vrsqrt.pop %v1092
    %v1095 = vrsqrt.pop %v1093
    %v1096 = vmul.f32 %v1090, %v1094
    %v1097 = vmul.f32 %v1091, %v1095
    %v1098 = vlaneseq
    %v1099 = vshrl.u32 %v1098, 7
    %v1100 = vsub.s32 1, %v1099
    %v1101 = vrot.slane %v998, %v1100
    %v1102 = vmul.f32 %v1096, %v1101
    %v1103 = vmul.f32 %v1097, %v1101
    %v1104 = vlaneseq
    %v1105 = vshrl.u32 %v1104, 7
    %v1106 = vsub.s32 2, %v1105
    %v1107 = vrot.slane %v998, %v1106
    %v1108 = vadd.f32 %v1102, %v1107
    %v1109 = vadd.f32 %v1103, %v1107
    %s1110 = scalar_lea.vmem [#allocation2], 256
    %v1111 = vld [vmem:[%s1110] sm:$0xff]
    %v1112 = vld [vmem:[%s1110 + $0x8] sm:$0xff]
    %v1113 = vld [vmem:[%s1110 + $0x10] sm:$0xff]
    %v1114 = vld [vmem:[%s1110 + $0x18] sm:$0xff]
    %v1115 = vpack.c.bf16 %v1112, %v1111
    %v1116 = vpack.c.bf16 %v1114, %v1113
    %s1117 = scalar_lea.vmem %s5, 32
    %v1118 = vld [vmem:[%s1117] sm:$0x7]
    %v1119 = vpack.c.bf16 %v1109, %v1108
    %v1120 = vlaneseq
    %v1121 = vshrl.u32 %v1120, 7
    %v1122 = vsub.s32 0, %v1121
    %v1123 = vrot.slane %v1118, %v1122
    %v1125 = vsel %vm162, %v1119, 0
    %1127 = vmatprep.subr.bf16.mxu0 0
    %1128 = vmatpush1.bf16.msra.mxu0 %v1115
    %1129 = vmatprep.subr.bf16.mxu0 0
    %1130 = vmatpush1.bf16.msra.mxu0 %v1116
    %1131 = vmatprep.subr.bf16.mxu0 0
    %1132 = vmatpush1.bf16.msra.mxu0 0
    %1133 = vmatprep.subr.bf16.mxu0 0
    %1134 = vmatpush1.bf16.msra.mxu0 0
    %1135 = vmatprep.subr.bf16.mxu0 0
    %1136 = vmatpush1.bf16.msra.mxu0 0
    %1137 = vmatprep.subr.bf16.mxu0 0
    %1138 = vmatpush1.bf16.msra.mxu0 0
    %1139 = vmatprep.subr.bf16.mxu0 0
    %1140 = vmatpush1.bf16.msra.mxu0 0
    %1141 = vmatprep.subr.bf16.mxu0 0
    %1142 = vmatpush1.bf16.msra.mxu0 0
    %1143 = vmatprep.subr.bf16.mxu0 0
    %1144 = vmatpush1.bf16.msra.mxu0 0
    %1145 = vmatprep.subr.bf16.mxu0 0
    %1146 = vmatpush1.bf16.msra.mxu0 0
    %1147 = vmatprep.subr.bf16.mxu0 0
    %1148 = vmatpush1.bf16.msra.mxu0 0
    %1149 = vmatprep.subr.bf16.mxu0 0
    %1150 = vmatpush1.bf16.msra.mxu0 0
    %1151 = vmatprep.subr.bf16.mxu0 0
    %1152 = vmatpush1.bf16.msra.mxu0 0
    %1153 = vmatprep.subr.bf16.mxu0 0
    %1154 = vmatpush1.bf16.msra.mxu0 0
    %1155 = vmatprep.subr.bf16.mxu0 0
    %1156 = vmatpush1.bf16.msra.mxu0 0
    %1157 = vmatprep.subr.bf16.mxu0 0
    %1158 = vmatpush1.bf16.msra.mxu0 0
    %1159 = vmatprep.mubr.bf16.mxu0 0
    %1160 = vmatmul.mubr.bf16.gmra.mrb[0].mxu0 %v1125
    %v1161 = vpop.f32.mrb[0].mxu0
    %v1162 = vadd.f32 %v1123, %v1161
    %v1163 = vpop.f32.mrb[0].mxu0
    %v1164 = vpop.f32.mrb[0].mxu0
    %v1165 = vadd.f32 %v1123, %v1164
    %v1166 = vpop.f32.mrb[0].mxu0
    %1167 = vdwg.mxu0
    %v1168 = vmul.f32 %v1162, %v1162
    %v1169 = vmul.f32 %v1165, %v1165
    %v1170 = vmul.f32 %v1162, %v1168
    %v1171 = vmul.f32 %v1165, %v1169
    %v1172 = vmul.f32 %v1170, 0.044715
    %v1173 = vmul.f32 %v1171, 0.044715
    %v1174 = vadd.f32 %v1162, %v1172
    %v1175 = vadd.f32 %v1165, %v1173
    %v1176 = vmul.f32 %v1174, 0.7978846
    %v1177 = vmul.f32 %v1175, 0.7978846
    %v1178 = vtanh.pop %v1176
    %v1179 = vtanh.pop %v1177
    %v1180 = vadd.f32 %v1178, 1.0
    %v1181 = vadd.f32 %v1179, 1.0
    %v1182 = vmul.f32 %v1180, 0.5
    %v1183 = vmul.f32 %v1181, 0.5
    %v1184 = vmul.f32 %v1162, %v1182
    %v1185 = vmul.f32 %v1165, %v1183
    %v1186 = vadd.f32 %v1108, %v1184
    %v1187 = vadd.f32 %v1109, %v1185
    %v1188 = vsel %vm162, %v1186, 0.0
    %1189 = vadd.xlane.f32.xlu0 %v1188
    %v1190 = vpop.xlane.xlu0 %1189
    %v1191 = vsel %vm162, %v1187, 0.0
    %1192 = vadd.xlane.f32.xlu0 %v1191
    %v1193 = vpop.xlane.xlu0 %1192
    %v1194 = vmul.f32 %v1190, %v233
    %v1195 = vmul.f32 %v1193, %v233
    %v1196 = vmul.f32 %v1186, %v1186
    %v1197 = vmul.f32 %v1187, %v1187
    %v1198 = vsel %vm162, %v1196, 0.0
    %1199 = vadd.xlane.f32.xlu0 %v1198
    %v1200 = vpop.xlane.xlu0 %1199
    %v1201 = vsel %vm162, %v1197, 0.0
    %1202 = vadd.xlane.f32.xlu0 %v1201
    %v1203 = vpop.xlane.xlu0 %1202
    %v1204 = vmul.f32 %v1200, %v233
    %v1205 = vmul.f32 %v1203, %v233
    %v1206 = vmul.f32 %v1194, %v1194
    %v1207 = vmul.f32 %v1195, %v1195
    %v1208 = vsub.f32 %v1204, %v1206
    %v1209 = vsub.f32 %v1205, %v1207
    %v1210 = vsub.f32 %v1186, %v1194
    %v1211 = vsub.f32 %v1187, %v1195
    %v1212 = vadd.f32 %v1208, 1e-05
    %v1213 = vadd.f32 %v1209, 1e-05
    %v1214 = vrsqrt.pop %v1212
    %v1215 = vrsqrt.pop %v1213
    %v1216 = vmul.f32 %v1210, %v1214
    %v1217 = vmul.f32 %v1211, %v1215
    %v1218 = vlaneseq
    %v1219 = vshrl.u32 %v1218, 7
    %v1220 = vsub.s32 1, %v1219
    %v1221 = vrot.slane %v1118, %v1220
    %v1222 = vmul.f32 %v1216, %v1221
    %v1223 = vmul.f32 %v1217, %v1221
    %v1224 = vlaneseq
    %v1225 = vshrl.u32 %v1224, 7
    %v1226 = vsub.s32 2, %v1225
    %v1227 = vrot.slane %v1118, %v1226
    %v1228 = vadd.f32 %v1222, %v1227
    %v1229 = vadd.f32 %v1223, %v1227
    %s1230 = scalar_lea.vmem [#allocation2], 288
    %v1231 = vld [vmem:[%s1230] sm:$0xff]
    %v1232 = vld [vmem:[%s1230 + $0x8] sm:$0xff]
    %v1233 = vld [vmem:[%s1230 + $0x10] sm:$0xff]
    %v1234 = vld [vmem:[%s1230 + $0x18] sm:$0xff]
    %v1235 = vpack.c.bf16 %v1232, %v1231
    %v1236 = vpack.c.bf16 %v1234, %v1233
    %s1237 = scalar_lea.vmem %s5, 36
    %v1238 = vld [vmem:[%s1237] sm:$0x7]
    %v1239 = vpack.c.bf16 %v1229, %v1228
    %v1240 = vlaneseq
    %v1241 = vshrl.u32 %v1240, 7
    %v1242 = vsub.s32 0, %v1241
    %v1243 = vrot.slane %v1238, %v1242
    %v1245 = vsel %vm162, %v1239, 0
    %1247 = vmatprep.subr.bf16.mxu0 0
    %1248 = vmatpush1.bf16.msra.mxu0 %v1235
    %1249 = vmatprep.subr.bf16.mxu0 0
    %1250 = vmatpush1.bf16.msra.mxu0 %v1236
    %1251 = vmatprep.subr.bf16.mxu0 0
    %1252 = vmatpush1.bf16.msra.mxu0 0
    %1253 = vmatprep.subr.bf16.mxu0 0
    %1254 = vmatpush1.bf16.msra.mxu0 0
    %1255 = vmatprep.subr.bf16.mxu0 0
    %1256 = vmatpush1.bf16.msra.mxu0 0
    %1257 = vmatprep.subr.bf16.mxu0 0
    %1258 = vmatpush1.bf16.msra.mxu0 0
    %1259 = vmatprep.subr.bf16.mxu0 0
    %1260 = vmatpush1.bf16.msra.mxu0 0
    %1261 = vmatprep.subr.bf16.mxu0 0
    %1262 = vmatpush1.bf16.msra.mxu0 0
    %1263 = vmatprep.subr.bf16.mxu0 0
    %1264 = vmatpush1.bf16.msra.mxu0 0
    %1265 = vmatprep.subr.bf16.mxu0 0
    %1266 = vmatpush1.bf16.msra.mxu0 0
    %1267 = vmatprep.subr.bf16.mxu0 0
    %1268 = vmatpush1.bf16.msra.mxu0 0
    %1269 = vmatprep.subr.bf16.mxu0 0
    %1270 = vmatpush1.bf16.msra.mxu0 0
    %1271 = vmatprep.subr.bf16.mxu0 0
    %1272 = vmatpush1.bf16.msra.mxu0 0
    %1273 = vmatprep.subr.bf16.mxu0 0
    %1274 = vmatpush1.bf16.msra.mxu0 0
    %1275 = vmatprep.subr.bf16.mxu0 0
    %1276 = vmatpush1.bf16.msra.mxu0 0
    %1277 = vmatprep.subr.bf16.mxu0 0
    %1278 = vmatpush1.bf16.msra.mxu0 0
    %1279 = vmatprep.mubr.bf16.mxu0 0
    %1280 = vmatmul.mubr.bf16.gmra.mrb[0].mxu0 %v1245
    %v1281 = vpop.f32.mrb[0].mxu0
    %v1282 = vadd.f32 %v1243, %v1281
    %v1283 = vpop.f32.mrb[0].mxu0
    %v1284 = vpop.f32.mrb[0].mxu0
    %v1285 = vadd.f32 %v1243, %v1284
    %v1286 = vpop.f32.mrb[0].mxu0
    %1287 = vdwg.mxu0
    %v1288 = vmul.f32 %v1282, %v1282
    %v1289 = vmul.f32 %v1285, %v1285
    %v1290 = vmul.f32 %v1282, %v1288
    %v1291 = vmul.f32 %v1285, %v1289
    %v1292 = vmul.f32 %v1290, 0.044715
    %v1293 = vmul.f32 %v1291, 0.044715
    %v1294 = vadd.f32 %v1282, %v1292
    %v1295 = vadd.f32 %v1285, %v1293
    %v1296 = vmul.f32 %v1294, 0.7978846
    %v1297 = vmul.f32 %v1295, 0.7978846
    %v1298 = vtanh.pop %v1296
    %v1299 = vtanh.pop %v1297
    %v1300 = vadd.f32 %v1298, 1.0
    %v1301 = vadd.f32 %v1299, 1.0
    %v1302 = vmul.f32 %v1300, 0.5
    %v1303 = vmul.f32 %v1301, 0.5
    %v1304 = vmul.f32 %v1282, %v1302
    %v1305 = vmul.f32 %v1285, %v1303
    %v1306 = vadd.f32 %v1228, %v1304
    %v1307 = vadd.f32 %v1229, %v1305
    %v1308 = vsel %vm162, %v1306, 0.0
    %1309 = vadd.xlane.f32.xlu0 %v1308
    %v1310 = vpop.xlane.xlu0 %1309
    %v1311 = vsel %vm162, %v1307, 0.0
    %1312 = vadd.xlane.f32.xlu0 %v1311
    %v1313 = vpop.xlane.xlu0 %1312
    %v1314 = vmul.f32 %v1310, %v233
    %v1315 = vmul.f32 %v1313, %v233
    %v1316 = vmul.f32 %v1306, %v1306
    %v1317 = vmul.f32 %v1307, %v1307
    %v1318 = vsel %vm162, %v1316, 0.0
    %1319 = vadd.xlane.f32.xlu0 %v1318
    %v1320 = vpop.xlane.xlu0 %1319
    %v1321 = vsel %vm162, %v1317, 0.0
    %1322 = vadd.xlane.f32.xlu0 %v1321
    %v1323 = vpop.xlane.xlu0 %1322
    %v1324 = vmul.f32 %v1320, %v233
    %v1325 = vmul.f32 %v1323, %v233
    %v1326 = vmul.f32 %v1314, %v1314
    %v1327 = vmul.f32 %v1315, %v1315
    %v1328 = vsub.f32 %v1324, %v1326
    %v1329 = vsub.f32 %v1325, %v1327
    %v1330 = vsub.f32 %v1306, %v1314
    %v1331 = vsub.f32 %v1307, %v1315
    %v1332 = vadd.f32 %v1328, 1e-05
    %v1333 = vadd.f32 %v1329, 1e-05
    %v1334 = vrsqrt.pop %v1332
    %v1335 = vrsqrt.pop %v1333
    %v1336 = vmul.f32 %v1330, %v1334
    %v1337 = vmul.f32 %v1331, %v1335
    %v1338 = vlaneseq
    %v1339 = vshrl.u32 %v1338, 7
    %v1340 = vsub.s32 1, %v1339
    %v1341 = vrot.slane %v1238, %v1340
    %v1342 = vmul.f32 %v1336, %v1341
    %v1343 = vmul.f32 %v1337, %v1341
    %v1344 = vlaneseq
    %v1345 = vshrl.u32 %v1344, 7
    %v1346 = vsub.s32 2, %v1345
    %v1347 = vrot.slane %v1238, %v1346
    %v1348 = vadd.f32 %v1342, %v1347
    %v1349 = vadd.f32 %v1343, %v1347
    %s1350 = scalar_lea.vmem [#allocation2], 320
    %v1351 = vld [vmem:[%s1350] sm:$0xff]
    %v1352 = vld [vmem:[%s1350 + $0x8] sm:$0xff]
    %v1353 = vld [vmem:[%s1350 + $0x10] sm:$0xff]
    %v1354 = vld [vmem:[%s1350 + $0x18] sm:$0xff]
    %v1355 = vpack.c.bf16 %v1352, %v1351
    %v1356 = vpack.c.bf16 %v1354, %v1353
    %s1357 = scalar_lea.vmem %s5, 40
    %v1358 = vld [vmem:[%s1357] sm:$0x7]
    %v1359 = vpack.c.bf16 %v1349, %v1348
    %v1360 = vlaneseq
    %v1361 = vshrl.u32 %v1360, 7
    %v1362 = vsub.s32 0, %v1361
    %v1363 = vrot.slane %v1358, %v1362
    %v1365 = vsel %vm162, %v1359, 0
    %1367 = vmatprep.subr.bf16.mxu0 0
    %1368 = vmatpush1.bf16.msra.mxu0 %v1355
    %1369 = vmatprep.subr.bf16.mxu0 0
    %1370 = vmatpush1.bf16.msra.mxu0 %v1356
    %1371 = vmatprep.subr.bf16.mxu0 0
    %1372 = vmatpush1.bf16.msra.mxu0 0
    %1373 = vmatprep.subr.bf16.mxu0 0
    %1374 = vmatpush1.bf16.msra.mxu0 0
    %1375 = vmatprep.subr.bf16.mxu0 0
    %1376 = vmatpush1.bf16.msra.mxu0 0
    %1377 = vmatprep.subr.bf16.mxu0 0
    %1378 = vmatpush1.bf16.msra.mxu0 0
    %1379 = vmatprep.subr.bf16.mxu0 0
    %1380 = vmatpush1.bf16.msra.mxu0 0
    %1381 = vmatprep.subr.bf16.mxu0 0
    %1382 = vmatpush1.bf16.msra.mxu0 0
    %1383 = vmatprep.subr.bf16.mxu0 0
    %1384 = vmatpush1.bf16.msra.mxu0 0
    %1385 = vmatprep.subr.bf16.mxu0 0
    %1386 = vmatpush1.bf16.msra.mxu0 0
    %1387 = vmatprep.subr.bf16.mxu0 0
    %1388 = vmatpush1.bf16.msra.mxu0 0
    %1389 = vmatprep.subr.bf16.mxu0 0
    %1390 = vmatpush1.bf16.msra.mxu0 0
    %1391 = vmatprep.subr.bf16.mxu0 0
    %1392 = vmatpush1.bf16.msra.mxu0 0
    %1393 = vmatprep.subr.bf16.mxu0 0
    %1394 = vmatpush1.bf16.msra.mxu0 0
    %1395 = vmatprep.subr.bf16.mxu0 0
    %1396 = vmatpush1.bf16.msra.mxu0 0
    %1397 = vmatprep.subr.bf16.mxu0 0
    %1398 = vmatpush1.bf16.msra.mxu0 0
    %1399 = vmatprep.mubr.bf16.mxu0 0
    %1400 = vmatmul.mubr.bf16.gmra.mrb[0].mxu0 %v1365
    %v1401 = vpop.f32.mrb[0].mxu0
    %v1402 = vadd.f32 %v1363, %v1401
    %v1403 = vpop.f32.mrb[0].mxu0
    %v1404 = vpop.f32.mrb[0].mxu0
    %v1405 = vadd.f32 %v1363, %v1404
    %v1406 = vpop.f32.mrb[0].mxu0
    %1407 = vdwg.mxu0
    %v1408 = vmul.f32 %v1402, %v1402
    %v1409 = vmul.f32 %v1405, %v1405
    %v1410 = vmul.f32 %v1402, %v1408
    %v1411 = vmul.f32 %v1405, %v1409
    %v1412 = vmul.f32 %v1410, 0.044715
    %v1413 = vmul.f32 %v1411, 0.044715
    %v1414 = vadd.f32 %v1402, %v1412
    %v1415 = vadd.f32 %v1405, %v1413
    %v1416 = vmul.f32 %v1414, 0.7978846
    %v1417 = vmul.f32 %v1415, 0.7978846
    %v1418 = vtanh.pop %v1416
    %v1419 = vtanh.pop %v1417
    %v1420 = vadd.f32 %v1418, 1.0
    %v1421 = vadd.f32 %v1419, 1.0
    %v1422 = vmul.f32 %v1420, 0.5
    %v1423 = vmul.f32 %v1421, 0.5
    %v1424 = vmul.f32 %v1402, %v1422
    %v1425 = vmul.f32 %v1405, %v1423
    %v1426 = vadd.f32 %v1348, %v1424
    %v1427 = vadd.f32 %v1349, %v1425
    %v1428 = vsel %vm162, %v1426, 0.0
    %1429 = vadd.xlane.f32.xlu0 %v1428
    %v1430 = vpop.xlane.xlu0 %1429
    %v1431 = vsel %vm162, %v1427, 0.0
    %1432 = vadd.xlane.f32.xlu0 %v1431
    %v1433 = vpop.xlane.xlu0 %1432
    %v1434 = vmul.f32 %v1430, %v233
    %v1435 = vmul.f32 %v1433, %v233
    %v1436 = vmul.f32 %v1426, %v1426
    %v1437 = vmul.f32 %v1427, %v1427
    %v1438 = vsel %vm162, %v1436, 0.0
    %1439 = vadd.xlane.f32.xlu0 %v1438
    %v1440 = vpop.xlane.xlu0 %1439
    %v1441 = vsel %vm162, %v1437, 0.0
    %1442 = vadd.xlane.f32.xlu0 %v1441
    %v1443 = vpop.xlane.xlu0 %1442
    %v1444 = vmul.f32 %v1440, %v233
    %v1445 = vmul.f32 %v1443, %v233
    %v1446 = vmul.f32 %v1434, %v1434
    %v1447 = vmul.f32 %v1435, %v1435
    %v1448 = vsub.f32 %v1444, %v1446
    %v1449 = vsub.f32 %v1445, %v1447
    %v1450 = vsub.f32 %v1426, %v1434
    %v1451 = vsub.f32 %v1427, %v1435
    %v1452 = vadd.f32 %v1448, 1e-05
    %v1453 = vadd.f32 %v1449, 1e-05
    %v1454 = vrsqrt.pop %v1452
    %v1455 = vrsqrt.pop %v1453
    %v1456 = vmul.f32 %v1450, %v1454
    %v1457 = vmul.f32 %v1451, %v1455
    %v1458 = vlaneseq
    %v1459 = vshrl.u32 %v1458, 7
    %v1460 = vsub.s32 1, %v1459
    %v1461 = vrot.slane %v1358, %v1460
    %v1462 = vmul.f32 %v1456, %v1461
    %v1463 = vmul.f32 %v1457, %v1461
    %v1464 = vlaneseq
    %v1465 = vshrl.u32 %v1464, 7
    %v1466 = vsub.s32 2, %v1465
    %v1467 = vrot.slane %v1358, %v1466
    %v1468 = vadd.f32 %v1462, %v1467
    %v1469 = vadd.f32 %v1463, %v1467
    %s1470 = scalar_lea.vmem [#allocation2], 352
    %v1471 = vld [vmem:[%s1470] sm:$0xff]
    %v1472 = vld [vmem:[%s1470 + $0x8] sm:$0xff]
    %v1473 = vld [vmem:[%s1470 + $0x10] sm:$0xff]
    %v1474 = vld [vmem:[%s1470 + $0x18] sm:$0xff]
    %v1475 = vpack.c.bf16 %v1472, %v1471
    %v1476 = vpack.c.bf16 %v1474, %v1473
    %s1477 = scalar_lea.vmem %s5, 44
    %v1478 = vld [vmem:[%s1477] sm:$0x7]
    %v1479 = vpack.c.bf16 %v1469, %v1468
    %v1480 = vlaneseq
    %v1481 = vshrl.u32 %v1480, 7
    %v1482 = vsub.s32 0, %v1481
    %v1483 = vrot.slane %v1478, %v1482
    %v1485 = vsel %vm162, %v1479, 0
    %1487 = vmatprep.subr.bf16.mxu0 0
    %1488 = vmatpush1.bf16.msra.mxu0 %v1475
    %1489 = vmatprep.subr.bf16.mxu0 0
    %1490 = vmatpush1.bf16.msra.mxu0 %v1476
    %1491 = vmatprep.subr.bf16.mxu0 0
    %1492 = vmatpush1.bf16.msra.mxu0 0
    %1493 = vmatprep.subr.bf16.mxu0 0
    %1494 = vmatpush1.bf16.msra.mxu0 0
    %1495 = vmatprep.subr.bf16.mxu0 0
    %1496 = vmatpush1.bf16.msra.mxu0 0
    %1497 = vmatprep.subr.bf16.mxu0 0
    %1498 = vmatpush1.bf16.msra.mxu0 0
    %1499 = vmatprep.subr.bf16.mxu0 0
    %1500 = vmatpush1.bf16.msra.mxu0 0
    %1501 = vmatprep.subr.bf16.mxu0 0
    %1502 = vmatpush1.bf16.msra.mxu0 0
    %1503 = vmatprep.subr.bf16.mxu0 0
    %1504 = vmatpush1.bf16.msra.mxu0 0
    %1505 = vmatprep.subr.bf16.mxu0 0
    %1506 = vmatpush1.bf16.msra.mxu0 0
    %1507 = vmatprep.subr.bf16.mxu0 0
    %1508 = vmatpush1.bf16.msra.mxu0 0
    %1509 = vmatprep.subr.bf16.mxu0 0
    %1510 = vmatpush1.bf16.msra.mxu0 0
    %1511 = vmatprep.subr.bf16.mxu0 0
    %1512 = vmatpush1.bf16.msra.mxu0 0
    %1513 = vmatprep.subr.bf16.mxu0 0
    %1514 = vmatpush1.bf16.msra.mxu0 0
    %1515 = vmatprep.subr.bf16.mxu0 0
    %1516 = vmatpush1.bf16.msra.mxu0 0
    %1517 = vmatprep.subr.bf16.mxu0 0
    %1518 = vmatpush1.bf16.msra.mxu0 0
    %1519 = vmatprep.mubr.bf16.mxu0 0
    %1520 = vmatmul.mubr.bf16.gmra.mrb[0].mxu0 %v1485
    %v1521 = vpop.f32.mrb[0].mxu0
    %v1522 = vadd.f32 %v1483, %v1521
    %v1523 = vpop.f32.mrb[0].mxu0
    %v1524 = vpop.f32.mrb[0].mxu0
    %v1525 = vadd.f32 %v1483, %v1524
    %v1526 = vpop.f32.mrb[0].mxu0
    %1527 = vdwg.mxu0
    %v1528 = vmul.f32 %v1522, %v1522
    %v1529 = vmul.f32 %v1525, %v1525
    %v1530 = vmul.f32 %v1522, %v1528
    %v1531 = vmul.f32 %v1525, %v1529
    %v1532 = vmul.f32 %v1530, 0.044715
    %v1533 = vmul.f32 %v1531, 0.044715
    %v1534 = vadd.f32 %v1522, %v1532
    %v1535 = vadd.f32 %v1525, %v1533
    %v1536 = vmul.f32 %v1534, 0.7978846
    %v1537 = vmul.f32 %v1535, 0.7978846
    %v1538 = vtanh.pop %v1536
    %v1539 = vtanh.pop %v1537
    %v1540 = vadd.f32 %v1538, 1.0
    %v1541 = vadd.f32 %v1539, 1.0
    %v1542 = vmul.f32 %v1540, 0.5
    %v1543 = vmul.f32 %v1541, 0.5
    %v1544 = vmul.f32 %v1522, %v1542
    %v1545 = vmul.f32 %v1525, %v1543
    %v1546 = vadd.f32 %v1468, %v1544
    %v1547 = vadd.f32 %v1469, %v1545
    %v1548 = vsel %vm162, %v1546, 0.0
    %1549 = vadd.xlane.f32.xlu0 %v1548
    %v1550 = vpop.xlane.xlu0 %1549
    %v1551 = vsel %vm162, %v1547, 0.0
    %1552 = vadd.xlane.f32.xlu0 %v1551
    %v1553 = vpop.xlane.xlu0 %1552
    %v1554 = vmul.f32 %v1550, %v233
    %v1555 = vmul.f32 %v1553, %v233
    %v1556 = vmul.f32 %v1546, %v1546
    %v1557 = vmul.f32 %v1547, %v1547
    %v1558 = vsel %vm162, %v1556, 0.0
    %1559 = vadd.xlane.f32.xlu0 %v1558
    %v1560 = vpop.xlane.xlu0 %1559
    %v1561 = vsel %vm162, %v1557, 0.0
    %1562 = vadd.xlane.f32.xlu0 %v1561
    %v1563 = vpop.xlane.xlu0 %1562
    %v1564 = vmul.f32 %v1560, %v233
    %v1565 = vmul.f32 %v1563, %v233
    %v1566 = vmul.f32 %v1554, %v1554
    %v1567 = vmul.f32 %v1555, %v1555
    %v1568 = vsub.f32 %v1564, %v1566
    %v1569 = vsub.f32 %v1565, %v1567
    %v1570 = vsub.f32 %v1546, %v1554
    %v1571 = vsub.f32 %v1547, %v1555
    %v1572 = vadd.f32 %v1568, 1e-05
    %v1573 = vadd.f32 %v1569, 1e-05
    %v1574 = vrsqrt.pop %v1572
    %v1575 = vrsqrt.pop %v1573
    %v1576 = vmul.f32 %v1570, %v1574
    %v1577 = vmul.f32 %v1571, %v1575
    %v1578 = vlaneseq
    %v1579 = vshrl.u32 %v1578, 7
    %v1580 = vsub.s32 1, %v1579
    %v1581 = vrot.slane %v1478, %v1580
    %v1582 = vmul.f32 %v1576, %v1581
    %v1583 = vmul.f32 %v1577, %v1581
    %v1584 = vlaneseq
    %v1585 = vshrl.u32 %v1584, 7
    %v1586 = vsub.s32 2, %v1585
    %v1587 = vrot.slane %v1478, %v1586
    %v1588 = vadd.f32 %v1582, %v1587
    %v1589 = vadd.f32 %v1583, %v1587
    %s1590 = scalar_lea.vmem [#allocation2], 384
    %v1591 = vld [vmem:[%s1590] sm:$0xff]
    %v1592 = vld [vmem:[%s1590 + $0x8] sm:$0xff]
    %v1593 = vld [vmem:[%s1590 + $0x10] sm:$0xff]
    %v1594 = vld [vmem:[%s1590 + $0x18] sm:$0xff]
    %v1595 = vpack.c.bf16 %v1592, %v1591
    %v1596 = vpack.c.bf16 %v1594, %v1593
    %s1597 = scalar_lea.vmem %s5, 48
    %v1598 = vld [vmem:[%s1597] sm:$0x7]
    %v1599 = vpack.c.bf16 %v1589, %v1588
    %v1600 = vlaneseq
    %v1601 = vshrl.u32 %v1600, 7
    %v1602 = vsub.s32 0, %v1601
    %v1603 = vrot.slane %v1598, %v1602
    %v1605 = vsel %vm162, %v1599, 0
    %1607 = vmatprep.subr.bf16.mxu0 0
    %1608 = vmatpush1.bf16.msra.mxu0 %v1595
    %1609 = vmatprep.subr.bf16.mxu0 0
    %1610 = vmatpush1.bf16.msra.mxu0 %v1596
    %1611 = vmatprep.subr.bf16.mxu0 0
    %1612 = vmatpush1.bf16.msra.mxu0 0
    %1613 = vmatprep.subr.bf16.mxu0 0
    %1614 = vmatpush1.bf16.msra.mxu0 0
    %1615 = vmatprep.subr.bf16.mxu0 0
    %1616 = vmatpush1.bf16.msra.mxu0 0
    %1617 = vmatprep.subr.bf16.mxu0 0
    %1618 = vmatpush1.bf16.msra.mxu0 0
    %1619 = vmatprep.subr.bf16.mxu0 0
    %1620 = vmatpush1.bf16.msra.mxu0 0
    %1621 = vmatprep.subr.bf16.mxu0 0
    %1622 = vmatpush1.bf16.msra.mxu0 0
    %1623 = vmatprep.subr.bf16.mxu0 0
    %1624 = vmatpush1.bf16.msra.mxu0 0
    %1625 = vmatprep.subr.bf16.mxu0 0
    %1626 = vmatpush1.bf16.msra.mxu0 0
    %1627 = vmatprep.subr.bf16.mxu0 0
    %1628 = vmatpush1.bf16.msra.mxu0 0
    %1629 = vmatprep.subr.bf16.mxu0 0
    %1630 = vmatpush1.bf16.msra.mxu0 0
    %1631 = vmatprep.subr.bf16.mxu0 0
    %1632 = vmatpush1.bf16.msra.mxu0 0
    %1633 = vmatprep.subr.bf16.mxu0 0
    %1634 = vmatpush1.bf16.msra.mxu0 0
    %1635 = vmatprep.subr.bf16.mxu0 0
    %1636 = vmatpush1.bf16.msra.mxu0 0
    %1637 = vmatprep.subr.bf16.mxu0 0
    %1638 = vmatpush1.bf16.msra.mxu0 0
    %1639 = vmatprep.mubr.bf16.mxu0 0
    %1640 = vmatmul.mubr.bf16.gmra.mrb[0].mxu0 %v1605
    %v1641 = vpop.f32.mrb[0].mxu0
    %v1642 = vadd.f32 %v1603, %v1641
    %v1643 = vpop.f32.mrb[0].mxu0
    %v1644 = vpop.f32.mrb[0].mxu0
    %v1645 = vadd.f32 %v1603, %v1644
    %v1646 = vpop.f32.mrb[0].mxu0
    %1647 = vdwg.mxu0
    %v1648 = vmul.f32 %v1642, %v1642
    %v1649 = vmul.f32 %v1645, %v1645
    %v1650 = vmul.f32 %v1642, %v1648
    %v1651 = vmul.f32 %v1645, %v1649
    %v1652 = vmul.f32 %v1650, 0.044715
    %v1653 = vmul.f32 %v1651, 0.044715
    %v1654 = vadd.f32 %v1642, %v1652
    %v1655 = vadd.f32 %v1645, %v1653
    %v1656 = vmul.f32 %v1654, 0.7978846
    %v1657 = vmul.f32 %v1655, 0.7978846
    %v1658 = vtanh.pop %v1656
    %v1659 = vtanh.pop %v1657
    %v1660 = vadd.f32 %v1658, 1.0
    %v1661 = vadd.f32 %v1659, 1.0
    %v1662 = vmul.f32 %v1660, 0.5
    %v1663 = vmul.f32 %v1661, 0.5
    %v1664 = vmul.f32 %v1642, %v1662
    %v1665 = vmul.f32 %v1645, %v1663
    %v1666 = vadd.f32 %v1588, %v1664
    %v1667 = vadd.f32 %v1589, %v1665
    %v1668 = vsel %vm162, %v1666, 0.0
    %1669 = vadd.xlane.f32.xlu0 %v1668
    %v1670 = vpop.xlane.xlu0 %1669
    %v1671 = vsel %vm162, %v1667, 0.0
    %1672 = vadd.xlane.f32.xlu0 %v1671
    %v1673 = vpop.xlane.xlu0 %1672
    %v1674 = vmul.f32 %v1670, %v233
    %v1675 = vmul.f32 %v1673, %v233
    %v1676 = vmul.f32 %v1666, %v1666
    %v1677 = vmul.f32 %v1667, %v1667
    %v1678 = vsel %vm162, %v1676, 0.0
    %1679 = vadd.xlane.f32.xlu0 %v1678
    %v1680 = vpop.xlane.xlu0 %1679
    %v1681 = vsel %vm162, %v1677, 0.0
    %1682 = vadd.xlane.f32.xlu0 %v1681
    %v1683 = vpop.xlane.xlu0 %1682
    %v1684 = vmul.f32 %v1680, %v233
    %v1685 = vmul.f32 %v1683, %v233
    %v1686 = vmul.f32 %v1674, %v1674
    %v1687 = vmul.f32 %v1675, %v1675
    %v1688 = vsub.f32 %v1684, %v1686
    %v1689 = vsub.f32 %v1685, %v1687
    %v1690 = vsub.f32 %v1666, %v1674
    %v1691 = vsub.f32 %v1667, %v1675
    %v1692 = vadd.f32 %v1688, 1e-05
    %v1693 = vadd.f32 %v1689, 1e-05
    %v1694 = vrsqrt.pop %v1692
    %v1695 = vrsqrt.pop %v1693
    %v1696 = vmul.f32 %v1690, %v1694
    %v1697 = vmul.f32 %v1691, %v1695
    %v1698 = vlaneseq
    %v1699 = vshrl.u32 %v1698, 7
    %v1700 = vsub.s32 1, %v1699
    %v1701 = vrot.slane %v1598, %v1700
    %v1702 = vmul.f32 %v1696, %v1701
    %v1703 = vmul.f32 %v1697, %v1701
    %v1704 = vlaneseq
    %v1705 = vshrl.u32 %v1704, 7
    %v1706 = vsub.s32 2, %v1705
    %v1707 = vrot.slane %v1598, %v1706
    %v1708 = vadd.f32 %v1702, %v1707
    %v1709 = vadd.f32 %v1703, %v1707
    %s1710 = scalar_lea.vmem [#allocation2], 416
    %v1711 = vld [vmem:[%s1710] sm:$0xff]
    %v1712 = vld [vmem:[%s1710 + $0x8] sm:$0xff]
    %v1713 = vld [vmem:[%s1710 + $0x10] sm:$0xff]
    %v1714 = vld [vmem:[%s1710 + $0x18] sm:$0xff]
    %v1715 = vpack.c.bf16 %v1712, %v1711
    %v1716 = vpack.c.bf16 %v1714, %v1713
    %s1717 = scalar_lea.vmem %s5, 52
    %v1718 = vld [vmem:[%s1717] sm:$0x7]
    %v1719 = vpack.c.bf16 %v1709, %v1708
    %v1720 = vlaneseq
    %v1721 = vshrl.u32 %v1720, 7
    %v1722 = vsub.s32 0, %v1721
    %v1723 = vrot.slane %v1718, %v1722
    %v1725 = vsel %vm162, %v1719, 0
    %1727 = vmatprep.subr.bf16.mxu0 0
    %1728 = vmatpush1.bf16.msra.mxu0 %v1715
    %1729 = vmatprep.subr.bf16.mxu0 0
    %1730 = vmatpush1.bf16.msra.mxu0 %v1716
    %1731 = vmatprep.subr.bf16.mxu0 0
    %1732 = vmatpush1.bf16.msra.mxu0 0
    %1733 = vmatprep.subr.bf16.mxu0 0
    %1734 = vmatpush1.bf16.msra.mxu0 0
    %1735 = vmatprep.subr.bf16.mxu0 0
    %1736 = vmatpush1.bf16.msra.mxu0 0
    %1737 = vmatprep.subr.bf16.mxu0 0
    %1738 = vmatpush1.bf16.msra.mxu0 0
    %1739 = vmatprep.subr.bf16.mxu0 0
    %1740 = vmatpush1.bf16.msra.mxu0 0
    %1741 = vmatprep.subr.bf16.mxu0 0
    %1742 = vmatpush1.bf16.msra.mxu0 0
    %1743 = vmatprep.subr.bf16.mxu0 0
    %1744 = vmatpush1.bf16.msra.mxu0 0
    %1745 = vmatprep.subr.bf16.mxu0 0
    %1746 = vmatpush1.bf16.msra.mxu0 0
    %1747 = vmatprep.subr.bf16.mxu0 0
    %1748 = vmatpush1.bf16.msra.mxu0 0
    %1749 = vmatprep.subr.bf16.mxu0 0
    %1750 = vmatpush1.bf16.msra.mxu0 0
    %1751 = vmatprep.subr.bf16.mxu0 0
    %1752 = vmatpush1.bf16.msra.mxu0 0
    %1753 = vmatprep.subr.bf16.mxu0 0
    %1754 = vmatpush1.bf16.msra.mxu0 0
    %1755 = vmatprep.subr.bf16.mxu0 0
    %1756 = vmatpush1.bf16.msra.mxu0 0
    %1757 = vmatprep.subr.bf16.mxu0 0
    %1758 = vmatpush1.bf16.msra.mxu0 0
    %1759 = vmatprep.mubr.bf16.mxu0 0
    %1760 = vmatmul.mubr.bf16.gmra.mrb[0].mxu0 %v1725
    %v1761 = vpop.f32.mrb[0].mxu0
    %v1762 = vadd.f32 %v1723, %v1761
    %v1763 = vpop.f32.mrb[0].mxu0
    %v1764 = vpop.f32.mrb[0].mxu0
    %v1765 = vadd.f32 %v1723, %v1764
    %v1766 = vpop.f32.mrb[0].mxu0
    %1767 = vdwg.mxu0
    %v1768 = vmul.f32 %v1762, %v1762
    %v1769 = vmul.f32 %v1765, %v1765
    %v1770 = vmul.f32 %v1762, %v1768
    %v1771 = vmul.f32 %v1765, %v1769
    %v1772 = vmul.f32 %v1770, 0.044715
    %v1773 = vmul.f32 %v1771, 0.044715
    %v1774 = vadd.f32 %v1762, %v1772
    %v1775 = vadd.f32 %v1765, %v1773
    %v1776 = vmul.f32 %v1774, 0.7978846
    %v1777 = vmul.f32 %v1775, 0.7978846
    %v1778 = vtanh.pop %v1776
    %v1779 = vtanh.pop %v1777
    %v1780 = vadd.f32 %v1778, 1.0
    %v1781 = vadd.f32 %v1779, 1.0
    %v1782 = vmul.f32 %v1780, 0.5
    %v1783 = vmul.f32 %v1781, 0.5
    %v1784 = vmul.f32 %v1762, %v1782
    %v1785 = vmul.f32 %v1765, %v1783
    %v1786 = vadd.f32 %v1708, %v1784
    %v1787 = vadd.f32 %v1709, %v1785
    %v1788 = vsel %vm162, %v1786, 0.0
    %1789 = vadd.xlane.f32.xlu0 %v1788
    %v1790 = vpop.xlane.xlu0 %1789
    %v1791 = vsel %vm162, %v1787, 0.0
    %1792 = vadd.xlane.f32.xlu0 %v1791
    %v1793 = vpop.xlane.xlu0 %1792
    %v1794 = vmul.f32 %v1790, %v233
    %v1795 = vmul.f32 %v1793, %v233
    %v1796 = vmul.f32 %v1786, %v1786
    %v1797 = vmul.f32 %v1787, %v1787
    %v1798 = vsel %vm162, %v1796, 0.0
    %1799 = vadd.xlane.f32.xlu0 %v1798
    %v1800 = vpop.xlane.xlu0 %1799
    %v1801 = vsel %vm162, %v1797, 0.0
    %1802 = vadd.xlane.f32.xlu0 %v1801
    %v1803 = vpop.xlane.xlu0 %1802
    %v1804 = vmul.f32 %v1800, %v233
    %v1805 = vmul.f32 %v1803, %v233
    %v1806 = vmul.f32 %v1794, %v1794
    %v1807 = vmul.f32 %v1795, %v1795
    %v1808 = vsub.f32 %v1804, %v1806
    %v1809 = vsub.f32 %v1805, %v1807
    %v1810 = vsub.f32 %v1786, %v1794
    %v1811 = vsub.f32 %v1787, %v1795
    %v1812 = vadd.f32 %v1808, 1e-05
    %v1813 = vadd.f32 %v1809, 1e-05
    %v1814 = vrsqrt.pop %v1812
    %v1815 = vrsqrt.pop %v1813
    %v1816 = vmul.f32 %v1810, %v1814
    %v1817 = vmul.f32 %v1811, %v1815
    %v1818 = vlaneseq
    %v1819 = vshrl.u32 %v1818, 7
    %v1820 = vsub.s32 1, %v1819
    %v1821 = vrot.slane %v1718, %v1820
    %v1822 = vmul.f32 %v1816, %v1821
    %v1823 = vmul.f32 %v1817, %v1821
    %v1824 = vlaneseq
    %v1825 = vshrl.u32 %v1824, 7
    %v1826 = vsub.s32 2, %v1825
    %v1827 = vrot.slane %v1718, %v1826
    %v1828 = vadd.f32 %v1822, %v1827
    %v1829 = vadd.f32 %v1823, %v1827
    %s1830 = scalar_lea.vmem [#allocation2], 448
    %v1831 = vld [vmem:[%s1830] sm:$0xff]
    %v1832 = vld [vmem:[%s1830 + $0x8] sm:$0xff]
    %v1833 = vld [vmem:[%s1830 + $0x10] sm:$0xff]
    %v1834 = vld [vmem:[%s1830 + $0x18] sm:$0xff]
    %v1835 = vpack.c.bf16 %v1832, %v1831
    %v1836 = vpack.c.bf16 %v1834, %v1833
    %s1837 = scalar_lea.vmem %s5, 56
    %v1838 = vld [vmem:[%s1837] sm:$0x7]
    %v1839 = vpack.c.bf16 %v1829, %v1828
    %v1840 = vlaneseq
    %v1841 = vshrl.u32 %v1840, 7
    %v1842 = vsub.s32 0, %v1841
    %v1843 = vrot.slane %v1838, %v1842
    %v1845 = vsel %vm162, %v1839, 0
    %1847 = vmatprep.subr.bf16.mxu0 0
    %1848 = vmatpush1.bf16.msra.mxu0 %v1835
    %1849 = vmatprep.subr.bf16.mxu0 0
    %1850 = vmatpush1.bf16.msra.mxu0 %v1836
    %1851 = vmatprep.subr.bf16.mxu0 0
    %1852 = vmatpush1.bf16.msra.mxu0 0
    %1853 = vmatprep.subr.bf16.mxu0 0
    %1854 = vmatpush1.bf16.msra.mxu0 0
    %1855 = vmatprep.subr.bf16.mxu0 0
    %1856 = vmatpush1.bf16.msra.mxu0 0
    %1857 = vmatprep.subr.bf16.mxu0 0
    %1858 = vmatpush1.bf16.msra.mxu0 0
    %1859 = vmatprep.subr.bf16.mxu0 0
    %1860 = vmatpush1.bf16.msra.mxu0 0
    %1861 = vmatprep.subr.bf16.mxu0 0
    %1862 = vmatpush1.bf16.msra.mxu0 0
    %1863 = vmatprep.subr.bf16.mxu0 0
    %1864 = vmatpush1.bf16.msra.mxu0 0
    %1865 = vmatprep.subr.bf16.mxu0 0
    %1866 = vmatpush1.bf16.msra.mxu0 0
    %1867 = vmatprep.subr.bf16.mxu0 0
    %1868 = vmatpush1.bf16.msra.mxu0 0
    %1869 = vmatprep.subr.bf16.mxu0 0
    %1870 = vmatpush1.bf16.msra.mxu0 0
    %1871 = vmatprep.subr.bf16.mxu0 0
    %1872 = vmatpush1.bf16.msra.mxu0 0
    %1873 = vmatprep.subr.bf16.mxu0 0
    %1874 = vmatpush1.bf16.msra.mxu0 0
    %1875 = vmatprep.subr.bf16.mxu0 0
    %1876 = vmatpush1.bf16.msra.mxu0 0
    %1877 = vmatprep.subr.bf16.mxu0 0
    %1878 = vmatpush1.bf16.msra.mxu0 0
    %1879 = vmatprep.mubr.bf16.mxu0 0
    %1880 = vmatmul.mubr.bf16.gmra.mrb[0].mxu0 %v1845
    %v1881 = vpop.f32.mrb[0].mxu0
    %v1882 = vadd.f32 %v1843, %v1881
    %v1883 = vpop.f32.mrb[0].mxu0
    %v1884 = vpop.f32.mrb[0].mxu0
    %v1885 = vadd.f32 %v1843, %v1884
    %v1886 = vpop.f32.mrb[0].mxu0
    %1887 = vdwg.mxu0
    %v1888 = vmul.f32 %v1882, %v1882
    %v1889 = vmul.f32 %v1885, %v1885
    %v1890 = vmul.f32 %v1882, %v1888
    %v1891 = vmul.f32 %v1885, %v1889
    %v1892 = vmul.f32 %v1890, 0.044715
    %v1893 = vmul.f32 %v1891, 0.044715
    %v1894 = vadd.f32 %v1882, %v1892
    %v1895 = vadd.f32 %v1885, %v1893
    %v1896 = vmul.f32 %v1894, 0.7978846
    %v1897 = vmul.f32 %v1895, 0.7978846
    %v1898 = vtanh.pop %v1896
    %v1899 = vtanh.pop %v1897
    %v1900 = vadd.f32 %v1898, 1.0
    %v1901 = vadd.f32 %v1899, 1.0
    %v1902 = vmul.f32 %v1900, 0.5
    %v1903 = vmul.f32 %v1901, 0.5
    %v1904 = vmul.f32 %v1882, %v1902
    %v1905 = vmul.f32 %v1885, %v1903
    %v1906 = vadd.f32 %v1828, %v1904
    %v1907 = vadd.f32 %v1829, %v1905
    %v1908 = vsel %vm162, %v1906, 0.0
    %1909 = vadd.xlane.f32.xlu0 %v1908
    %v1910 = vpop.xlane.xlu0 %1909
    %v1911 = vsel %vm162, %v1907, 0.0
    %1912 = vadd.xlane.f32.xlu0 %v1911
    %v1913 = vpop.xlane.xlu0 %1912
    %v1914 = vmul.f32 %v1910, %v233
    %v1915 = vmul.f32 %v1913, %v233
    %v1916 = vmul.f32 %v1906, %v1906
    %v1917 = vmul.f32 %v1907, %v1907
    %v1918 = vsel %vm162, %v1916, 0.0
    %1919 = vadd.xlane.f32.xlu0 %v1918
    %v1920 = vpop.xlane.xlu0 %1919
    %v1921 = vsel %vm162, %v1917, 0.0
    %1922 = vadd.xlane.f32.xlu0 %v1921
    %v1923 = vpop.xlane.xlu0 %1922
    %v1924 = vmul.f32 %v1920, %v233
    %v1925 = vmul.f32 %v1923, %v233
    %v1926 = vmul.f32 %v1914, %v1914
    %v1927 = vmul.f32 %v1915, %v1915
    %v1928 = vsub.f32 %v1924, %v1926
    %v1929 = vsub.f32 %v1925, %v1927
    %v1930 = vsub.f32 %v1906, %v1914
    %v1931 = vsub.f32 %v1907, %v1915
    %v1932 = vadd.f32 %v1928, 1e-05
    %v1933 = vadd.f32 %v1929, 1e-05
    %v1934 = vrsqrt.pop %v1932
    %v1935 = vrsqrt.pop %v1933
    %v1936 = vmul.f32 %v1930, %v1934
    %v1937 = vmul.f32 %v1931, %v1935
    %v1938 = vlaneseq
    %v1939 = vshrl.u32 %v1938, 7
    %v1940 = vsub.s32 1, %v1939
    %v1941 = vrot.slane %v1838, %v1940
    %v1942 = vmul.f32 %v1936, %v1941
    %v1943 = vmul.f32 %v1937, %v1941
    %v1944 = vlaneseq
    %v1945 = vshrl.u32 %v1944, 7
    %v1946 = vsub.s32 2, %v1945
    %v1947 = vrot.slane %v1838, %v1946
    %v1948 = vadd.f32 %v1942, %v1947
    %v1949 = vadd.f32 %v1943, %v1947
    %s1950 = scalar_lea.vmem [#allocation2], 480
    %v1951 = vld [vmem:[%s1950] sm:$0xff]
    %v1952 = vld [vmem:[%s1950 + $0x8] sm:$0xff]
    %v1953 = vld [vmem:[%s1950 + $0x10] sm:$0xff]
    %v1954 = vld [vmem:[%s1950 + $0x18] sm:$0xff]
    %v1955 = vpack.c.bf16 %v1952, %v1951
    %v1956 = vpack.c.bf16 %v1954, %v1953
    %s1957 = scalar_lea.vmem %s5, 60
    %v1958 = vld [vmem:[%s1957] sm:$0x7]
    %v1959 = vpack.c.bf16 %v1949, %v1948
    %v1960 = vlaneseq
    %v1961 = vshrl.u32 %v1960, 7
    %v1962 = vsub.s32 0, %v1961
    %v1963 = vrot.slane %v1958, %v1962
    %v1965 = vsel %vm162, %v1959, 0
    %1967 = vmatprep.subr.bf16.mxu0 0
    %1968 = vmatpush1.bf16.msra.mxu0 %v1955
    %1969 = vmatprep.subr.bf16.mxu0 0
    %1970 = vmatpush1.bf16.msra.mxu0 %v1956
    %1971 = vmatprep.subr.bf16.mxu0 0
    %1972 = vmatpush1.bf16.msra.mxu0 0
    %1973 = vmatprep.subr.bf16.mxu0 0
    %1974 = vmatpush1.bf16.msra.mxu0 0
    %1975 = vmatprep.subr.bf16.mxu0 0
    %1976 = vmatpush1.bf16.msra.mxu0 0
    %1977 = vmatprep.subr.bf16.mxu0 0
    %1978 = vmatpush1.bf16.msra.mxu0 0
    %1979 = vmatprep.subr.bf16.mxu0 0
    %1980 = vmatpush1.bf16.msra.mxu0 0
    %1981 = vmatprep.subr.bf16.mxu0 0
    %1982 = vmatpush1.bf16.msra.mxu0 0
    %1983 = vmatprep.subr.bf16.mxu0 0
    %1984 = vmatpush1.bf16.msra.mxu0 0
    %1985 = vmatprep.subr.bf16.mxu0 0
    %1986 = vmatpush1.bf16.msra.mxu0 0
    %1987 = vmatprep.subr.bf16.mxu0 0
    %1988 = vmatpush1.bf16.msra.mxu0 0
    %1989 = vmatprep.subr.bf16.mxu0 0
    %1990 = vmatpush1.bf16.msra.mxu0 0
    %1991 = vmatprep.subr.bf16.mxu0 0
    %1992 = vmatpush1.bf16.msra.mxu0 0
    %1993 = vmatprep.subr.bf16.mxu0 0
    %1994 = vmatpush1.bf16.msra.mxu0 0
    %1995 = vmatprep.subr.bf16.mxu0 0
    %1996 = vmatpush1.bf16.msra.mxu0 0
    %1997 = vmatprep.subr.bf16.mxu0 0
    %1998 = vmatpush1.bf16.msra.mxu0 0
    %1999 = vmatprep.mubr.bf16.mxu0 0
    %2000 = vmatmul.mubr.bf16.gmra.mrb[0].mxu0 %v1965
    %v2001 = vpop.f32.mrb[0].mxu0
    %v2002 = vadd.f32 %v1963, %v2001
    %v2003 = vpop.f32.mrb[0].mxu0
    %v2004 = vpop.f32.mrb[0].mxu0
    %v2005 = vadd.f32 %v1963, %v2004
    %v2006 = vpop.f32.mrb[0].mxu0
    %2007 = vdwg.mxu0
    %v2008 = vmul.f32 %v2002, %v2002
    %v2009 = vmul.f32 %v2005, %v2005
    %v2010 = vmul.f32 %v2002, %v2008
    %v2011 = vmul.f32 %v2005, %v2009
    %v2012 = vmul.f32 %v2010, 0.044715
    %v2013 = vmul.f32 %v2011, 0.044715
    %v2014 = vadd.f32 %v2002, %v2012
    %v2015 = vadd.f32 %v2005, %v2013
    %v2016 = vmul.f32 %v2014, 0.7978846
    %v2017 = vmul.f32 %v2015, 0.7978846
    %v2018 = vtanh.pop %v2016
    %v2019 = vtanh.pop %v2017
    %v2020 = vadd.f32 %v2018, 1.0
    %v2021 = vadd.f32 %v2019, 1.0
    %v2022 = vmul.f32 %v2020, 0.5
    %v2023 = vmul.f32 %v2021, 0.5
    %v2024 = vmul.f32 %v2002, %v2022
    %v2025 = vmul.f32 %v2005, %v2023
    %v2026 = vadd.f32 %v1948, %v2024
    %v2027 = vadd.f32 %v1949, %v2025
    %v2028 = vsel %vm162, %v2026, 0.0
    %2029 = vadd.xlane.f32.xlu0 %v2028
    %v2030 = vpop.xlane.xlu0 %2029
    %v2031 = vsel %vm162, %v2027, 0.0
    %2032 = vadd.xlane.f32.xlu0 %v2031
    %v2033 = vpop.xlane.xlu0 %2032
    %v2034 = vmul.f32 %v2030, %v233
    %v2035 = vmul.f32 %v2033, %v233
    %v2036 = vmul.f32 %v2026, %v2026
    %v2037 = vmul.f32 %v2027, %v2027
    %v2038 = vsel %vm162, %v2036, 0.0
    %2039 = vadd.xlane.f32.xlu0 %v2038
    %v2040 = vpop.xlane.xlu0 %2039
    %v2041 = vsel %vm162, %v2037, 0.0
    %2042 = vadd.xlane.f32.xlu0 %v2041
    %v2043 = vpop.xlane.xlu0 %2042
    %v2044 = vmul.f32 %v2040, %v233
    %v2045 = vmul.f32 %v2043, %v233
    %v2046 = vmul.f32 %v2034, %v2034
    %v2047 = vmul.f32 %v2035, %v2035
    %v2048 = vsub.f32 %v2044, %v2046
    %v2049 = vsub.f32 %v2045, %v2047
    %v2050 = vsub.f32 %v2026, %v2034
    %v2051 = vsub.f32 %v2027, %v2035
    %v2052 = vadd.f32 %v2048, 1e-05
    %v2053 = vadd.f32 %v2049, 1e-05
    %v2054 = vrsqrt.pop %v2052
    %v2055 = vrsqrt.pop %v2053
    %v2056 = vmul.f32 %v2050, %v2054
    %v2057 = vmul.f32 %v2051, %v2055
    %v2058 = vlaneseq
    %v2059 = vshrl.u32 %v2058, 7
    %v2060 = vsub.s32 1, %v2059
    %v2061 = vrot.slane %v1958, %v2060
    %v2062 = vmul.f32 %v2056, %v2061
    %v2063 = vmul.f32 %v2057, %v2061
    %v2064 = vlaneseq
    %v2065 = vshrl.u32 %v2064, 7
    %v2066 = vsub.s32 2, %v2065
    %v2067 = vrot.slane %v1958, %v2066
    %v2068 = vadd.f32 %v2062, %v2067
    %v2069 = vadd.f32 %v2063, %v2067
    %s2070 = scalar_lea.vmem [#allocation2], 512
    %v2071 = vld [vmem:[%s2070] sm:$0xff]
    %v2072 = vld [vmem:[%s2070 + $0x8] sm:$0xff]
    %v2073 = vld [vmem:[%s2070 + $0x10] sm:$0xff]
    %v2074 = vld [vmem:[%s2070 + $0x18] sm:$0xff]
    %v2075 = vpack.c.bf16 %v2072, %v2071
    %v2076 = vpack.c.bf16 %v2074, %v2073
    %s2077 = scalar_lea.vmem %s5, 64
    %v2078 = vld [vmem:[%s2077] sm:$0x7]
    %v2079 = vpack.c.bf16 %v2069, %v2068
    %v2080 = vlaneseq
    %v2081 = vshrl.u32 %v2080, 7
    %v2082 = vsub.s32 0, %v2081
    %v2083 = vrot.slane %v2078, %v2082
    %v2085 = vsel %vm162, %v2079, 0
    %2087 = vmatprep.subr.bf16.mxu0 0
    %2088 = vmatpush1.bf16.msra.mxu0 %v2075
    %2089 = vmatprep.subr.bf16.mxu0 0
    %2090 = vmatpush1.bf16.msra.mxu0 %v2076
    %2091 = vmatprep.subr.bf16.mxu0 0
    %2092 = vmatpush1.bf16.msra.mxu0 0
    %2093 = vmatprep.subr.bf16.mxu0 0
    %2094 = vmatpush1.bf16.msra.mxu0 0
    %2095 = vmatprep.subr.bf16.mxu0 0
    %2096 = vmatpush1.bf16.msra.mxu0 0
    %2097 = vmatprep.subr.bf16.mxu0 0
    %2098 = vmatpush1.bf16.msra.mxu0 0
    %2099 = vmatprep.subr.bf16.mxu0 0
    %2100 = vmatpush1.bf16.msra.mxu0 0
    %2101 = vmatprep.subr.bf16.mxu0 0
    %2102 = vmatpush1.bf16.msra.mxu0 0
    %2103 = vmatprep.subr.bf16.mxu0 0
    %2104 = vmatpush1.bf16.msra.mxu0 0
    %2105 = vmatprep.subr.bf16.mxu0 0
    %2106 = vmatpush1.bf16.msra.mxu0 0
    %2107 = vmatprep.subr.bf16.mxu0 0
    %2108 = vmatpush1.bf16.msra.mxu0 0
    %2109 = vmatprep.subr.bf16.mxu0 0
    %2110 = vmatpush1.bf16.msra.mxu0 0
    %2111 = vmatprep.subr.bf16.mxu0 0
    %2112 = vmatpush1.bf16.msra.mxu0 0
    %2113 = vmatprep.subr.bf16.mxu0 0
    %2114 = vmatpush1.bf16.msra.mxu0 0
    %2115 = vmatprep.subr.bf16.mxu0 0
    %2116 = vmatpush1.bf16.msra.mxu0 0
    %2117 = vmatprep.subr.bf16.mxu0 0
    %2118 = vmatpush1.bf16.msra.mxu0 0
    %2119 = vmatprep.mubr.bf16.mxu0 0
    %2120 = vmatmul.mubr.bf16.gmra.mrb[0].mxu0 %v2085
    %v2121 = vpop.f32.mrb[0].mxu0
    %v2122 = vadd.f32 %v2083, %v2121
    %v2123 = vpop.f32.mrb[0].mxu0
    %v2124 = vpop.f32.mrb[0].mxu0
    %v2125 = vadd.f32 %v2083, %v2124
    %v2126 = vpop.f32.mrb[0].mxu0
    %2127 = vdwg.mxu0
    %v2128 = vmul.f32 %v2122, %v2122
    %v2129 = vmul.f32 %v2125, %v2125
    %v2130 = vmul.f32 %v2122, %v2128
    %v2131 = vmul.f32 %v2125, %v2129
    %v2132 = vmul.f32 %v2130, 0.044715
    %v2133 = vmul.f32 %v2131, 0.044715
    %v2134 = vadd.f32 %v2122, %v2132
    %v2135 = vadd.f32 %v2125, %v2133
    %v2136 = vmul.f32 %v2134, 0.7978846
    %v2137 = vmul.f32 %v2135, 0.7978846
    %v2138 = vtanh.pop %v2136
    %v2139 = vtanh.pop %v2137
    %v2140 = vadd.f32 %v2138, 1.0
    %v2141 = vadd.f32 %v2139, 1.0
    %v2142 = vmul.f32 %v2140, 0.5
    %v2143 = vmul.f32 %v2141, 0.5
    %v2144 = vmul.f32 %v2122, %v2142
    %v2145 = vmul.f32 %v2125, %v2143
    %v2146 = vadd.f32 %v2068, %v2144
    %v2147 = vadd.f32 %v2069, %v2145
    %v2148 = vsel %vm162, %v2146, 0.0
    %2149 = vadd.xlane.f32.xlu0 %v2148
    %v2150 = vpop.xlane.xlu0 %2149
    %v2151 = vsel %vm162, %v2147, 0.0
    %2152 = vadd.xlane.f32.xlu0 %v2151
    %v2153 = vpop.xlane.xlu0 %2152
    %v2154 = vmul.f32 %v2150, %v233
    %v2155 = vmul.f32 %v2153, %v233
    %v2156 = vmul.f32 %v2146, %v2146
    %v2157 = vmul.f32 %v2147, %v2147
    %v2158 = vsel %vm162, %v2156, 0.0
    %2159 = vadd.xlane.f32.xlu0 %v2158
    %v2160 = vpop.xlane.xlu0 %2159
    %v2161 = vsel %vm162, %v2157, 0.0
    %2162 = vadd.xlane.f32.xlu0 %v2161
    %v2163 = vpop.xlane.xlu0 %2162
    %v2164 = vmul.f32 %v2160, %v233
    %v2165 = vmul.f32 %v2163, %v233
    %v2166 = vmul.f32 %v2154, %v2154
    %v2167 = vmul.f32 %v2155, %v2155
    %v2168 = vsub.f32 %v2164, %v2166
    %v2169 = vsub.f32 %v2165, %v2167
    %v2170 = vsub.f32 %v2146, %v2154
    %v2171 = vsub.f32 %v2147, %v2155
    %v2172 = vadd.f32 %v2168, 1e-05
    %v2173 = vadd.f32 %v2169, 1e-05
    %v2174 = vrsqrt.pop %v2172
    %v2175 = vrsqrt.pop %v2173
    %v2176 = vmul.f32 %v2170, %v2174
    %v2177 = vmul.f32 %v2171, %v2175
    %v2178 = vlaneseq
    %v2179 = vshrl.u32 %v2178, 7
    %v2180 = vsub.s32 1, %v2179
    %v2181 = vrot.slane %v2078, %v2180
    %v2182 = vmul.f32 %v2176, %v2181
    %v2183 = vmul.f32 %v2177, %v2181
    %v2184 = vlaneseq
    %v2185 = vshrl.u32 %v2184, 7
    %v2186 = vsub.s32 2, %v2185
    %v2187 = vrot.slane %v2078, %v2186
    %v2188 = vadd.f32 %v2182, %v2187
    %v2189 = vadd.f32 %v2183, %v2187
    %s2190 = scalar_lea.vmem [#allocation2], 544
    %v2191 = vld [vmem:[%s2190] sm:$0xff]
    %v2192 = vld [vmem:[%s2190 + $0x8] sm:$0xff]
    %v2193 = vld [vmem:[%s2190 + $0x10] sm:$0xff]
    %v2194 = vld [vmem:[%s2190 + $0x18] sm:$0xff]
    %v2195 = vpack.c.bf16 %v2192, %v2191
    %v2196 = vpack.c.bf16 %v2194, %v2193
    %s2197 = scalar_lea.vmem %s5, 68
    %v2198 = vld [vmem:[%s2197] sm:$0x7]
    %v2199 = vpack.c.bf16 %v2189, %v2188
    %v2200 = vlaneseq
    %v2201 = vshrl.u32 %v2200, 7
    %v2202 = vsub.s32 0, %v2201
    %v2203 = vrot.slane %v2198, %v2202
    %v2205 = vsel %vm162, %v2199, 0
    %2207 = vmatprep.subr.bf16.mxu0 0
    %2208 = vmatpush1.bf16.msra.mxu0 %v2195
    %2209 = vmatprep.subr.bf16.mxu0 0
    %2210 = vmatpush1.bf16.msra.mxu0 %v2196
    %2211 = vmatprep.subr.bf16.mxu0 0
    %2212 = vmatpush1.bf16.msra.mxu0 0
    %2213 = vmatprep.subr.bf16.mxu0 0
    %2214 = vmatpush1.bf16.msra.mxu0 0
    %2215 = vmatprep.subr.bf16.mxu0 0
    %2216 = vmatpush1.bf16.msra.mxu0 0
    %2217 = vmatprep.subr.bf16.mxu0 0
    %2218 = vmatpush1.bf16.msra.mxu0 0
    %2219 = vmatprep.subr.bf16.mxu0 0
    %2220 = vmatpush1.bf16.msra.mxu0 0
    %2221 = vmatprep.subr.bf16.mxu0 0
    %2222 = vmatpush1.bf16.msra.mxu0 0
    %2223 = vmatprep.subr.bf16.mxu0 0
    %2224 = vmatpush1.bf16.msra.mxu0 0
    %2225 = vmatprep.subr.bf16.mxu0 0
    %2226 = vmatpush1.bf16.msra.mxu0 0
    %2227 = vmatprep.subr.bf16.mxu0 0
    %2228 = vmatpush1.bf16.msra.mxu0 0
    %2229 = vmatprep.subr.bf16.mxu0 0
    %2230 = vmatpush1.bf16.msra.mxu0 0
    %2231 = vmatprep.subr.bf16.mxu0 0
    %2232 = vmatpush1.bf16.msra.mxu0 0
    %2233 = vmatprep.subr.bf16.mxu0 0
    %2234 = vmatpush1.bf16.msra.mxu0 0
    %2235 = vmatprep.subr.bf16.mxu0 0
    %2236 = vmatpush1.bf16.msra.mxu0 0
    %2237 = vmatprep.subr.bf16.mxu0 0
    %2238 = vmatpush1.bf16.msra.mxu0 0
    %2239 = vmatprep.mubr.bf16.mxu0 0
    %2240 = vmatmul.mubr.bf16.gmra.mrb[0].mxu0 %v2205
    %v2241 = vpop.f32.mrb[0].mxu0
    %v2242 = vadd.f32 %v2203, %v2241
    %v2243 = vpop.f32.mrb[0].mxu0
    %v2244 = vpop.f32.mrb[0].mxu0
    %v2245 = vadd.f32 %v2203, %v2244
    %v2246 = vpop.f32.mrb[0].mxu0
    %2247 = vdwg.mxu0
    %v2248 = vmul.f32 %v2242, %v2242
    %v2249 = vmul.f32 %v2245, %v2245
    %v2250 = vmul.f32 %v2242, %v2248
    %v2251 = vmul.f32 %v2245, %v2249
    %v2252 = vmul.f32 %v2250, 0.044715
    %v2253 = vmul.f32 %v2251, 0.044715
    %v2254 = vadd.f32 %v2242, %v2252
    %v2255 = vadd.f32 %v2245, %v2253
    %v2256 = vmul.f32 %v2254, 0.7978846
    %v2257 = vmul.f32 %v2255, 0.7978846
    %v2258 = vtanh.pop %v2256
    %v2259 = vtanh.pop %v2257
    %v2260 = vadd.f32 %v2258, 1.0
    %v2261 = vadd.f32 %v2259, 1.0
    %v2262 = vmul.f32 %v2260, 0.5
    %v2263 = vmul.f32 %v2261, 0.5
    %v2264 = vmul.f32 %v2242, %v2262
    %v2265 = vmul.f32 %v2245, %v2263
    %v2266 = vadd.f32 %v2188, %v2264
    %v2267 = vadd.f32 %v2189, %v2265
    %v2268 = vsel %vm162, %v2266, 0.0
    %2269 = vadd.xlane.f32.xlu0 %v2268
    %v2270 = vpop.xlane.xlu0 %2269
    %v2271 = vsel %vm162, %v2267, 0.0
    %2272 = vadd.xlane.f32.xlu0 %v2271
    %v2273 = vpop.xlane.xlu0 %2272
    %v2274 = vmul.f32 %v2270, %v233
    %v2275 = vmul.f32 %v2273, %v233
    %v2276 = vmul.f32 %v2266, %v2266
    %v2277 = vmul.f32 %v2267, %v2267
    %v2278 = vsel %vm162, %v2276, 0.0
    %2279 = vadd.xlane.f32.xlu0 %v2278
    %v2280 = vpop.xlane.xlu0 %2279
    %v2281 = vsel %vm162, %v2277, 0.0
    %2282 = vadd.xlane.f32.xlu0 %v2281
    %v2283 = vpop.xlane.xlu0 %2282
    %v2284 = vmul.f32 %v2280, %v233
    %v2285 = vmul.f32 %v2283, %v233
    %v2286 = vmul.f32 %v2274, %v2274
    %v2287 = vmul.f32 %v2275, %v2275
    %v2288 = vsub.f32 %v2284, %v2286
    %v2289 = vsub.f32 %v2285, %v2287
    %v2290 = vsub.f32 %v2266, %v2274
    %v2291 = vsub.f32 %v2267, %v2275
    %v2292 = vadd.f32 %v2288, 1e-05
    %v2293 = vadd.f32 %v2289, 1e-05
    %v2294 = vrsqrt.pop %v2292
    %v2295 = vrsqrt.pop %v2293
    %v2296 = vmul.f32 %v2290, %v2294
    %v2297 = vmul.f32 %v2291, %v2295
    %v2298 = vlaneseq
    %v2299 = vshrl.u32 %v2298, 7
    %v2300 = vsub.s32 1, %v2299
    %v2301 = vrot.slane %v2198, %v2300
    %v2302 = vmul.f32 %v2296, %v2301
    %v2303 = vmul.f32 %v2297, %v2301
    %v2304 = vlaneseq
    %v2305 = vshrl.u32 %v2304, 7
    %v2306 = vsub.s32 2, %v2305
    %v2307 = vrot.slane %v2198, %v2306
    %v2308 = vadd.f32 %v2302, %v2307
    %v2309 = vadd.f32 %v2303, %v2307
    %s2310 = scalar_lea.vmem [#allocation2], 576
    %v2311 = vld [vmem:[%s2310] sm:$0xff]
    %v2312 = vld [vmem:[%s2310 + $0x8] sm:$0xff]
    %v2313 = vld [vmem:[%s2310 + $0x10] sm:$0xff]
    %v2314 = vld [vmem:[%s2310 + $0x18] sm:$0xff]
    %v2315 = vpack.c.bf16 %v2312, %v2311
    %v2316 = vpack.c.bf16 %v2314, %v2313
    %s2317 = scalar_lea.vmem %s5, 72
    %v2318 = vld [vmem:[%s2317] sm:$0x7]
    %v2319 = vpack.c.bf16 %v2309, %v2308
    %v2320 = vlaneseq
    %v2321 = vshrl.u32 %v2320, 7
    %v2322 = vsub.s32 0, %v2321
    %v2323 = vrot.slane %v2318, %v2322
    %v2325 = vsel %vm162, %v2319, 0
    %2327 = vmatprep.subr.bf16.mxu0 0
    %2328 = vmatpush1.bf16.msra.mxu0 %v2315
    %2329 = vmatprep.subr.bf16.mxu0 0
    %2330 = vmatpush1.bf16.msra.mxu0 %v2316
    %2331 = vmatprep.subr.bf16.mxu0 0
    %2332 = vmatpush1.bf16.msra.mxu0 0
    %2333 = vmatprep.subr.bf16.mxu0 0
    %2334 = vmatpush1.bf16.msra.mxu0 0
    %2335 = vmatprep.subr.bf16.mxu0 0
    %2336 = vmatpush1.bf16.msra.mxu0 0
    %2337 = vmatprep.subr.bf16.mxu0 0
    %2338 = vmatpush1.bf16.msra.mxu0 0
    %2339 = vmatprep.subr.bf16.mxu0 0
    %2340 = vmatpush1.bf16.msra.mxu0 0
    %2341 = vmatprep.subr.bf16.mxu0 0
    %2342 = vmatpush1.bf16.msra.mxu0 0
    %2343 = vmatprep.subr.bf16.mxu0 0
    %2344 = vmatpush1.bf16.msra.mxu0 0
    %2345 = vmatprep.subr.bf16.mxu0 0
    %2346 = vmatpush1.bf16.msra.mxu0 0
    %2347 = vmatprep.subr.bf16.mxu0 0
    %2348 = vmatpush1.bf16.msra.mxu0 0
    %2349 = vmatprep.subr.bf16.mxu0 0
    %2350 = vmatpush1.bf16.msra.mxu0 0
    %2351 = vmatprep.subr.bf16.mxu0 0
    %2352 = vmatpush1.bf16.msra.mxu0 0
    %2353 = vmatprep.subr.bf16.mxu0 0
    %2354 = vmatpush1.bf16.msra.mxu0 0
    %2355 = vmatprep.subr.bf16.mxu0 0
    %2356 = vmatpush1.bf16.msra.mxu0 0
    %2357 = vmatprep.subr.bf16.mxu0 0
    %2358 = vmatpush1.bf16.msra.mxu0 0
    %2359 = vmatprep.mubr.bf16.mxu0 0
    %2360 = vmatmul.mubr.bf16.gmra.mrb[0].mxu0 %v2325
    %v2361 = vpop.f32.mrb[0].mxu0
    %v2362 = vadd.f32 %v2323, %v2361
    %v2363 = vpop.f32.mrb[0].mxu0
    %v2364 = vpop.f32.mrb[0].mxu0
    %v2365 = vadd.f32 %v2323, %v2364
    %v2366 = vpop.f32.mrb[0].mxu0
    %2367 = vdwg.mxu0
    %v2368 = vmul.f32 %v2362, %v2362
    %v2369 = vmul.f32 %v2365, %v2365
    %v2370 = vmul.f32 %v2362, %v2368
    %v2371 = vmul.f32 %v2365, %v2369
    %v2372 = vmul.f32 %v2370, 0.044715
    %v2373 = vmul.f32 %v2371, 0.044715
    %v2374 = vadd.f32 %v2362, %v2372
    %v2375 = vadd.f32 %v2365, %v2373
    %v2376 = vmul.f32 %v2374, 0.7978846
    %v2377 = vmul.f32 %v2375, 0.7978846
    %v2378 = vtanh.pop %v2376
    %v2379 = vtanh.pop %v2377
    %v2380 = vadd.f32 %v2378, 1.0
    %v2381 = vadd.f32 %v2379, 1.0
    %v2382 = vmul.f32 %v2380, 0.5
    %v2383 = vmul.f32 %v2381, 0.5
    %v2384 = vmul.f32 %v2362, %v2382
    %v2385 = vmul.f32 %v2365, %v2383
    %v2386 = vadd.f32 %v2308, %v2384
    %v2387 = vadd.f32 %v2309, %v2385
    %v2388 = vsel %vm162, %v2386, 0.0
    %2389 = vadd.xlane.f32.xlu0 %v2388
    %v2390 = vpop.xlane.xlu0 %2389
    %v2391 = vsel %vm162, %v2387, 0.0
    %2392 = vadd.xlane.f32.xlu0 %v2391
    %v2393 = vpop.xlane.xlu0 %2392
    %v2394 = vmul.f32 %v2390, %v233
    %v2395 = vmul.f32 %v2393, %v233
    %v2396 = vmul.f32 %v2386, %v2386
    %v2397 = vmul.f32 %v2387, %v2387
    %v2398 = vsel %vm162, %v2396, 0.0
    %2399 = vadd.xlane.f32.xlu0 %v2398
    %v2400 = vpop.xlane.xlu0 %2399
    %v2401 = vsel %vm162, %v2397, 0.0
    %2402 = vadd.xlane.f32.xlu0 %v2401
    %v2403 = vpop.xlane.xlu0 %2402
    %v2404 = vmul.f32 %v2400, %v233
    %v2405 = vmul.f32 %v2403, %v233
    %v2406 = vmul.f32 %v2394, %v2394
    %v2407 = vmul.f32 %v2395, %v2395
    %v2408 = vsub.f32 %v2404, %v2406
    %v2409 = vsub.f32 %v2405, %v2407
    %v2410 = vsub.f32 %v2386, %v2394
    %v2411 = vsub.f32 %v2387, %v2395
    %v2412 = vadd.f32 %v2408, 1e-05
    %v2413 = vadd.f32 %v2409, 1e-05
    %v2414 = vrsqrt.pop %v2412
    %v2415 = vrsqrt.pop %v2413
    %v2416 = vmul.f32 %v2410, %v2414
    %v2417 = vmul.f32 %v2411, %v2415
    %v2418 = vlaneseq
    %v2419 = vshrl.u32 %v2418, 7
    %v2420 = vsub.s32 1, %v2419
    %v2421 = vrot.slane %v2318, %v2420
    %v2422 = vmul.f32 %v2416, %v2421
    %v2423 = vmul.f32 %v2417, %v2421
    %v2424 = vlaneseq
    %v2425 = vshrl.u32 %v2424, 7
    %v2426 = vsub.s32 2, %v2425
    %v2427 = vrot.slane %v2318, %v2426
    %v2428 = vadd.f32 %v2422, %v2427
    %v2429 = vadd.f32 %v2423, %v2427
    %s2430 = scalar_lea.vmem [#allocation2], 608
    %v2431 = vld [vmem:[%s2430] sm:$0xff]
    %v2432 = vld [vmem:[%s2430 + $0x8] sm:$0xff]
    %v2433 = vld [vmem:[%s2430 + $0x10] sm:$0xff]
    %v2434 = vld [vmem:[%s2430 + $0x18] sm:$0xff]
    %v2435 = vpack.c.bf16 %v2432, %v2431
    %v2436 = vpack.c.bf16 %v2434, %v2433
    %s2437 = scalar_lea.vmem %s5, 76
    %v2438 = vld [vmem:[%s2437] sm:$0x7]
    %v2439 = vpack.c.bf16 %v2429, %v2428
    %v2440 = vlaneseq
    %v2441 = vshrl.u32 %v2440, 7
    %v2442 = vsub.s32 0, %v2441
    %v2443 = vrot.slane %v2438, %v2442
    %v2445 = vsel %vm162, %v2439, 0
    %2447 = vmatprep.subr.bf16.mxu0 0
    %2448 = vmatpush1.bf16.msra.mxu0 %v2435
    %2449 = vmatprep.subr.bf16.mxu0 0
    %2450 = vmatpush1.bf16.msra.mxu0 %v2436
    %2451 = vmatprep.subr.bf16.mxu0 0
    %2452 = vmatpush1.bf16.msra.mxu0 0
    %2453 = vmatprep.subr.bf16.mxu0 0
    %2454 = vmatpush1.bf16.msra.mxu0 0
    %2455 = vmatprep.subr.bf16.mxu0 0
    %2456 = vmatpush1.bf16.msra.mxu0 0
    %2457 = vmatprep.subr.bf16.mxu0 0
    %2458 = vmatpush1.bf16.msra.mxu0 0
    %2459 = vmatprep.subr.bf16.mxu0 0
    %2460 = vmatpush1.bf16.msra.mxu0 0
    %2461 = vmatprep.subr.bf16.mxu0 0
    %2462 = vmatpush1.bf16.msra.mxu0 0
    %2463 = vmatprep.subr.bf16.mxu0 0
    %2464 = vmatpush1.bf16.msra.mxu0 0
    %2465 = vmatprep.subr.bf16.mxu0 0
    %2466 = vmatpush1.bf16.msra.mxu0 0
    %2467 = vmatprep.subr.bf16.mxu0 0
    %2468 = vmatpush1.bf16.msra.mxu0 0
    %2469 = vmatprep.subr.bf16.mxu0 0
    %2470 = vmatpush1.bf16.msra.mxu0 0
    %2471 = vmatprep.subr.bf16.mxu0 0
    %2472 = vmatpush1.bf16.msra.mxu0 0
    %2473 = vmatprep.subr.bf16.mxu0 0
    %2474 = vmatpush1.bf16.msra.mxu0 0
    %2475 = vmatprep.subr.bf16.mxu0 0
    %2476 = vmatpush1.bf16.msra.mxu0 0
    %2477 = vmatprep.subr.bf16.mxu0 0
    %2478 = vmatpush1.bf16.msra.mxu0 0
    %2479 = vmatprep.mubr.bf16.mxu0 0
    %2480 = vmatmul.mubr.bf16.gmra.mrb[0].mxu0 %v2445
    %v2481 = vpop.f32.mrb[0].mxu0
    %v2482 = vadd.f32 %v2443, %v2481
    %v2483 = vpop.f32.mrb[0].mxu0
    %v2484 = vpop.f32.mrb[0].mxu0
    %v2485 = vadd.f32 %v2443, %v2484
    %v2486 = vpop.f32.mrb[0].mxu0
    %2487 = vdwg.mxu0
    %v2488 = vmul.f32 %v2482, %v2482
    %v2489 = vmul.f32 %v2485, %v2485
    %v2490 = vmul.f32 %v2482, %v2488
    %v2491 = vmul.f32 %v2485, %v2489
    %v2492 = vmul.f32 %v2490, 0.044715
    %v2493 = vmul.f32 %v2491, 0.044715
    %v2494 = vadd.f32 %v2482, %v2492
    %v2495 = vadd.f32 %v2485, %v2493
    %v2496 = vmul.f32 %v2494, 0.7978846
    %v2497 = vmul.f32 %v2495, 0.7978846
    %v2498 = vtanh.pop %v2496
    %v2499 = vtanh.pop %v2497
    %v2500 = vadd.f32 %v2498, 1.0
    %v2501 = vadd.f32 %v2499, 1.0
    %v2502 = vmul.f32 %v2500, 0.5
    %v2503 = vmul.f32 %v2501, 0.5
    %v2504 = vmul.f32 %v2482, %v2502
    %v2505 = vmul.f32 %v2485, %v2503
    %v2506 = vadd.f32 %v2428, %v2504
    %v2507 = vadd.f32 %v2429, %v2505
    %v2508 = vsel %vm162, %v2506, 0.0
    %2509 = vadd.xlane.f32.xlu0 %v2508
    %v2510 = vpop.xlane.xlu0 %2509
    %v2511 = vsel %vm162, %v2507, 0.0
    %2512 = vadd.xlane.f32.xlu0 %v2511
    %v2513 = vpop.xlane.xlu0 %2512
    %v2514 = vmul.f32 %v2510, %v233
    %v2515 = vmul.f32 %v2513, %v233
    %v2516 = vmul.f32 %v2506, %v2506
    %v2517 = vmul.f32 %v2507, %v2507
    %v2518 = vsel %vm162, %v2516, 0.0
    %2519 = vadd.xlane.f32.xlu0 %v2518
    %v2520 = vpop.xlane.xlu0 %2519
    %v2521 = vsel %vm162, %v2517, 0.0
    %2522 = vadd.xlane.f32.xlu0 %v2521
    %v2523 = vpop.xlane.xlu0 %2522
    %v2524 = vmul.f32 %v2520, %v233
    %v2525 = vmul.f32 %v2523, %v233
    %v2526 = vmul.f32 %v2514, %v2514
    %v2527 = vmul.f32 %v2515, %v2515
    %v2528 = vsub.f32 %v2524, %v2526
    %v2529 = vsub.f32 %v2525, %v2527
    %v2530 = vsub.f32 %v2506, %v2514
    %v2531 = vsub.f32 %v2507, %v2515
    %v2532 = vadd.f32 %v2528, 1e-05
    %v2533 = vadd.f32 %v2529, 1e-05
    %v2534 = vrsqrt.pop %v2532
    %v2535 = vrsqrt.pop %v2533
    %v2536 = vmul.f32 %v2530, %v2534
    %v2537 = vmul.f32 %v2531, %v2535
    %v2538 = vlaneseq
    %v2539 = vshrl.u32 %v2538, 7
    %v2540 = vsub.s32 1, %v2539
    %v2541 = vrot.slane %v2438, %v2540
    %v2542 = vmul.f32 %v2536, %v2541
    %v2543 = vmul.f32 %v2537, %v2541
    %v2544 = vlaneseq
    %v2545 = vshrl.u32 %v2544, 7
    %v2546 = vsub.s32 2, %v2545
    %v2547 = vrot.slane %v2438, %v2546
    %v2548 = vadd.f32 %v2542, %v2547
    %v2549 = vadd.f32 %v2543, %v2547
    %s2550 = scalar_lea.vmem [#allocation2], 640
    %v2551 = vld [vmem:[%s2550] sm:$0xff]
    %v2552 = vld [vmem:[%s2550 + $0x8] sm:$0xff]
    %v2553 = vld [vmem:[%s2550 + $0x10] sm:$0xff]
    %v2554 = vld [vmem:[%s2550 + $0x18] sm:$0xff]
    %v2555 = vpack.c.bf16 %v2552, %v2551
    %v2556 = vpack.c.bf16 %v2554, %v2553
    %s2557 = scalar_lea.vmem %s5, 80
    %v2558 = vld [vmem:[%s2557] sm:$0x7]
    %v2559 = vpack.c.bf16 %v2549, %v2548
    %v2560 = vlaneseq
    %v2561 = vshrl.u32 %v2560, 7
    %v2562 = vsub.s32 0, %v2561
    %v2563 = vrot.slane %v2558, %v2562
    %v2565 = vsel %vm162, %v2559, 0
    %2567 = vmatprep.subr.bf16.mxu0 0
    %2568 = vmatpush1.bf16.msra.mxu0 %v2555
    %2569 = vmatprep.subr.bf16.mxu0 0
    %2570 = vmatpush1.bf16.msra.mxu0 %v2556
    %2571 = vmatprep.subr.bf16.mxu0 0
    %2572 = vmatpush1.bf16.msra.mxu0 0
    %2573 = vmatprep.subr.bf16.mxu0 0
    %2574 = vmatpush1.bf16.msra.mxu0 0
    %2575 = vmatprep.subr.bf16.mxu0 0
    %2576 = vmatpush1.bf16.msra.mxu0 0
    %2577 = vmatprep.subr.bf16.mxu0 0
    %2578 = vmatpush1.bf16.msra.mxu0 0
    %2579 = vmatprep.subr.bf16.mxu0 0
    %2580 = vmatpush1.bf16.msra.mxu0 0
    %2581 = vmatprep.subr.bf16.mxu0 0
    %2582 = vmatpush1.bf16.msra.mxu0 0
    %2583 = vmatprep.subr.bf16.mxu0 0
    %2584 = vmatpush1.bf16.msra.mxu0 0
    %2585 = vmatprep.subr.bf16.mxu0 0
    %2586 = vmatpush1.bf16.msra.mxu0 0
    %2587 = vmatprep.subr.bf16.mxu0 0
    %2588 = vmatpush1.bf16.msra.mxu0 0
    %2589 = vmatprep.subr.bf16.mxu0 0
    %2590 = vmatpush1.bf16.msra.mxu0 0
    %2591 = vmatprep.subr.bf16.mxu0 0
    %2592 = vmatpush1.bf16.msra.mxu0 0
    %2593 = vmatprep.subr.bf16.mxu0 0
    %2594 = vmatpush1.bf16.msra.mxu0 0
    %2595 = vmatprep.subr.bf16.mxu0 0
    %2596 = vmatpush1.bf16.msra.mxu0 0
    %2597 = vmatprep.subr.bf16.mxu0 0
    %2598 = vmatpush1.bf16.msra.mxu0 0
    %2599 = vmatprep.mubr.bf16.mxu0 0
    %2600 = vmatmul.mubr.bf16.gmra.mrb[0].mxu0 %v2565
    %v2601 = vpop.f32.mrb[0].mxu0
    %v2602 = vadd.f32 %v2563, %v2601
    %v2603 = vpop.f32.mrb[0].mxu0
    %v2604 = vpop.f32.mrb[0].mxu0
    %v2605 = vadd.f32 %v2563, %v2604
    %v2606 = vpop.f32.mrb[0].mxu0
    %2607 = vdwg.mxu0
    %v2608 = vmul.f32 %v2602, %v2602
    %v2609 = vmul.f32 %v2605, %v2605
    %v2610 = vmul.f32 %v2602, %v2608
    %v2611 = vmul.f32 %v2605, %v2609
    %v2612 = vmul.f32 %v2610, 0.044715
    %v2613 = vmul.f32 %v2611, 0.044715
    %v2614 = vadd.f32 %v2602, %v2612
    %v2615 = vadd.f32 %v2605, %v2613
    %v2616 = vmul.f32 %v2614, 0.7978846
    %v2617 = vmul.f32 %v2615, 0.7978846
    %v2618 = vtanh.pop %v2616
    %v2619 = vtanh.pop %v2617
    %v2620 = vadd.f32 %v2618, 1.0
    %v2621 = vadd.f32 %v2619, 1.0
    %v2622 = vmul.f32 %v2620, 0.5
    %v2623 = vmul.f32 %v2621, 0.5
    %v2624 = vmul.f32 %v2602, %v2622
    %v2625 = vmul.f32 %v2605, %v2623
    %v2626 = vadd.f32 %v2548, %v2624
    %v2627 = vadd.f32 %v2549, %v2625
    %v2628 = vsel %vm162, %v2626, 0.0
    %2629 = vadd.xlane.f32.xlu0 %v2628
    %v2630 = vpop.xlane.xlu0 %2629
    %v2631 = vsel %vm162, %v2627, 0.0
    %2632 = vadd.xlane.f32.xlu0 %v2631
    %v2633 = vpop.xlane.xlu0 %2632
    %v2634 = vmul.f32 %v2630, %v233
    %v2635 = vmul.f32 %v2633, %v233
    %v2636 = vmul.f32 %v2626, %v2626
    %v2637 = vmul.f32 %v2627, %v2627
    %v2638 = vsel %vm162, %v2636, 0.0
    %2639 = vadd.xlane.f32.xlu0 %v2638
    %v2640 = vpop.xlane.xlu0 %2639
    %v2641 = vsel %vm162, %v2637, 0.0
    %2642 = vadd.xlane.f32.xlu0 %v2641
    %v2643 = vpop.xlane.xlu0 %2642
    %v2644 = vmul.f32 %v2640, %v233
    %v2645 = vmul.f32 %v2643, %v233
    %v2646 = vmul.f32 %v2634, %v2634
    %v2647 = vmul.f32 %v2635, %v2635
    %v2648 = vsub.f32 %v2644, %v2646
    %v2649 = vsub.f32 %v2645, %v2647
    %v2650 = vsub.f32 %v2626, %v2634
    %v2651 = vsub.f32 %v2627, %v2635
    %v2652 = vadd.f32 %v2648, 1e-05
    %v2653 = vadd.f32 %v2649, 1e-05
    %v2654 = vrsqrt.pop %v2652
    %v2655 = vrsqrt.pop %v2653
    %v2656 = vmul.f32 %v2650, %v2654
    %v2657 = vmul.f32 %v2651, %v2655
    %v2658 = vlaneseq
    %v2659 = vshrl.u32 %v2658, 7
    %v2660 = vsub.s32 1, %v2659
    %v2661 = vrot.slane %v2558, %v2660
    %v2662 = vmul.f32 %v2656, %v2661
    %v2663 = vmul.f32 %v2657, %v2661
    %v2664 = vlaneseq
    %v2665 = vshrl.u32 %v2664, 7
    %v2666 = vsub.s32 2, %v2665
    %v2667 = vrot.slane %v2558, %v2666
    %v2668 = vadd.f32 %v2662, %v2667
    %v2669 = vadd.f32 %v2663, %v2667
    %s2670 = scalar_lea.vmem [#allocation2], 672
    %v2671 = vld [vmem:[%s2670] sm:$0xff]
    %v2672 = vld [vmem:[%s2670 + $0x8] sm:$0xff]
    %v2673 = vld [vmem:[%s2670 + $0x10] sm:$0xff]
    %v2674 = vld [vmem:[%s2670 + $0x18] sm:$0xff]
    %v2675 = vpack.c.bf16 %v2672, %v2671
    %v2676 = vpack.c.bf16 %v2674, %v2673
    %s2677 = scalar_lea.vmem %s5, 84
    %v2678 = vld [vmem:[%s2677] sm:$0x7]
    %v2679 = vpack.c.bf16 %v2669, %v2668
    %v2680 = vlaneseq
    %v2681 = vshrl.u32 %v2680, 7
    %v2682 = vsub.s32 0, %v2681
    %v2683 = vrot.slane %v2678, %v2682
    %v2685 = vsel %vm162, %v2679, 0
    %2687 = vmatprep.subr.bf16.mxu0 0
    %2688 = vmatpush1.bf16.msra.mxu0 %v2675
    %2689 = vmatprep.subr.bf16.mxu0 0
    %2690 = vmatpush1.bf16.msra.mxu0 %v2676
    %2691 = vmatprep.subr.bf16.mxu0 0
    %2692 = vmatpush1.bf16.msra.mxu0 0
    %2693 = vmatprep.subr.bf16.mxu0 0
    %2694 = vmatpush1.bf16.msra.mxu0 0
    %2695 = vmatprep.subr.bf16.mxu0 0
    %2696 = vmatpush1.bf16.msra.mxu0 0
    %2697 = vmatprep.subr.bf16.mxu0 0
    %2698 = vmatpush1.bf16.msra.mxu0 0
    %2699 = vmatprep.subr.bf16.mxu0 0
    %2700 = vmatpush1.bf16.msra.mxu0 0
    %2701 = vmatprep.subr.bf16.mxu0 0
    %2702 = vmatpush1.bf16.msra.mxu0 0
    %2703 = vmatprep.subr.bf16.mxu0 0
    %2704 = vmatpush1.bf16.msra.mxu0 0
    %2705 = vmatprep.subr.bf16.mxu0 0
    %2706 = vmatpush1.bf16.msra.mxu0 0
    %2707 = vmatprep.subr.bf16.mxu0 0
    %2708 = vmatpush1.bf16.msra.mxu0 0
    %2709 = vmatprep.subr.bf16.mxu0 0
    %2710 = vmatpush1.bf16.msra.mxu0 0
    %2711 = vmatprep.subr.bf16.mxu0 0
    %2712 = vmatpush1.bf16.msra.mxu0 0
    %2713 = vmatprep.subr.bf16.mxu0 0
    %2714 = vmatpush1.bf16.msra.mxu0 0
    %2715 = vmatprep.subr.bf16.mxu0 0
    %2716 = vmatpush1.bf16.msra.mxu0 0
    %2717 = vmatprep.subr.bf16.mxu0 0
    %2718 = vmatpush1.bf16.msra.mxu0 0
    %2719 = vmatprep.mubr.bf16.mxu0 0
    %2720 = vmatmul.mubr.bf16.gmra.mrb[0].mxu0 %v2685
    %v2721 = vpop.f32.mrb[0].mxu0
    %v2722 = vadd.f32 %v2683, %v2721
    %v2723 = vpop.f32.mrb[0].mxu0
    %v2724 = vpop.f32.mrb[0].mxu0
    %v2725 = vadd.f32 %v2683, %v2724
    %v2726 = vpop.f32.mrb[0].mxu0
    %2727 = vdwg.mxu0
    %v2728 = vmul.f32 %v2722, %v2722
    %v2729 = vmul.f32 %v2725, %v2725
    %v2730 = vmul.f32 %v2722, %v2728
    %v2731 = vmul.f32 %v2725, %v2729
    %v2732 = vmul.f32 %v2730, 0.044715
    %v2733 = vmul.f32 %v2731, 0.044715
    %v2734 = vadd.f32 %v2722, %v2732
    %v2735 = vadd.f32 %v2725, %v2733
    %v2736 = vmul.f32 %v2734, 0.7978846
    %v2737 = vmul.f32 %v2735, 0.7978846
    %v2738 = vtanh.pop %v2736
    %v2739 = vtanh.pop %v2737
    %v2740 = vadd.f32 %v2738, 1.0
    %v2741 = vadd.f32 %v2739, 1.0
    %v2742 = vmul.f32 %v2740, 0.5
    %v2743 = vmul.f32 %v2741, 0.5
    %v2744 = vmul.f32 %v2722, %v2742
    %v2745 = vmul.f32 %v2725, %v2743
    %v2746 = vadd.f32 %v2668, %v2744
    %v2747 = vadd.f32 %v2669, %v2745
    %v2748 = vsel %vm162, %v2746, 0.0
    %2749 = vadd.xlane.f32.xlu0 %v2748
    %v2750 = vpop.xlane.xlu0 %2749
    %v2751 = vsel %vm162, %v2747, 0.0
    %2752 = vadd.xlane.f32.xlu0 %v2751
    %v2753 = vpop.xlane.xlu0 %2752
    %v2754 = vmul.f32 %v2750, %v233
    %v2755 = vmul.f32 %v2753, %v233
    %v2756 = vmul.f32 %v2746, %v2746
    %v2757 = vmul.f32 %v2747, %v2747
    %v2758 = vsel %vm162, %v2756, 0.0
    %2759 = vadd.xlane.f32.xlu0 %v2758
    %v2760 = vpop.xlane.xlu0 %2759
    %v2761 = vsel %vm162, %v2757, 0.0
    %2762 = vadd.xlane.f32.xlu0 %v2761
    %v2763 = vpop.xlane.xlu0 %2762
    %v2764 = vmul.f32 %v2760, %v233
    %v2765 = vmul.f32 %v2763, %v233
    %v2766 = vmul.f32 %v2754, %v2754
    %v2767 = vmul.f32 %v2755, %v2755
    %v2768 = vsub.f32 %v2764, %v2766
    %v2769 = vsub.f32 %v2765, %v2767
    %v2770 = vsub.f32 %v2746, %v2754
    %v2771 = vsub.f32 %v2747, %v2755
    %v2772 = vadd.f32 %v2768, 1e-05
    %v2773 = vadd.f32 %v2769, 1e-05
    %v2774 = vrsqrt.pop %v2772
    %v2775 = vrsqrt.pop %v2773
    %v2776 = vmul.f32 %v2770, %v2774
    %v2777 = vmul.f32 %v2771, %v2775
    %v2778 = vlaneseq
    %v2779 = vshrl.u32 %v2778, 7
    %v2780 = vsub.s32 1, %v2779
    %v2781 = vrot.slane %v2678, %v2780
    %v2782 = vmul.f32 %v2776, %v2781
    %v2783 = vmul.f32 %v2777, %v2781
    %v2784 = vlaneseq
    %v2785 = vshrl.u32 %v2784, 7
    %v2786 = vsub.s32 2, %v2785
    %v2787 = vrot.slane %v2678, %v2786
    %v2788 = vadd.f32 %v2782, %v2787
    %v2789 = vadd.f32 %v2783, %v2787
    %s2790 = scalar_lea.vmem [#allocation2], 704
    %v2791 = vld [vmem:[%s2790] sm:$0xff]
    %v2792 = vld [vmem:[%s2790 + $0x8] sm:$0xff]
    %v2793 = vld [vmem:[%s2790 + $0x10] sm:$0xff]
    %v2794 = vld [vmem:[%s2790 + $0x18] sm:$0xff]
    %v2795 = vpack.c.bf16 %v2792, %v2791
    %v2796 = vpack.c.bf16 %v2794, %v2793
    %s2797 = scalar_lea.vmem %s5, 88
    %v2798 = vld [vmem:[%s2797] sm:$0x7]
    %v2799 = vpack.c.bf16 %v2789, %v2788
    %v2800 = vlaneseq
    %v2801 = vshrl.u32 %v2800, 7
    %v2802 = vsub.s32 0, %v2801
    %v2803 = vrot.slane %v2798, %v2802
    %v2805 = vsel %vm162, %v2799, 0
    %2807 = vmatprep.subr.bf16.mxu0 0
    %2808 = vmatpush1.bf16.msra.mxu0 %v2795
    %2809 = vmatprep.subr.bf16.mxu0 0
    %2810 = vmatpush1.bf16.msra.mxu0 %v2796
    %2811 = vmatprep.subr.bf16.mxu0 0
    %2812 = vmatpush1.bf16.msra.mxu0 0
    %2813 = vmatprep.subr.bf16.mxu0 0
    %2814 = vmatpush1.bf16.msra.mxu0 0
    %2815 = vmatprep.subr.bf16.mxu0 0
    %2816 = vmatpush1.bf16.msra.mxu0 0
    %2817 = vmatprep.subr.bf16.mxu0 0
    %2818 = vmatpush1.bf16.msra.mxu0 0
    %2819 = vmatprep.subr.bf16.mxu0 0
    %2820 = vmatpush1.bf16.msra.mxu0 0
    %2821 = vmatprep.subr.bf16.mxu0 0
    %2822 = vmatpush1.bf16.msra.mxu0 0
    %2823 = vmatprep.subr.bf16.mxu0 0
    %2824 = vmatpush1.bf16.msra.mxu0 0
    %2825 = vmatprep.subr.bf16.mxu0 0
    %2826 = vmatpush1.bf16.msra.mxu0 0
    %2827 = vmatprep.subr.bf16.mxu0 0
    %2828 = vmatpush1.bf16.msra.mxu0 0
    %2829 = vmatprep.subr.bf16.mxu0 0
    %2830 = vmatpush1.bf16.msra.mxu0 0
    %2831 = vmatprep.subr.bf16.mxu0 0
    %2832 = vmatpush1.bf16.msra.mxu0 0
    %2833 = vmatprep.subr.bf16.mxu0 0
    %2834 = vmatpush1.bf16.msra.mxu0 0
    %2835 = vmatprep.subr.bf16.mxu0 0
    %2836 = vmatpush1.bf16.msra.mxu0 0
    %2837 = vmatprep.subr.bf16.mxu0 0
    %2838 = vmatpush1.bf16.msra.mxu0 0
    %2839 = vmatprep.mubr.bf16.mxu0 0
    %2840 = vmatmul.mubr.bf16.gmra.mrb[0].mxu0 %v2805
    %v2841 = vpop.f32.mrb[0].mxu0
    %v2842 = vadd.f32 %v2803, %v2841
    %v2843 = vpop.f32.mrb[0].mxu0
    %v2844 = vpop.f32.mrb[0].mxu0
    %v2845 = vadd.f32 %v2803, %v2844
    %v2846 = vpop.f32.mrb[0].mxu0
    %2847 = vdwg.mxu0
    %v2848 = vmul.f32 %v2842, %v2842
    %v2849 = vmul.f32 %v2845, %v2845
    %v2850 = vmul.f32 %v2842, %v2848
    %v2851 = vmul.f32 %v2845, %v2849
    %v2852 = vmul.f32 %v2850, 0.044715
    %v2853 = vmul.f32 %v2851, 0.044715
    %v2854 = vadd.f32 %v2842, %v2852
    %v2855 = vadd.f32 %v2845, %v2853
    %v2856 = vmul.f32 %v2854, 0.7978846
    %v2857 = vmul.f32 %v2855, 0.7978846
    %v2858 = vtanh.pop %v2856
    %v2859 = vtanh.pop %v2857
    %v2860 = vadd.f32 %v2858, 1.0
    %v2861 = vadd.f32 %v2859, 1.0
    %v2862 = vmul.f32 %v2860, 0.5
    %v2863 = vmul.f32 %v2861, 0.5
    %v2864 = vmul.f32 %v2842, %v2862
    %v2865 = vmul.f32 %v2845, %v2863
    %v2866 = vadd.f32 %v2788, %v2864
    %v2867 = vadd.f32 %v2789, %v2865
    %v2868 = vsel %vm162, %v2866, 0.0
    %2869 = vadd.xlane.f32.xlu0 %v2868
    %v2870 = vpop.xlane.xlu0 %2869
    %v2871 = vsel %vm162, %v2867, 0.0
    %2872 = vadd.xlane.f32.xlu0 %v2871
    %v2873 = vpop.xlane.xlu0 %2872
    %v2874 = vmul.f32 %v2870, %v233
    %v2875 = vmul.f32 %v2873, %v233
    %v2876 = vmul.f32 %v2866, %v2866
    %v2877 = vmul.f32 %v2867, %v2867
    %v2878 = vsel %vm162, %v2876, 0.0
    %2879 = vadd.xlane.f32.xlu0 %v2878
    %v2880 = vpop.xlane.xlu0 %2879
    %v2881 = vsel %vm162, %v2877, 0.0
    %2882 = vadd.xlane.f32.xlu0 %v2881
    %v2883 = vpop.xlane.xlu0 %2882
    %v2884 = vmul.f32 %v2880, %v233
    %v2885 = vmul.f32 %v2883, %v233
    %v2886 = vmul.f32 %v2874, %v2874
    %v2887 = vmul.f32 %v2875, %v2875
    %v2888 = vsub.f32 %v2884, %v2886
    %v2889 = vsub.f32 %v2885, %v2887
    %v2890 = vsub.f32 %v2866, %v2874
    %v2891 = vsub.f32 %v2867, %v2875
    %v2892 = vadd.f32 %v2888, 1e-05
    %v2893 = vadd.f32 %v2889, 1e-05
    %v2894 = vrsqrt.pop %v2892
    %v2895 = vrsqrt.pop %v2893
    %v2896 = vmul.f32 %v2890, %v2894
    %v2897 = vmul.f32 %v2891, %v2895
    %v2898 = vlaneseq
    %v2899 = vshrl.u32 %v2898, 7
    %v2900 = vsub.s32 1, %v2899
    %v2901 = vrot.slane %v2798, %v2900
    %v2902 = vmul.f32 %v2896, %v2901
    %v2903 = vmul.f32 %v2897, %v2901
    %v2904 = vlaneseq
    %v2905 = vshrl.u32 %v2904, 7
    %v2906 = vsub.s32 2, %v2905
    %v2907 = vrot.slane %v2798, %v2906
    %v2908 = vadd.f32 %v2902, %v2907
    %v2909 = vadd.f32 %v2903, %v2907
    %s2910 = scalar_lea.vmem [#allocation2], 736
    %v2911 = vld [vmem:[%s2910] sm:$0xff]
    %v2912 = vld [vmem:[%s2910 + $0x8] sm:$0xff]
    %v2913 = vld [vmem:[%s2910 + $0x10] sm:$0xff]
    %v2914 = vld [vmem:[%s2910 + $0x18] sm:$0xff]
    %v2915 = vpack.c.bf16 %v2912, %v2911
    %v2916 = vpack.c.bf16 %v2914, %v2913
    %s2917 = scalar_lea.vmem %s5, 92
    %v2918 = vld [vmem:[%s2917] sm:$0x7]
    %v2919 = vpack.c.bf16 %v2909, %v2908
    %v2920 = vlaneseq
    %v2921 = vshrl.u32 %v2920, 7
    %v2922 = vsub.s32 0, %v2921
    %v2923 = vrot.slane %v2918, %v2922
    %v2925 = vsel %vm162, %v2919, 0
    %2927 = vmatprep.subr.bf16.mxu0 0
    %2928 = vmatpush1.bf16.msra.mxu0 %v2915
    %2929 = vmatprep.subr.bf16.mxu0 0
    %2930 = vmatpush1.bf16.msra.mxu0 %v2916
    %2931 = vmatprep.subr.bf16.mxu0 0
    %2932 = vmatpush1.bf16.msra.mxu0 0
    %2933 = vmatprep.subr.bf16.mxu0 0
    %2934 = vmatpush1.bf16.msra.mxu0 0
    %2935 = vmatprep.subr.bf16.mxu0 0
    %2936 = vmatpush1.bf16.msra.mxu0 0
    %2937 = vmatprep.subr.bf16.mxu0 0
    %2938 = vmatpush1.bf16.msra.mxu0 0
    %2939 = vmatprep.subr.bf16.mxu0 0
    %2940 = vmatpush1.bf16.msra.mxu0 0
    %2941 = vmatprep.subr.bf16.mxu0 0
    %2942 = vmatpush1.bf16.msra.mxu0 0
    %2943 = vmatprep.subr.bf16.mxu0 0
    %2944 = vmatpush1.bf16.msra.mxu0 0
    %2945 = vmatprep.subr.bf16.mxu0 0
    %2946 = vmatpush1.bf16.msra.mxu0 0
    %2947 = vmatprep.subr.bf16.mxu0 0
    %2948 = vmatpush1.bf16.msra.mxu0 0
    %2949 = vmatprep.subr.bf16.mxu0 0
    %2950 = vmatpush1.bf16.msra.mxu0 0
    %2951 = vmatprep.subr.bf16.mxu0 0
    %2952 = vmatpush1.bf16.msra.mxu0 0
    %2953 = vmatprep.subr.bf16.mxu0 0
    %2954 = vmatpush1.bf16.msra.mxu0 0
    %2955 = vmatprep.subr.bf16.mxu0 0
    %2956 = vmatpush1.bf16.msra.mxu0 0
    %2957 = vmatprep.subr.bf16.mxu0 0
    %2958 = vmatpush1.bf16.msra.mxu0 0
    %2959 = vmatprep.mubr.bf16.mxu0 0
    %2960 = vmatmul.mubr.bf16.gmra.mrb[0].mxu0 %v2925
    %v2961 = vpop.f32.mrb[0].mxu0
    %v2962 = vadd.f32 %v2923, %v2961
    %v2963 = vpop.f32.mrb[0].mxu0
    %v2964 = vpop.f32.mrb[0].mxu0
    %v2965 = vadd.f32 %v2923, %v2964
    %v2966 = vpop.f32.mrb[0].mxu0
    %2967 = vdwg.mxu0
    %v2968 = vmul.f32 %v2962, %v2962
    %v2969 = vmul.f32 %v2965, %v2965
    %v2970 = vmul.f32 %v2962, %v2968
    %v2971 = vmul.f32 %v2965, %v2969
    %v2972 = vmul.f32 %v2970, 0.044715
    %v2973 = vmul.f32 %v2971, 0.044715
    %v2974 = vadd.f32 %v2962, %v2972
    %v2975 = vadd.f32 %v2965, %v2973
    %v2976 = vmul.f32 %v2974, 0.7978846
    %v2977 = vmul.f32 %v2975, 0.7978846
    %v2978 = vtanh.pop %v2976
    %v2979 = vtanh.pop %v2977
    %v2980 = vadd.f32 %v2978, 1.0
    %v2981 = vadd.f32 %v2979, 1.0
    %v2982 = vmul.f32 %v2980, 0.5
    %v2983 = vmul.f32 %v2981, 0.5
    %v2984 = vmul.f32 %v2962, %v2982
    %v2985 = vmul.f32 %v2965, %v2983
    %v2986 = vadd.f32 %v2908, %v2984
    %v2987 = vadd.f32 %v2909, %v2985
    %v2988 = vsel %vm162, %v2986, 0.0
    %2989 = vadd.xlane.f32.xlu0 %v2988
    %v2990 = vpop.xlane.xlu0 %2989
    %v2991 = vsel %vm162, %v2987, 0.0
    %2992 = vadd.xlane.f32.xlu0 %v2991
    %v2993 = vpop.xlane.xlu0 %2992
    %v2994 = vmul.f32 %v2990, %v233
    %v2995 = vmul.f32 %v2993, %v233
    %v2996 = vmul.f32 %v2986, %v2986
    %v2997 = vmul.f32 %v2987, %v2987
    %v2998 = vsel %vm162, %v2996, 0.0
    %2999 = vadd.xlane.f32.xlu0 %v2998
    %v3000 = vpop.xlane.xlu0 %2999
    %v3001 = vsel %vm162, %v2997, 0.0
    %3002 = vadd.xlane.f32.xlu0 %v3001
    %v3003 = vpop.xlane.xlu0 %3002
    %v3004 = vmul.f32 %v3000, %v233
    %v3005 = vmul.f32 %v3003, %v233
    %v3006 = vmul.f32 %v2994, %v2994
    %v3007 = vmul.f32 %v2995, %v2995
    %v3008 = vsub.f32 %v3004, %v3006
    %v3009 = vsub.f32 %v3005, %v3007
    %v3010 = vsub.f32 %v2986, %v2994
    %v3011 = vsub.f32 %v2987, %v2995
    %v3012 = vadd.f32 %v3008, 1e-05
    %v3013 = vadd.f32 %v3009, 1e-05
    %v3014 = vrsqrt.pop %v3012
    %v3015 = vrsqrt.pop %v3013
    %v3016 = vmul.f32 %v3010, %v3014
    %v3017 = vmul.f32 %v3011, %v3015
    %v3018 = vlaneseq
    %v3019 = vshrl.u32 %v3018, 7
    %v3020 = vsub.s32 1, %v3019
    %v3021 = vrot.slane %v2918, %v3020
    %v3022 = vmul.f32 %v3016, %v3021
    %v3023 = vmul.f32 %v3017, %v3021
    %v3024 = vlaneseq
    %v3025 = vshrl.u32 %v3024, 7
    %v3026 = vsub.s32 2, %v3025
    %v3027 = vrot.slane %v2918, %v3026
    %v3028 = vadd.f32 %v3022, %v3027
    %v3029 = vadd.f32 %v3023, %v3027
    %v3030 = vpack.c.bf16 %v3029, %v3028
    %v3031 = vld [vmem:[%s6] sm:$0xff]
    %v3032 = vld [vmem:[%s6 + $0x8] sm:$0xff]
    %v3033 = vld [vmem:[%s6 + $0x10] sm:$0xff]
    %v3034 = vld [vmem:[%s6 + $0x18] sm:$0xff]
    %v3035 = vld [vmem:[%s6 + $0x20] sm:$0xff]
    %v3036 = vld [vmem:[%s6 + $0x28] sm:$0xff]
    %v3037 = vld [vmem:[%s6 + $0x30] sm:$0xff]
    %v3038 = vld [vmem:[%s6 + $0x38] sm:$0xff]
    %v3039 = vpack.c.bf16 %v3033, %v3031
    %v3040 = vpack.c.bf16 %v3034, %v3032
    %v3041 = vpack.c.bf16 %v3037, %v3035
    %v3042 = vpack.c.bf16 %v3038, %v3036
    %v3043 = vld [vmem:[%s7] sm:$0x3]
    %v3045 = vlaneseq
    %v3046 = vshrl.u32 %v3045, 7
    %v3047 = vsub.s32 0, %v3046
    %v3048 = vrot.slane %v3043, %v3047
    %v3049 = vlaneseq
    %v3050 = vshrl.u32 %v3049, 7
    %v3051 = vsub.s32 1, %v3050
    %v3052 = vrot.slane %v3043, %v3051
    %v3056 = vsel %vm162, %v3030, 0
    %3058 = vmatprep.subr.bf16.mxu0 %v3040
    %3059 = vmatpush1.bf16.msra.mxu0 %v3039
    %3060 = vmatprep.subr.bf16.mxu0 %v3042
    %3061 = vmatpush1.bf16.msra.mxu0 %v3041
    %3062 = vmatprep.subr.bf16.mxu0 0
    %3063 = vmatpush1.bf16.msra.mxu0 0
    %3064 = vmatprep.subr.bf16.mxu0 0
    %3065 = vmatpush1.bf16.msra.mxu0 0
    %3066 = vmatprep.subr.bf16.mxu0 0
    %3067 = vmatpush1.bf16.msra.mxu0 0
    %3068 = vmatprep.subr.bf16.mxu0 0
    %3069 = vmatpush1.bf16.msra.mxu0 0
    %3070 = vmatprep.subr.bf16.mxu0 0
    %3071 = vmatpush1.bf16.msra.mxu0 0
    %3072 = vmatprep.subr.bf16.mxu0 0
    %3073 = vmatpush1.bf16.msra.mxu0 0
    %3074 = vmatprep.subr.bf16.mxu0 0
    %3075 = vmatpush1.bf16.msra.mxu0 0
    %3076 = vmatprep.subr.bf16.mxu0 0
    %3077 = vmatpush1.bf16.msra.mxu0 0
    %3078 = vmatprep.subr.bf16.mxu0 0
    %3079 = vmatpush1.bf16.msra.mxu0 0
    %3080 = vmatprep.subr.bf16.mxu0 0
    %3081 = vmatpush1.bf16.msra.mxu0 0
    %3082 = vmatprep.subr.bf16.mxu0 0
    %3083 = vmatpush1.bf16.msra.mxu0 0
    %3084 = vmatprep.subr.bf16.mxu0 0
    %3085 = vmatpush1.bf16.msra.mxu0 0
    %3086 = vmatprep.subr.bf16.mxu0 0
    %3087 = vmatpush1.bf16.msra.mxu0 0
    %3088 = vmatprep.subr.bf16.mxu0 0
    %3089 = vmatpush1.bf16.msra.mxu0 0
    %3090 = vmatprep.mubr.bf16.mxu0 0
    %3091 = vmatmul.mubr.bf16.gmra.mrb[0].mxu0 %v885
    %v3092 = vpop.f32.mrb[0].mxu0
    %v3093 = vadd.f32 %v3048, %v3092
    %v3094 = vpop.f32.mrb[0].mxu0
    %v3095 = vadd.f32 %v3052, %v3094
    %v3096 = vpop.f32.mrb[0].mxu0
    %v3097 = vadd.f32 %v3048, %v3096
    %v3098 = vpop.f32.mrb[0].mxu0
    %v3099 = vadd.f32 %v3052, %v3098
    %3100 = vmatprep.mubr.bf16.mxu0 0
    %3101 = vmatmul.mubr.bf16.gmra.mrb[0].mxu0 %v1605
    %v3102 = vpop.f32.mrb[0].mxu0
    %v3103 = vadd.f32 %v3048, %v3102
    %v3104 = vpop.f32.mrb[0].mxu0
    %v3105 = vadd.f32 %v3052, %v3104
    %v3106 = vpop.f32.mrb[0].mxu0
    %v3107 = vadd.f32 %v3048, %v3106
    %v3108 = vpop.f32.mrb[0].mxu0
    %v3109 = vadd.f32 %v3052, %v3108
    %3110 = vmatprep.mubr.bf16.mxu0 0
    %3111 = vmatmul.mubr.bf16.gmra.mrb[0].mxu0 %v2325
    %v3112 = vpop.f32.mrb[0].mxu0
    %v3113 = vadd.f32 %v3048, %v3112
    %v3114 = vpop.f32.mrb[0].mxu0
    %v3115 = vadd.f32 %v3052, %v3114
    %v3116 = vpop.f32.mrb[0].mxu0
    %v3117 = vadd.f32 %v3048, %v3116
    %v3118 = vpop.f32.mrb[0].mxu0
    %v3119 = vadd.f32 %v3052, %v3118
    %3120 = vmatprep.mubr.bf16.mxu0 0
    %3121 = vmatmul.mubr.bf16.gmra.mrb[0].mxu0 %v3056
    %v3122 = vpop.f32.mrb[0].mxu0
    %v3123 = vadd.f32 %v3048, %v3122
    %v3124 = vpop.f32.mrb[0].mxu0
    %v3125 = vadd.f32 %v3052, %v3124
    %v3126 = vpop.f32.mrb[0].mxu0
    %v3127 = vadd.f32 %v3048, %v3126
    %v3128 = vpop.f32.mrb[0].mxu0
    %v3129 = vadd.f32 %v3052, %v3128
    %3130 = vdwg.mxu0
    %3131 = vst [vmem:[%s8] sm:$0xff] %v3093
    %3132 = vst [vmem:[%s8 + $0x8] sm:$0xff] %v3095
    %3133 = vst [vmem:[%s8 + $0x10] sm:$0xff] %v3097
    %3134 = vst [vmem:[%s8 + $0x18] sm:$0xff] %v3099
    %3135 = vst [vmem:[%s8 + $0x20] sm:$0xff] %v3103
    %3136 = vst [vmem:[%s8 + $0x28] sm:$0xff] %v3105
    %3137 = vst [vmem:[%s8 + $0x30] sm:$0xff] %v3107
    %3138 = vst [vmem:[%s8 + $0x38] sm:$0xff] %v3109
    %3139 = vst [vmem:[%s8 + $0x40] sm:$0xff] %v3113
    %3140 = vst [vmem:[%s8 + $0x48] sm:$0xff] %v3115
    %3141 = vst [vmem:[%s8 + $0x50] sm:$0xff] %v3117
    %3142 = vst [vmem:[%s8 + $0x58] sm:$0xff] %v3119
    %3143 = vst [vmem:[%s8 + $0x60] sm:$0xff] %v3123
    %3144 = vst [vmem:[%s8 + $0x68] sm:$0xff] %v3125
    %3145 = vst [vmem:[%s8 + $0x70] sm:$0xff] %v3127
    %3146 = vst [vmem:[%s8 + $0x78] sm:$0xff] %v3129
    // Predicated region
    $region38: #{forward.1} parent=1 // pred_check
      _
    $region39: #{forward.1} parent=1 // pred_check_branch
      %3148 = sbr.rel (0) target = $region41
    $region40: #{forward.1} parent=1 // pred_region
      _
    $region41: #{forward.1} parent=1 // pred_fallthru
      _
    // Predicated region
    $region42: #{forward.1} parent=1 // pred_check
      _
    $region43: #{forward.1} parent=1 // pred_check_branch
      %3150 = sbr.rel (0) target = $region45
    $region44: #{forward.1} parent=1 // pred_region
      _
    $region45: #{forward.1} parent=1 // pred_fallthru
      _
    %3151 = vsyncpa [#allocation3], 1

</llo_original>
